<compile_context>
chip_gen: v5e
topology: v5e:2x2
jax: 0.10.0
libtpu: 0.0.40
codegen_flags: <defaults>
</compile_context>

<pallas_src>
import functools

import jax
import jax.numpy as jnp
from jax import lax
from jax.experimental import pallas as pl
from jax.experimental.pallas import tpu as pltpu

KW = 4            # conv kernel size used everywhere in this module
PADW = 1          # conv padding used everywhere in this module
BN_EPS = 1e-5
LRELU_SLOPE = 0.2
LANE = 128
SUBLANE = 16      # bf16 sublane packing


def _round_up(x, m):
    return (x + m - 1) // m * m


# ---------------------------------------------------------------------------
# Generation-aware VMEM budget
# ---------------------------------------------------------------------------
def _vmem_budget():
    cap = 64 * 1024 * 1024                      # v7x-safe fallback (64 MiB/TC)
    try:
        info = pltpu.get_tpu_info()
        cap = int(getattr(info, "vmem_capacity_bytes", cap)) or cap
    except Exception:
        pass
    limit = max(32 << 20, min(int(cap * 0.75), 112 << 20))
    tile_budget = max(24 << 20, min(int(cap * 0.55), 88 << 20))
    return limit, tile_budget


# ---------------------------------------------------------------------------
# Pallas kernel: fused (on-chip im2col + bf16 MXU conv + shift + activation)
# ---------------------------------------------------------------------------
def _conv_kernel(x_ref, w_ref, shift_ref, o_ref, *, stride, tile_ho, wo, act):
    """One (image, row-tile) grid step of a k=4, pad=1 conv.

    x_ref:     (1, Hs, s, Ws, s*Cin)  bf16 padded image, parity-folded, resident
    w_ref:     (KW*(KW//s), s*Cin, Cout) bf16, BN scale folded at build time
    shift_ref: (1, Cout) f32          conv bias / folded BN beta
    o_ref:     (1, tile_ho, Wo, Cout) output row tile
    """
    s = stride
    n_dw = KW // s
    r0 = pl.program_id(1) * tile_ho

    # Hoist the small resident weights / shift out of the per-row loop.
    w_taps = [w_ref[i] for i in range(KW * n_dw)]
    shift = shift_ref[...]                                   # (1, Cout)

    def row_body(t, carry):
        acc = None
        for kh in range(KW):
            dh, hb = kh // s, kh % s
            for dw in range(n_dw):
                # contiguous full-lane tap slice: (Wo, s*Cin)
                xs = x_ref[0, r0 + dh + t, hb, pl.ds(dw, wo), :]
                part = jnp.dot(xs, w_taps[kh * n_dw + dw],
                               preferred_element_type=jnp.float32)
                acc = part if acc is None else acc + part
        y = acc + shift                                      # (Wo, Cout) f32
        if act == "lrelu":
            y = jnp.maximum(y, LRELU_SLOPE * y)              # cmp-free LeakyReLU
        else:  # "sigmoid"
            y = jax.nn.sigmoid(y)
        o_ref[0, t] = y.astype(o_ref.dtype)
        return carry

    lax.fori_loop(0, tile_ho, row_body, 0)


# ---------------------------------------------------------------------------
# Row-tile picker (VMEM accounting; >=2 parallel tiles for v7x megacore)
# ---------------------------------------------------------------------------
def _pick_row_tile(batch, ho, wo, s, cin, cout, out_bytes, tile_budget):
    halo = (KW - 1) // s
    ws = wo + halo
    cs = s * cin
    n_taps = KW * (KW // s)
    # VMEM that does not scale with the row tile (conservative x2 buffering).
    resident = (2 * (ho + halo + 8) * s * _round_up(ws, SUBLANE)
                * _round_up(cs, LANE) * 2
                + 2 * n_taps * _round_up(cs, SUBLANE) * _round_up(cout, LANE) * 2)
    avail = max(tile_budget - resident, 2 << 20)
    per_row = (2 * _round_up(wo, SUBLANE) * _round_up(cout, LANE) * out_bytes  # out tile x2
               + _round_up(wo, 8) * _round_up(cout, LANE) * 4                  # f32 acc
               + _round_up(wo, SUBLANE) * _round_up(cs, LANE) * 2)             # tap slab
    t = int(max(1, min(ho, avail // per_row)))
    # Guarantee at least 2 parallel tiles so v7x's second TensorCore gets work.
    if batch * ((ho + t - 1) // t) < 2 and ho >= 2:
        t = (ho + 1) // 2
    grid_r = (ho + t - 1) // t
    return t, grid_r


# ---------------------------------------------------------------------------
# One conv layer = one pallas_call (im2col fused on-chip)
# ---------------------------------------------------------------------------
def conv_layer(x, layer, out_dtype, vmem_limit, tile_budget):
    """y = act(conv2d(x, k=4, pad=1, stride) * bn_scale + shift), NHWC in/out."""
    n, h, w, cin = x.shape
    s, cout, act = layer["stride"], layer["cout"], layer["act"]
    assert cin == layer["cin"]
    ho = (h + 2 * PADW - KW) // s + 1
    wo = (w + 2 * PADW - KW) // s + 1
    out_bytes = jnp.dtype(out_dtype).itemsize
    t, grid_r = _pick_row_tile(n, ho, wo, s, cin, cout, out_bytes, tile_budget)

    halo = (KW - 1) // s
    hp = s * (grid_r * t + halo)          # padded rows (incl. row-tile overshoot)
    wp = s * (wo + halo)                  # padded cols
    pad_b, pad_r = hp - h - PADW, wp - w - PADW
    assert pad_b >= 0 and pad_r >= 0
    xp = jnp.pad(x, ((0, 0), (PADW, pad_b), (PADW, pad_r), (0, 0)))
    # Fold H/W parity so every conv tap is a contiguous full-lane slice:
    #   x5[n, h2, hb, w2, wb*Cin + ci] == xpad[n, s*h2 + hb, s*w2 + wb, ci]
    x5 = xp.reshape(n, hp // s, s, wp // s, s * cin)

    kernel = functools.partial(_conv_kernel, stride=s, tile_ho=t, wo=wo, act=act)
    return pl.pallas_call(
        kernel,
        out_shape=jax.ShapeDtypeStruct((n, ho, wo, cout), out_dtype),
        grid_spec=pltpu.PrefetchScalarGridSpec(
            num_scalar_prefetch=0,
            grid=(n, grid_r),
            in_specs=[
                # whole padded image, VMEM-resident across the row-tile axis
                pl.BlockSpec((1, hp // s, s, wp // s, s * cin),
                             lambda i, r: (i, 0, 0, 0, 0)),
                pl.BlockSpec(layer["w"].shape, lambda i, r: (0, 0, 0)),
                pl.BlockSpec(layer["shift"].shape, lambda i, r: (0, 0)),
            ],
            out_specs=pl.BlockSpec((1, t, wo, cout), lambda i, r: (i, r, 0, 0)),
        ),
        compiler_params=pltpu.CompilerParams(
            dimension_semantics=("parallel", "parallel"),
            vmem_limit_bytes=vmem_limit,
        ),
    )(x5, layer["w"], layer["shift"])


# ---------------------------------------------------------------------------
# Parameter construction (mirrors NLayerDiscriminator.__init__, eval-mode BN)
# ---------------------------------------------------------------------------
def _fold_layer(w_oihw, scale, shift, stride, act):
    """Fold BN scale into the conv weight and regroup taps for the kernel."""
    cout, cin = int(w_oihw.shape[0]), int(w_oihw.shape[1])
    w = w_oihw * scale[:, None, None, None]
    w = jnp.transpose(w, (2, 3, 1, 0))                       # (kh, kw, ci, co)
    w = w.reshape(KW, KW // stride, stride, cin, cout)       # kw = dw*s + wb
    w = w.reshape(KW * (KW // stride), stride * cin, cout)   # tap = kh*(KW//s)+dw
    return dict(w=w.astype(jnp.bfloat16),
                shift=shift.reshape(1, cout).astype(jnp.float32),
                stride=stride, cin=cin, cout=cout, act=act)


def make_params(key, input_nc, ndf=8, n_layers=3):
    """norm_layer = nn.BatchNorm2d  =>  use_bias=False for BN-normalised convs."""
    layers = []
    keys = iter(jax.random.split(key, 4 * (n_layers + 2)))

    def conv_w(cin, cout):
        return 0.02 * jax.random.normal(next(keys), (cout, cin, KW, KW), jnp.float32)

    # 1) Conv(input_nc -> ndf, s=2, bias=True) + LeakyReLU(0.2)
    w = conv_w(input_nc, ndf)
    b = 0.01 * jax.random.normal(next(keys), (ndf,), jnp.float32)
    layers.append(_fold_layer(w, jnp.ones((ndf,), jnp.float32), b, 2, "lrelu"))

    # 2) stride-2 Conv + BN + LeakyReLU blocks
    nf_mult = 1
    for nl in range(1, n_layers):
        nf_mult_prev, nf_mult = nf_mult, min(2 ** nl, 8)
        cin, cout = ndf * nf_mult_prev, ndf * nf_mult
        w = conv_w(cin, cout)
        gamma = 1.0 + 0.1 * jax.random.normal(next(keys), (cout,), jnp.float32)
        beta = 0.1 * jax.random.normal(next(keys), (cout,), jnp.float32)
        run_mean = jnp.zeros((cout,), jnp.float32)
        run_var = jnp.ones((cout,), jnp.float32)
        scale = gamma / jnp.sqrt(run_var + BN_EPS)
        shift = beta - run_mean * scale
        layers.append(_fold_layer(w, scale, shift, 2, "lrelu"))

    # 3) stride-1 Conv + BN + LeakyReLU block
    nf_mult_prev, nf_mult = nf_mult, min(2 ** n_layers, 8)
    cin, cout = ndf * nf_mult_prev, ndf * nf_mult
    w = conv_w(cin, cout)
    gamma = 1.0 + 0.1 * jax.random.normal(next(keys), (cout,), jnp.float32)
    beta = 0.1 * jax.random.normal(next(keys), (cout,), jnp.float32)
    scale = gamma / jnp.sqrt(jnp.ones((cout,), jnp.float32) + BN_EPS)
    layers.append(_fold_layer(w, scale, beta, 1, "lrelu"))

    # 4) Conv(ndf*nf_mult -> 1, s=1, bias=True) + Sigmoid
    w = conv_w(cout, 1)
    b = 0.01 * jax.random.normal(next(keys), (1,), jnp.float32)
    layers.append(_fold_layer(w, jnp.ones((1,), jnp.float32), b, 1, "sigmoid"))
    return layers


# ---------------------------------------------------------------------------
# Forward pass
# ---------------------------------------------------------------------------
def nlayer_discriminator(x_nchw, params):
    vmem_limit, tile_budget = _vmem_budget()
    # external NCHW (PyTorch) -> internal NHWC bf16 -> external NCHW f32
    x = jnp.transpose(x_nchw, (0, 2, 3, 1)).astype(jnp.bfloat16)
    last = len(params) - 1
    for li, layer in enumerate(params):
        out_dtype = jnp.float32 if li == last else jnp.bfloat16
        x = conv_layer(x, layer, out_dtype, vmem_limit, tile_budget)
    return jnp.transpose(x, (0, 3, 1, 2))


if __name__ == "__main__":
    key = jax.random.PRNGKey(0)
    k_in, k_par = jax.random.split(key)

    # Small shapes: batch=2, input_nc=3, 32x32 spatial (32->16->8->4->3->2)
    x = jax.random.normal(k_in, (2, 3, 32, 32), jnp.float32)
    params = make_params(k_par, input_nc=3, ndf=8, n_layers=3)

    fwd = jax.jit(lambda inp: nlayer_discriminator(inp, params))
    out = jax.block_until_ready(fwd(x))

    assert out.shape == (2, 1, 2, 2), out.shape
    assert bool(jnp.all(jnp.isfinite(out)))
    assert bool(jnp.all((out >= 0.0) & (out <= 1.0)))  # sigmoid output range
    print("KERNEL_OK")
</pallas_src>

<mosaic_0001>
module attributes {stable_mosaic.version = 11 : i64} {
  func.func @_conv_kernel(%arg0: i32, %arg1: i32, %arg2: memref<1x17x2x17x6xbf16, #tpu.memory_space<vmem>>, %arg3: memref<8x6x8xbf16, #tpu.memory_space<vmem>>, %arg4: memref<1x8xf32, #tpu.memory_space<vmem>>, %arg5: memref<1x16x16x8xbf16, #tpu.memory_space<vmem>>) attributes {dimension_semantics = [#tpu.dimension_semantics<parallel>, #tpu.dimension_semantics<parallel>], iteration_bounds = array<i64: 2, 1>, scalar_prefetch = 0 : i64, scratch_operands = 0 : i64, tpu.core_type = #tpu.core_type<tc>, window_params = [{transform_indices = @transform_0, window_bounds = array<i64: 1, 17, 2, 17, 6>}, {pipeline_mode = #tpu.pipeline_mode<synchronous>, transform_indices = @transform_1, window_bounds = array<i64: 8, 6, 8>}, {pipeline_mode = #tpu.pipeline_mode<synchronous>, transform_indices = @transform_2, window_bounds = array<i64: 1, 8>}, {transform_indices = @transform_3, window_bounds = array<i64: 1, 16, 16, 8>}]} {
    %c16_i32 = arith.constant 16 : i32
    %0 = arith.muli %arg1, %c16_i32 : i32
    %c0 = arith.constant 0 : index
    %c0_0 = arith.constant 0 : index
    %c0_1 = arith.constant 0 : index
    %1 = vector.load %arg3[%c0, %c0_0, %c0_1] : memref<8x6x8xbf16, #tpu.memory_space<vmem>>, vector<1x6x8xbf16>
    %2 = vector.shape_cast %1 : vector<1x6x8xbf16> to vector<6x8xbf16>
    %c1 = arith.constant 1 : index
    %c0_2 = arith.constant 0 : index
    %c0_3 = arith.constant 0 : index
    %3 = vector.load %arg3[%c1, %c0_2, %c0_3] : memref<8x6x8xbf16, #tpu.memory_space<vmem>>, vector<1x6x8xbf16>
    %4 = vector.shape_cast %3 : vector<1x6x8xbf16> to vector<6x8xbf16>
    %c2 = arith.constant 2 : index
    %c0_4 = arith.constant 0 : index
    %c0_5 = arith.constant 0 : index
    %5 = vector.load %arg3[%c2, %c0_4, %c0_5] : memref<8x6x8xbf16, #tpu.memory_space<vmem>>, vector<1x6x8xbf16>
    %6 = vector.shape_cast %5 : vector<1x6x8xbf16> to vector<6x8xbf16>
    %c3 = arith.constant 3 : index
    %c0_6 = arith.constant 0 : index
    %c0_7 = arith.constant 0 : index
    %7 = vector.load %arg3[%c3, %c0_6, %c0_7] : memref<8x6x8xbf16, #tpu.memory_space<vmem>>, vector<1x6x8xbf16>
    %8 = vector.shape_cast %7 : vector<1x6x8xbf16> to vector<6x8xbf16>
    %c4 = arith.constant 4 : index
    %c0_8 = arith.constant 0 : index
    %c0_9 = arith.constant 0 : index
    %9 = vector.load %arg3[%c4, %c0_8, %c0_9] : memref<8x6x8xbf16, #tpu.memory_space<vmem>>, vector<1x6x8xbf16>
    %10 = vector.shape_cast %9 : vector<1x6x8xbf16> to vector<6x8xbf16>
    %c5 = arith.constant 5 : index
    %c0_10 = arith.constant 0 : index
    %c0_11 = arith.constant 0 : index
    %11 = vector.load %arg3[%c5, %c0_10, %c0_11] : memref<8x6x8xbf16, #tpu.memory_space<vmem>>, vector<1x6x8xbf16>
    %12 = vector.shape_cast %11 : vector<1x6x8xbf16> to vector<6x8xbf16>
    %c6 = arith.constant 6 : index
    %c0_12 = arith.constant 0 : index
    %c0_13 = arith.constant 0 : index
    %13 = vector.load %arg3[%c6, %c0_12, %c0_13] : memref<8x6x8xbf16, #tpu.memory_space<vmem>>, vector<1x6x8xbf16>
    %14 = vector.shape_cast %13 : vector<1x6x8xbf16> to vector<6x8xbf16>
    %c7 = arith.constant 7 : index
    %c0_14 = arith.constant 0 : index
    %c0_15 = arith.constant 0 : index
    %15 = vector.load %arg3[%c7, %c0_14, %c0_15] : memref<8x6x8xbf16, #tpu.memory_space<vmem>>, vector<1x6x8xbf16>
    %16 = vector.shape_cast %15 : vector<1x6x8xbf16> to vector<6x8xbf16>
    %c0_16 = arith.constant 0 : index
    %c0_17 = arith.constant 0 : index
    %17 = vector.load %arg4[%c0_16, %c0_17] : memref<1x8xf32, #tpu.memory_space<vmem>>, vector<1x8xf32>
    %c0_i32 = arith.constant 0 : i32
    %c16_i32_18 = arith.constant 16 : i32
    %18 = arith.addi %c0_i32, %c16_i32_18 : i32
    %c1_i32 = arith.constant 1 : i32
    scf.for %arg6 = %c0_i32 to %18 step %c1_i32  : i32 {
      %c0_i32_20 = arith.constant 0 : i32
      %19 = arith.addi %0, %c0_i32_20 : i32
      %20 = arith.addi %19, %arg6 : i32
      %c0_21 = arith.constant 0 : index
      %21 = arith.index_cast %20 : i32 to index
      %c0_22 = arith.constant 0 : index
      %c0_23 = arith.constant 0 : index
      %c0_24 = arith.constant 0 : index
      %22 = vector.load %arg2[%c0_21, %21, %c0_22, %c0_23, %c0_24] : memref<1x17x2x17x6xbf16, #tpu.memory_space<vmem>>, vector<1x1x1x16x6xbf16>
      %23 = vector.shape_cast %22 : vector<1x1x1x16x6xbf16> to vector<16x6xbf16>
      %cst = arith.constant dense<0.000000e+00> : vector<16x8xf32>
      %24 = tpu.matmul %23, %2, %cst {dimension_numbers = #tpu.dot_dimension_numbers<[1], [0], [0], [1], [0, 0, 1, 1], [], []>} : vector<16x6xbf16>, vector<6x8xbf16>, vector<16x8xf32> -> vector<16x8xf32>
      %c0_i32_25 = arith.constant 0 : i32
      %25 = arith.addi %0, %c0_i32_25 : i32
      %26 = arith.addi %25, %arg6 : i32
      %c0_26 = arith.constant 0 : index
      %27 = arith.index_cast %26 : i32 to index
      %c0_27 = arith.constant 0 : index
      %c1_28 = arith.constant 1 : index
      %c0_29 = arith.constant 0 : index
      %28 = vector.load %arg2[%c0_26, %27, %c0_27, %c1_28, %c0_29] : memref<1x17x2x17x6xbf16, #tpu.memory_space<vmem>>, vector<1x1x1x16x6xbf16>
      %29 = vector.shape_cast %28 : vector<1x1x1x16x6xbf16> to vector<16x6xbf16>
      %cst_30 = arith.constant dense<0.000000e+00> : vector<16x8xf32>
      %30 = tpu.matmul %29, %4, %cst_30 {dimension_numbers = #tpu.dot_dimension_numbers<[1], [0], [0], [1], [0, 0, 1, 1], [], []>} : vector<16x6xbf16>, vector<6x8xbf16>, vector<16x8xf32> -> vector<16x8xf32>
      %31 = arith.addf %24, %30 : vector<16x8xf32>
      %c0_i32_31 = arith.constant 0 : i32
      %32 = arith.addi %0, %c0_i32_31 : i32
      %33 = arith.addi %32, %arg6 : i32
      %c0_32 = arith.constant 0 : index
      %34 = arith.index_cast %33 : i32 to index
      %c1_33 = arith.constant 1 : index
      %c0_34 = arith.constant 0 : index
      %c0_35 = arith.constant 0 : index
      %35 = vector.load %arg2[%c0_32, %34, %c1_33, %c0_34, %c0_35] : memref<1x17x2x17x6xbf16, #tpu.memory_space<vmem>>, vector<1x1x1x16x6xbf16>
      %36 = vector.shape_cast %35 : vector<1x1x1x16x6xbf16> to vector<16x6xbf16>
      %cst_36 = arith.constant dense<0.000000e+00> : vector<16x8xf32>
      %37 = tpu.matmul %36, %6, %cst_36 {dimension_numbers = #tpu.dot_dimension_numbers<[1], [0], [0], [1], [0, 0, 1, 1], [], []>} : vector<16x6xbf16>, vector<6x8xbf16>, vector<16x8xf32> -> vector<16x8xf32>
      %38 = arith.addf %31, %37 : vector<16x8xf32>
      %c0_i32_37 = arith.constant 0 : i32
      %39 = arith.addi %0, %c0_i32_37 : i32
      %40 = arith.addi %39, %arg6 : i32
      %c0_38 = arith.constant 0 : index
      %41 = arith.index_cast %40 : i32 to index
      %c1_39 = arith.constant 1 : index
      %c1_40 = arith.constant 1 : index
      %c0_41 = arith.constant 0 : index
      %42 = vector.load %arg2[%c0_38, %41, %c1_39, %c1_40, %c0_41] : memref<1x17x2x17x6xbf16, #tpu.memory_space<vmem>>, vector<1x1x1x16x6xbf16>
      %43 = vector.shape_cast %42 : vector<1x1x1x16x6xbf16> to vector<16x6xbf16>
      %cst_42 = arith.constant dense<0.000000e+00> : vector<16x8xf32>
      %44 = tpu.matmul %43, %8, %cst_42 {dimension_numbers = #tpu.dot_dimension_numbers<[1], [0], [0], [1], [0, 0, 1, 1], [], []>} : vector<16x6xbf16>, vector<6x8xbf16>, vector<16x8xf32> -> vector<16x8xf32>
      %45 = arith.addf %38, %44 : vector<16x8xf32>
      %c1_i32_43 = arith.constant 1 : i32
      %46 = arith.addi %0, %c1_i32_43 : i32
      %47 = arith.addi %46, %arg6 : i32
      %c0_44 = arith.constant 0 : index
      %48 = arith.index_cast %47 : i32 to index
      %c0_45 = arith.constant 0 : index
      %c0_46 = arith.constant 0 : index
      %c0_47 = arith.constant 0 : index
      %49 = vector.load %arg2[%c0_44, %48, %c0_45, %c0_46, %c0_47] : memref<1x17x2x17x6xbf16, #tpu.memory_space<vmem>>, vector<1x1x1x16x6xbf16>
      %50 = vector.shape_cast %49 : vector<1x1x1x16x6xbf16> to vector<16x6xbf16>
      %cst_48 = arith.constant dense<0.000000e+00> : vector<16x8xf32>
      %51 = tpu.matmul %50, %10, %cst_48 {dimension_numbers = #tpu.dot_dimension_numbers<[1], [0], [0], [1], [0, 0, 1, 1], [], []>} : vector<16x6xbf16>, vector<6x8xbf16>, vector<16x8xf32> -> vector<16x8xf32>
      %52 = arith.addf %45, %51 : vector<16x8xf32>
      %c1_i32_49 = arith.constant 1 : i32
      %53 = arith.addi %0, %c1_i32_49 : i32
      %54 = arith.addi %53, %arg6 : i32
      %c0_50 = arith.constant 0 : index
      %55 = arith.index_cast %54 : i32 to index
      %c0_51 = arith.constant 0 : index
      %c1_52 = arith.constant 1 : index
      %c0_53 = arith.constant 0 : index
      %56 = vector.load %arg2[%c0_50, %55, %c0_51, %c1_52, %c0_53] : memref<1x17x2x17x6xbf16, #tpu.memory_space<vmem>>, vector<1x1x1x16x6xbf16>
      %57 = vector.shape_cast %56 : vector<1x1x1x16x6xbf16> to vector<16x6xbf16>
      %cst_54 = arith.constant dense<0.000000e+00> : vector<16x8xf32>
      %58 = tpu.matmul %57, %12, %cst_54 {dimension_numbers = #tpu.dot_dimension_numbers<[1], [0], [0], [1], [0, 0, 1, 1], [], []>} : vector<16x6xbf16>, vector<6x8xbf16>, vector<16x8xf32> -> vector<16x8xf32>
      %59 = arith.addf %52, %58 : vector<16x8xf32>
      %c1_i32_55 = arith.constant 1 : i32
      %60 = arith.addi %0, %c1_i32_55 : i32
      %61 = arith.addi %60, %arg6 : i32
      %c0_56 = arith.constant 0 : index
      %62 = arith.index_cast %61 : i32 to index
      %c1_57 = arith.constant 1 : index
      %c0_58 = arith.constant 0 : index
      %c0_59 = arith.constant 0 : index
      %63 = vector.load %arg2[%c0_56, %62, %c1_57, %c0_58, %c0_59] : memref<1x17x2x17x6xbf16, #tpu.memory_space<vmem>>, vector<1x1x1x16x6xbf16>
      %64 = vector.shape_cast %63 : vector<1x1x1x16x6xbf16> to vector<16x6xbf16>
      %cst_60 = arith.constant dense<0.000000e+00> : vector<16x8xf32>
      %65 = tpu.matmul %64, %14, %cst_60 {dimension_numbers = #tpu.dot_dimension_numbers<[1], [0], [0], [1], [0, 0, 1, 1], [], []>} : vector<16x6xbf16>, vector<6x8xbf16>, vector<16x8xf32> -> vector<16x8xf32>
      %66 = arith.addf %59, %65 : vector<16x8xf32>
      %c1_i32_61 = arith.constant 1 : i32
      %67 = arith.addi %0, %c1_i32_61 : i32
      %68 = arith.addi %67, %arg6 : i32
      %c0_62 = arith.constant 0 : index
      %69 = arith.index_cast %68 : i32 to index
      %c1_63 = arith.constant 1 : index
      %c1_64 = arith.constant 1 : index
      %c0_65 = arith.constant 0 : index
      %70 = vector.load %arg2[%c0_62, %69, %c1_63, %c1_64, %c0_65] : memref<1x17x2x17x6xbf16, #tpu.memory_space<vmem>>, vector<1x1x1x16x6xbf16>
      %71 = vector.shape_cast %70 : vector<1x1x1x16x6xbf16> to vector<16x6xbf16>
      %cst_66 = arith.constant dense<0.000000e+00> : vector<16x8xf32>
      %72 = tpu.matmul %71, %16, %cst_66 {dimension_numbers = #tpu.dot_dimension_numbers<[1], [0], [0], [1], [0, 0, 1, 1], [], []>} : vector<16x6xbf16>, vector<6x8xbf16>, vector<16x8xf32> -> vector<16x8xf32>
      %73 = arith.addf %66, %72 : vector<16x8xf32>
      %74 = vector.broadcast %17 : vector<1x8xf32> to vector<16x8xf32>
      %75 = arith.addf %73, %74 : vector<16x8xf32>
      %cst_67 = arith.constant 2.000000e-01 : f32
      %76 = vector.broadcast %cst_67 : f32 to vector<16x8xf32>
      %77 = arith.mulf %76, %75 : vector<16x8xf32>
      %78 = arith.maximumf %75, %77 : vector<16x8xf32>
      %79 = arith.truncf %78 : vector<16x8xf32> to vector<16x8xbf16>
      %c0_68 = arith.constant 0 : index
      %80 = arith.index_cast %arg6 : i32 to index
      %c0_69 = arith.constant 0 : index
      %c0_70 = arith.constant 0 : index
      %81 = vector.load %arg5[%c0_68, %80, %c0_69, %c0_70] : memref<1x16x16x8xbf16, #tpu.memory_space<vmem>>, vector<1x1x16x8xbf16>
      %82 = vector.shape_cast %81 : vector<1x1x16x8xbf16> to vector<16x8xbf16>
      %83 = vector.shape_cast %79 : vector<16x8xbf16> to vector<1x1x16x8xbf16>
      tpu.vector_store %arg5[%c0_68, %80, %c0_69, %c0_70], %83 {strides = array<i32>} : memref<1x16x16x8xbf16, #tpu.memory_space<vmem>>, vector<1x1x16x8xbf16>,
    }
    %c16_i32_19 = arith.constant 16 : i32
    return
  }
  func.func @transform_0(%arg0: i32, %arg1: i32) -> (i32, i32, i32, i32, i32) {
    %c0_i32 = arith.constant 0 : i32
    %c0_i32_0 = arith.constant 0 : i32
    %c0_i32_1 = arith.constant 0 : i32
    %c0_i32_2 = arith.constant 0 : i32
    %c0_i32_3 = arith.constant 0 : i32
    return %arg0, %c0_i32, %c0_i32_0, %c0_i32_1, %c0_i32_2 : i32, i32, i32, i32, i32
  }
  func.func @transform_1(%arg0: i32, %arg1: i32) -> (i32, i32, i32) {
    %c0_i32 = arith.constant 0 : i32
    %c0_i32_0 = arith.constant 0 : i32
    %c0_i32_1 = arith.constant 0 : i32
    %c0_i32_2 = arith.constant 0 : i32
    return %c0_i32, %c0_i32_0, %c0_i32_1 : i32, i32, i32
  }
  func.func @transform_2(%arg0: i32, %arg1: i32) -> (i32, i32) {
    %c0_i32 = arith.constant 0 : i32
    %c0_i32_0 = arith.constant 0 : i32
    %c0_i32_1 = arith.constant 0 : i32
    return %c0_i32, %c0_i32_0 : i32, i32
  }
  func.func @transform_3(%arg0: i32, %arg1: i32) -> (i32, i32, i32, i32) {
    %c0_i32 = arith.constant 0 : i32
    %c0_i32_0 = arith.constant 0 : i32
    %c0_i32_1 = arith.constant 0 : i32
    return %arg0, %arg1, %c0_i32, %c0_i32_0 : i32, i32, i32, i32
  }
}

module attributes {stable_mosaic.version = 11 : i64} {
  func.func @_conv_kernel(%arg0: i32, %arg1: i32, %arg2: memref<1x9x2x9x16xbf16, #tpu.memory_space<vmem>>, %arg3: memref<8x16x16xbf16, #tpu.memory_space<vmem>>, %arg4: memref<1x16xf32, #tpu.memory_space<vmem>>, %arg5: memref<1x8x8x16xbf16, #tpu.memory_space<vmem>>) attributes {dimension_semantics = [#tpu.dimension_semantics<parallel>, #tpu.dimension_semantics<parallel>], iteration_bounds = array<i64: 2, 1>, scalar_prefetch = 0 : i64, scratch_operands = 0 : i64, tpu.core_type = #tpu.core_type<tc>, window_params = [{transform_indices = @transform_0, window_bounds = array<i64: 1, 9, 2, 9, 16>}, {pipeline_mode = #tpu.pipeline_mode<synchronous>, transform_indices = @transform_1, window_bounds = array<i64: 8, 16, 16>}, {pipeline_mode = #tpu.pipeline_mode<synchronous>, transform_indices = @transform_2, window_bounds = array<i64: 1, 16>}, {transform_indices = @transform_3, window_bounds = array<i64: 1, 8, 8, 16>}]} {
    %c8_i32 = arith.constant 8 : i32
    %0 = arith.muli %arg1, %c8_i32 : i32
    %c0 = arith.constant 0 : index
    %c0_0 = arith.constant 0 : index
    %c0_1 = arith.constant 0 : index
    %1 = vector.load %arg3[%c0, %c0_0, %c0_1] : memref<8x16x16xbf16, #tpu.memory_space<vmem>>, vector<1x16x16xbf16>
    %2 = vector.shape_cast %1 : vector<1x16x16xbf16> to vector<16x16xbf16>
    %c1 = arith.constant 1 : index
    %c0_2 = arith.constant 0 : index
    %c0_3 = arith.constant 0 : index
    %3 = vector.load %arg3[%c1, %c0_2, %c0_3] : memref<8x16x16xbf16, #tpu.memory_space<vmem>>, vector<1x16x16xbf16>
    %4 = vector.shape_cast %3 : vector<1x16x16xbf16> to vector<16x16xbf16>
    %c2 = arith.constant 2 : index
    %c0_4 = arith.constant 0 : index
    %c0_5 = arith.constant 0 : index
    %5 = vector.load %arg3[%c2, %c0_4, %c0_5] : memref<8x16x16xbf16, #tpu.memory_space<vmem>>, vector<1x16x16xbf16>
    %6 = vector.shape_cast %5 : vector<1x16x16xbf16> to vector<16x16xbf16>
    %c3 = arith.constant 3 : index
    %c0_6 = arith.constant 0 : index
    %c0_7 = arith.constant 0 : index
    %7 = vector.load %arg3[%c3, %c0_6, %c0_7] : memref<8x16x16xbf16, #tpu.memory_space<vmem>>, vector<1x16x16xbf16>
    %8 = vector.shape_cast %7 : vector<1x16x16xbf16> to vector<16x16xbf16>
    %c4 = arith.constant 4 : index
    %c0_8 = arith.constant 0 : index
    %c0_9 = arith.constant 0 : index
    %9 = vector.load %arg3[%c4, %c0_8, %c0_9] : memref<8x16x16xbf16, #tpu.memory_space<vmem>>, vector<1x16x16xbf16>
    %10 = vector.shape_cast %9 : vector<1x16x16xbf16> to vector<16x16xbf16>
    %c5 = arith.constant 5 : index
    %c0_10 = arith.constant 0 : index
    %c0_11 = arith.constant 0 : index
    %11 = vector.load %arg3[%c5, %c0_10, %c0_11] : memref<8x16x16xbf16, #tpu.memory_space<vmem>>, vector<1x16x16xbf16>
    %12 = vector.shape_cast %11 : vector<1x16x16xbf16> to vector<16x16xbf16>
    %c6 = arith.constant 6 : index
    %c0_12 = arith.constant 0 : index
    %c0_13 = arith.constant 0 : index
    %13 = vector.load %arg3[%c6, %c0_12, %c0_13] : memref<8x16x16xbf16, #tpu.memory_space<vmem>>, vector<1x16x16xbf16>
    %14 = vector.shape_cast %13 : vector<1x16x16xbf16> to vector<16x16xbf16>
    %c7 = arith.constant 7 : index
    %c0_14 = arith.constant 0 : index
    %c0_15 = arith.constant 0 : index
    %15 = vector.load %arg3[%c7, %c0_14, %c0_15] : memref<8x16x16xbf16, #tpu.memory_space<vmem>>, vector<1x16x16xbf16>
    %16 = vector.shape_cast %15 : vector<1x16x16xbf16> to vector<16x16xbf16>
    %c0_16 = arith.constant 0 : index
    %c0_17 = arith.constant 0 : index
    %17 = vector.load %arg4[%c0_16, %c0_17] : memref<1x16xf32, #tpu.memory_space<vmem>>, vector<1x16xf32>
    %c0_i32 = arith.constant 0 : i32
    %c8_i32_18 = arith.constant 8 : i32
    %18 = arith.addi %c0_i32, %c8_i32_18 : i32
    %c1_i32 = arith.constant 1 : i32
    scf.for %arg6 = %c0_i32 to %18 step %c1_i32  : i32 {
      %c0_i32_20 = arith.constant 0 : i32
      %19 = arith.addi %0, %c0_i32_20 : i32
      %20 = arith.addi %19, %arg6 : i32
      %c0_21 = arith.constant 0 : index
      %21 = arith.index_cast %20 : i32 to index
      %c0_22 = arith.constant 0 : index
      %c0_23 = arith.constant 0 : index
      %c0_24 = arith.constant 0 : index
      %22 = vector.load %arg2[%c0_21, %21, %c0_22, %c0_23, %c0_24] : memref<1x9x2x9x16xbf16, #tpu.memory_space<vmem>>, vector<1x1x1x8x16xbf16>
      %23 = vector.shape_cast %22 : vector<1x1x1x8x16xbf16> to vector<8x16xbf16>
      %cst = arith.constant dense<0.000000e+00> : vector<8x16xf32>
      %24 = tpu.matmul %23, %2, %cst {dimension_numbers = #tpu.dot_dimension_numbers<[1], [0], [0], [1], [0, 0, 1, 1], [], []>} : vector<8x16xbf16>, vector<16x16xbf16>, vector<8x16xf32> -> vector<8x16xf32>
      %c0_i32_25 = arith.constant 0 : i32
      %25 = arith.addi %0, %c0_i32_25 : i32
      %26 = arith.addi %25, %arg6 : i32
      %c0_26 = arith.constant 0 : index
      %27 = arith.index_cast %26 : i32 to index
      %c0_27 = arith.constant 0 : index
      %c1_28 = arith.constant 1 : index
      %c0_29 = arith.constant 0 : index
      %28 = vector.load %arg2[%c0_26, %27, %c0_27, %c1_28, %c0_29] : memref<1x9x2x9x16xbf16, #tpu.memory_space<vmem>>, vector<1x1x1x8x16xbf16>
      %29 = vector.shape_cast %28 : vector<1x1x1x8x16xbf16> to vector<8x16xbf16>
      %cst_30 = arith.constant dense<0.000000e+00> : vector<8x16xf32>
      %30 = tpu.matmul %29, %4, %cst_30 {dimension_numbers = #tpu.dot_dimension_numbers<[1], [0], [0], [1], [0, 0, 1, 1], [], []>} : vector<8x16xbf16>, vector<16x16xbf16>, vector<8x16xf32> -> vector<8x16xf32>
      %31 = arith.addf %24, %30 : vector<8x16xf32>
      %c0_i32_31 = arith.constant 0 : i32
      %32 = arith.addi %0, %c0_i32_31 : i32
      %33 = arith.addi %32, %arg6 : i32
      %c0_32 = arith.constant 0 : index
      %34 = arith.index_cast %33 : i32 to index
      %c1_33 = arith.constant 1 : index
      %c0_34 = arith.constant 0 : index
      %c0_35 = arith.constant 0 : index
      %35 = vector.load %arg2[%c0_32, %34, %c1_33, %c0_34, %c0_35] : memref<1x9x2x9x16xbf16, #tpu.memory_space<vmem>>, vector<1x1x1x8x16xbf16>
      %36 = vector.shape_cast %35 : vector<1x1x1x8x16xbf16> to vector<8x16xbf16>
      %cst_36 = arith.constant dense<0.000000e+00> : vector<8x16xf32>
      %37 = tpu.matmul %36, %6, %cst_36 {dimension_numbers = #tpu.dot_dimension_numbers<[1], [0], [0], [1], [0, 0, 1, 1], [], []>} : vector<8x16xbf16>, vector<16x16xbf16>, vector<8x16xf32> -> vector<8x16xf32>
      %38 = arith.addf %31, %37 : vector<8x16xf32>
      %c0_i32_37 = arith.constant 0 : i32
      %39 = arith.addi %0, %c0_i32_37 : i32
      %40 = arith.addi %39, %arg6 : i32
      %c0_38 = arith.constant 0 : index
      %41 = arith.index_cast %40 : i32 to index
      %c1_39 = arith.constant 1 : index
      %c1_40 = arith.constant 1 : index
      %c0_41 = arith.constant 0 : index
      %42 = vector.load %arg2[%c0_38, %41, %c1_39, %c1_40, %c0_41] : memref<1x9x2x9x16xbf16, #tpu.memory_space<vmem>>, vector<1x1x1x8x16xbf16>
      %43 = vector.shape_cast %42 : vector<1x1x1x8x16xbf16> to vector<8x16xbf16>
      %cst_42 = arith.constant dense<0.000000e+00> : vector<8x16xf32>
      %44 = tpu.matmul %43, %8, %cst_42 {dimension_numbers = #tpu.dot_dimension_numbers<[1], [0], [0], [1], [0, 0, 1, 1], [], []>} : vector<8x16xbf16>, vector<16x16xbf16>, vector<8x16xf32> -> vector<8x16xf32>
      %45 = arith.addf %38, %44 : vector<8x16xf32>
      %c1_i32_43 = arith.constant 1 : i32
      %46 = arith.addi %0, %c1_i32_43 : i32
      %47 = arith.addi %46, %arg6 : i32
      %c0_44 = arith.constant 0 : index
      %48 = arith.index_cast %47 : i32 to index
      %c0_45 = arith.constant 0 : index
      %c0_46 = arith.constant 0 : index
      %c0_47 = arith.constant 0 : index
      %49 = vector.load %arg2[%c0_44, %48, %c0_45, %c0_46, %c0_47] : memref<1x9x2x9x16xbf16, #tpu.memory_space<vmem>>, vector<1x1x1x8x16xbf16>
      %50 = vector.shape_cast %49 : vector<1x1x1x8x16xbf16> to vector<8x16xbf16>
      %cst_48 = arith.constant dense<0.000000e+00> : vector<8x16xf32>
      %51 = tpu.matmul %50, %10, %cst_48 {dimension_numbers = #tpu.dot_dimension_numbers<[1], [0], [0], [1], [0, 0, 1, 1], [], []>} : vector<8x16xbf16>, vector<16x16xbf16>, vector<8x16xf32> -> vector<8x16xf32>
      %52 = arith.addf %45, %51 : vector<8x16xf32>
      %c1_i32_49 = arith.constant 1 : i32
      %53 = arith.addi %0, %c1_i32_49 : i32
      %54 = arith.addi %53, %arg6 : i32
      %c0_50 = arith.constant 0 : index
      %55 = arith.index_cast %54 : i32 to index
      %c0_51 = arith.constant 0 : index
      %c1_52 = arith.constant 1 : index
      %c0_53 = arith.constant 0 : index
      %56 = vector.load %arg2[%c0_50, %55, %c0_51, %c1_52, %c0_53] : memref<1x9x2x9x16xbf16, #tpu.memory_space<vmem>>, vector<1x1x1x8x16xbf16>
      %57 = vector.shape_cast %56 : vector<1x1x1x8x16xbf16> to vector<8x16xbf16>
      %cst_54 = arith.constant dense<0.000000e+00> : vector<8x16xf32>
      %58 = tpu.matmul %57, %12, %cst_54 {dimension_numbers = #tpu.dot_dimension_numbers<[1], [0], [0], [1], [0, 0, 1, 1], [], []>} : vector<8x16xbf16>, vector<16x16xbf16>, vector<8x16xf32> -> vector<8x16xf32>
      %59 = arith.addf %52, %58 : vector<8x16xf32>
      %c1_i32_55 = arith.constant 1 : i32
      %60 = arith.addi %0, %c1_i32_55 : i32
      %61 = arith.addi %60, %arg6 : i32
      %c0_56 = arith.constant 0 : index
      %62 = arith.index_cast %61 : i32 to index
      %c1_57 = arith.constant 1 : index
      %c0_58 = arith.constant 0 : index
      %c0_59 = arith.constant 0 : index
      %63 = vector.load %arg2[%c0_56, %62, %c1_57, %c0_58, %c0_59] : memref<1x9x2x9x16xbf16, #tpu.memory_space<vmem>>, vector<1x1x1x8x16xbf16>
      %64 = vector.shape_cast %63 : vector<1x1x1x8x16xbf16> to vector<8x16xbf16>
      %cst_60 = arith.constant dense<0.000000e+00> : vector<8x16xf32>
      %65 = tpu.matmul %64, %14, %cst_60 {dimension_numbers = #tpu.dot_dimension_numbers<[1], [0], [0], [1], [0, 0, 1, 1], [], []>} : vector<8x16xbf16>, vector<16x16xbf16>, vector<8x16xf32> -> vector<8x16xf32>
      %66 = arith.addf %59, %65 : vector<8x16xf32>
      %c1_i32_61 = arith.constant 1 : i32
      %67 = arith.addi %0, %c1_i32_61 : i32
      %68 = arith.addi %67, %arg6 : i32
      %c0_62 = arith.constant 0 : index
      %69 = arith.index_cast %68 : i32 to index
      %c1_63 = arith.constant 1 : index
      %c1_64 = arith.constant 1 : index
      %c0_65 = arith.constant 0 : index
      %70 = vector.load %arg2[%c0_62, %69, %c1_63, %c1_64, %c0_65] : memref<1x9x2x9x16xbf16, #tpu.memory_space<vmem>>, vector<1x1x1x8x16xbf16>
      %71 = vector.shape_cast %70 : vector<1x1x1x8x16xbf16> to vector<8x16xbf16>
      %cst_66 = arith.constant dense<0.000000e+00> : vector<8x16xf32>
      %72 = tpu.matmul %71, %16, %cst_66 {dimension_numbers = #tpu.dot_dimension_numbers<[1], [0], [0], [1], [0, 0, 1, 1], [], []>} : vector<8x16xbf16>, vector<16x16xbf16>, vector<8x16xf32> -> vector<8x16xf32>
      %73 = arith.addf %66, %72 : vector<8x16xf32>
      %74 = vector.broadcast %17 : vector<1x16xf32> to vector<8x16xf32>
      %75 = arith.addf %73, %74 : vector<8x16xf32>
      %cst_67 = arith.constant 2.000000e-01 : f32
      %76 = vector.broadcast %cst_67 : f32 to vector<8x16xf32>
      %77 = arith.mulf %76, %75 : vector<8x16xf32>
      %78 = arith.maximumf %75, %77 : vector<8x16xf32>
      %79 = arith.truncf %78 : vector<8x16xf32> to vector<8x16xbf16>
      %c0_68 = arith.constant 0 : index
      %80 = arith.index_cast %arg6 : i32 to index
      %c0_69 = arith.constant 0 : index
      %c0_70 = arith.constant 0 : index
      %81 = vector.load %arg5[%c0_68, %80, %c0_69, %c0_70] : memref<1x8x8x16xbf16, #tpu.memory_space<vmem>>, vector<1x1x8x16xbf16>
      %82 = vector.shape_cast %81 : vector<1x1x8x16xbf16> to vector<8x16xbf16>
      %83 = vector.shape_cast %79 : vector<8x16xbf16> to vector<1x1x8x16xbf16>
      tpu.vector_store %arg5[%c0_68, %80, %c0_69, %c0_70], %83 {strides = array<i32>} : memref<1x8x8x16xbf16, #tpu.memory_space<vmem>>, vector<1x1x8x16xbf16>,
    }
    %c8_i32_19 = arith.constant 8 : i32
    return
  }
  func.func @transform_0(%arg0: i32, %arg1: i32) -> (i32, i32, i32, i32, i32) {
    %c0_i32 = arith.constant 0 : i32
    %c0_i32_0 = arith.constant 0 : i32
    %c0_i32_1 = arith.constant 0 : i32
    %c0_i32_2 = arith.constant 0 : i32
    %c0_i32_3 = arith.constant 0 : i32
    return %arg0, %c0_i32, %c0_i32_0, %c0_i32_1, %c0_i32_2 : i32, i32, i32, i32, i32
  }
  func.func @transform_1(%arg0: i32, %arg1: i32) -> (i32, i32, i32) {
    %c0_i32 = arith.constant 0 : i32
    %c0_i32_0 = arith.constant 0 : i32
    %c0_i32_1 = arith.constant 0 : i32
    %c0_i32_2 = arith.constant 0 : i32
    return %c0_i32, %c0_i32_0, %c0_i32_1 : i32, i32, i32
  }
  func.func @transform_2(%arg0: i32, %arg1: i32) -> (i32, i32) {
    %c0_i32 = arith.constant 0 : i32
    %c0_i32_0 = arith.constant 0 : i32
    %c0_i32_1 = arith.constant 0 : i32
    return %c0_i32, %c0_i32_0 : i32, i32
  }
  func.func @transform_3(%arg0: i32, %arg1: i32) -> (i32, i32, i32, i32) {
    %c0_i32 = arith.constant 0 : i32
    %c0_i32_0 = arith.constant 0 : i32
    %c0_i32_1 = arith.constant 0 : i32
    return %arg0, %arg1, %c0_i32, %c0_i32_0 : i32, i32, i32, i32
  }
}

module attributes {stable_mosaic.version = 11 : i64} {
  func.func @_conv_kernel(%arg0: i32, %arg1: i32, %arg2: memref<1x6x1x6x32xbf16, #tpu.memory_space<vmem>>, %arg3: memref<16x32x64xbf16, #tpu.memory_space<vmem>>, %arg4: memref<1x64xf32, #tpu.memory_space<vmem>>, %arg5: memref<1x3x3x64xbf16, #tpu.memory_space<vmem>>) attributes {dimension_semantics = [#tpu.dimension_semantics<parallel>, #tpu.dimension_semantics<parallel>], iteration_bounds = array<i64: 2, 1>, scalar_prefetch = 0 : i64, scratch_operands = 0 : i64, tpu.core_type = #tpu.core_type<tc>, window_params = [{transform_indices = @transform_0, window_bounds = array<i64: 1, 6, 1, 6, 32>}, {pipeline_mode = #tpu.pipeline_mode<synchronous>, transform_indices = @transform_1, window_bounds = array<i64: 16, 32, 64>}, {pipeline_mode = #tpu.pipeline_mode<synchronous>, transform_indices = @transform_2, window_bounds = array<i64: 1, 64>}, {transform_indices = @transform_3, window_bounds = array<i64: 1, 3, 3, 64>}]} {
    %c3_i32 = arith.constant 3 : i32
    %0 = arith.muli %arg1, %c3_i32 : i32
    %c0 = arith.constant 0 : index
    %c0_0 = arith.constant 0 : index
    %c0_1 = arith.constant 0 : index
    %1 = vector.load %arg3[%c0, %c0_0, %c0_1] : memref<16x32x64xbf16, #tpu.memory_space<vmem>>, vector<1x32x64xbf16>
    %2 = vector.shape_cast %1 : vector<1x32x64xbf16> to vector<32x64xbf16>
    %c1 = arith.constant 1 : index
    %c0_2 = arith.constant 0 : index
    %c0_3 = arith.constant 0 : index
    %3 = vector.load %arg3[%c1, %c0_2, %c0_3] : memref<16x32x64xbf16, #tpu.memory_space<vmem>>, vector<1x32x64xbf16>
    %4 = vector.shape_cast %3 : vector<1x32x64xbf16> to vector<32x64xbf16>
    %c2 = arith.constant 2 : index
    %c0_4 = arith.constant 0 : index
    %c0_5 = arith.constant 0 : index
    %5 = vector.load %arg3[%c2, %c0_4, %c0_5] : memref<16x32x64xbf16, #tpu.memory_space<vmem>>, vector<1x32x64xbf16>
    %6 = vector.shape_cast %5 : vector<1x32x64xbf16> to vector<32x64xbf16>
    %c3 = arith.constant 3 : index
    %c0_6 = arith.constant 0 : index
    %c0_7 = arith.constant 0 : index
    %7 = vector.load %arg3[%c3, %c0_6, %c0_7] : memref<16x32x64xbf16, #tpu.memory_space<vmem>>, vector<1x32x64xbf16>
    %8 = vector.shape_cast %7 : vector<1x32x64xbf16> to vector<32x64xbf16>
    %c4 = arith.constant 4 : index
    %c0_8 = arith.constant 0 : index
    %c0_9 = arith.constant 0 : index
    %9 = vector.load %arg3[%c4, %c0_8, %c0_9] : memref<16x32x64xbf16, #tpu.memory_space<vmem>>, vector<1x32x64xbf16>
    %10 = vector.shape_cast %9 : vector<1x32x64xbf16> to vector<32x64xbf16>
    %c5 = arith.constant 5 : index
    %c0_10 = arith.constant 0 : index
    %c0_11 = arith.constant 0 : index
    %11 = vector.load %arg3[%c5, %c0_10, %c0_11] : memref<16x32x64xbf16, #tpu.memory_space<vmem>>, vector<1x32x64xbf16>
    %12 = vector.shape_cast %11 : vector<1x32x64xbf16> to vector<32x64xbf16>
    %c6 = arith.constant 6 : index
    %c0_12 = arith.constant 0 : index
    %c0_13 = arith.constant 0 : index
    %13 = vector.load %arg3[%c6, %c0_12, %c0_13] : memref<16x32x64xbf16, #tpu.memory_space<vmem>>, vector<1x32x64xbf16>
    %14 = vector.shape_cast %13 : vector<1x32x64xbf16> to vector<32x64xbf16>
    %c7 = arith.constant 7 : index
    %c0_14 = arith.constant 0 : index
    %c0_15 = arith.constant 0 : index
    %15 = vector.load %arg3[%c7, %c0_14, %c0_15] : memref<16x32x64xbf16, #tpu.memory_space<vmem>>, vector<1x32x64xbf16>
    %16 = vector.shape_cast %15 : vector<1x32x64xbf16> to vector<32x64xbf16>
    %c8 = arith.constant 8 : index
    %c0_16 = arith.constant 0 : index
    %c0_17 = arith.constant 0 : index
    %17 = vector.load %arg3[%c8, %c0_16, %c0_17] : memref<16x32x64xbf16, #tpu.memory_space<vmem>>, vector<1x32x64xbf16>
    %18 = vector.shape_cast %17 : vector<1x32x64xbf16> to vector<32x64xbf16>
    %c9 = arith.constant 9 : index
    %c0_18 = arith.constant 0 : index
    %c0_19 = arith.constant 0 : index
    %19 = vector.load %arg3[%c9, %c0_18, %c0_19] : memref<16x32x64xbf16, #tpu.memory_space<vmem>>, vector<1x32x64xbf16>
    %20 = vector.shape_cast %19 : vector<1x32x64xbf16> to vector<32x64xbf16>
    %c10 = arith.constant 10 : index
    %c0_20 = arith.constant 0 : index
    %c0_21 = arith.constant 0 : index
    %21 = vector.load %arg3[%c10, %c0_20, %c0_21] : memref<16x32x64xbf16, #tpu.memory_space<vmem>>, vector<1x32x64xbf16>
    %22 = vector.shape_cast %21 : vector<1x32x64xbf16> to vector<32x64xbf16>
    %c11 = arith.constant 11 : index
    %c0_22 = arith.constant 0 : index
    %c0_23 = arith.constant 0 : index
    %23 = vector.load %arg3[%c11, %c0_22, %c0_23] : memref<16x32x64xbf16, #tpu.memory_space<vmem>>, vector<1x32x64xbf16>
    %24 = vector.shape_cast %23 : vector<1x32x64xbf16> to vector<32x64xbf16>
    %c12 = arith.constant 12 : index
    %c0_24 = arith.constant 0 : index
    %c0_25 = arith.constant 0 : index
    %25 = vector.load %arg3[%c12, %c0_24, %c0_25] : memref<16x32x64xbf16, #tpu.memory_space<vmem>>, vector<1x32x64xbf16>
    %26 = vector.shape_cast %25 : vector<1x32x64xbf16> to vector<32x64xbf16>
    %c13 = arith.constant 13 : index
    %c0_26 = arith.constant 0 : index
    %c0_27 = arith.constant 0 : index
    %27 = vector.load %arg3[%c13, %c0_26, %c0_27] : memref<16x32x64xbf16, #tpu.memory_space<vmem>>, vector<1x32x64xbf16>
    %28 = vector.shape_cast %27 : vector<1x32x64xbf16> to vector<32x64xbf16>
    %c14 = arith.constant 14 : index
    %c0_28 = arith.constant 0 : index
    %c0_29 = arith.constant 0 : index
    %29 = vector.load %arg3[%c14, %c0_28, %c0_29] : memref<16x32x64xbf16, #tpu.memory_space<vmem>>, vector<1x32x64xbf16>
    %30 = vector.shape_cast %29 : vector<1x32x64xbf16> to vector<32x64xbf16>
    %c15 = arith.constant 15 : index
    %c0_30 = arith.constant 0 : index
    %c0_31 = arith.constant 0 : index
    %31 = vector.load %arg3[%c15, %c0_30, %c0_31] : memref<16x32x64xbf16, #tpu.memory_space<vmem>>, vector<1x32x64xbf16>
    %32 = vector.shape_cast %31 : vector<1x32x64xbf16> to vector<32x64xbf16>
    %c0_32 = arith.constant 0 : index
    %c0_33 = arith.constant 0 : index
    %33 = vector.load %arg4[%c0_32, %c0_33] : memref<1x64xf32, #tpu.memory_space<vmem>>, vector<1x64xf32>
    %c0_i32 = arith.constant 0 : i32
    %c3_i32_34 = arith.constant 3 : i32
    %34 = arith.addi %c0_i32, %c3_i32_34 : i32
    %c1_i32 = arith.constant 1 : i32
    scf.for %arg6 = %c0_i32 to %34 step %c1_i32  : i32 {
      %c0_i32_36 = arith.constant 0 : i32
      %35 = arith.addi %0, %c0_i32_36 : i32
      %36 = arith.addi %35, %arg6 : i32
      %c0_37 = arith.constant 0 : index
      %37 = arith.index_cast %36 : i32 to index
      %c0_38 = arith.constant 0 : index
      %c0_39 = arith.constant 0 : index
      %c0_40 = arith.constant 0 : index
      %38 = vector.load %arg2[%c0_37, %37, %c0_38, %c0_39, %c0_40] : memref<1x6x1x6x32xbf16, #tpu.memory_space<vmem>>, vector<1x1x1x3x32xbf16>
      %39 = vector.shape_cast %38 : vector<1x1x1x3x32xbf16> to vector<3x32xbf16>
      %cst = arith.constant dense<0.000000e+00> : vector<3x64xf32>
      %40 = tpu.matmul %39, %2, %cst {dimension_numbers = #tpu.dot_dimension_numbers<[1], [0], [0], [1], [0, 0, 1, 1], [], []>} : vector<3x32xbf16>, vector<32x64xbf16>, vector<3x64xf32> -> vector<3x64xf32>
      %c0_i32_41 = arith.constant 0 : i32
      %41 = arith.addi %0, %c0_i32_41 : i32
      %42 = arith.addi %41, %arg6 : i32
      %c0_42 = arith.constant 0 : index
      %43 = arith.index_cast %42 : i32 to index
      %c0_43 = arith.constant 0 : index
      %c1_44 = arith.constant 1 : index
      %c0_45 = arith.constant 0 : index
      %44 = vector.load %arg2[%c0_42, %43, %c0_43, %c1_44, %c0_45] : memref<1x6x1x6x32xbf16, #tpu.memory_space<vmem>>, vector<1x1x1x3x32xbf16>
      %45 = vector.shape_cast %44 : vector<1x1x1x3x32xbf16> to vector<3x32xbf16>
      %cst_46 = arith.constant dense<0.000000e+00> : vector<3x64xf32>
      %46 = tpu.matmul %45, %4, %cst_46 {dimension_numbers = #tpu.dot_dimension_numbers<[1], [0], [0], [1], [0, 0, 1, 1], [], []>} : vector<3x32xbf16>, vector<32x64xbf16>, vector<3x64xf32> -> vector<3x64xf32>
      %47 = arith.addf %40, %46 : vector<3x64xf32>
      %c0_i32_47 = arith.constant 0 : i32
      %48 = arith.addi %0, %c0_i32_47 : i32
      %49 = arith.addi %48, %arg6 : i32
      %c0_48 = arith.constant 0 : index
      %50 = arith.index_cast %49 : i32 to index
      %c0_49 = arith.constant 0 : index
      %c2_50 = arith.constant 2 : index
      %c0_51 = arith.constant 0 : index
      %51 = vector.load %arg2[%c0_48, %50, %c0_49, %c2_50, %c0_51] : memref<1x6x1x6x32xbf16, #tpu.memory_space<vmem>>, vector<1x1x1x3x32xbf16>
      %52 = vector.shape_cast %51 : vector<1x1x1x3x32xbf16> to vector<3x32xbf16>
      %cst_52 = arith.constant dense<0.000000e+00> : vector<3x64xf32>
      %53 = tpu.matmul %52, %6, %cst_52 {dimension_numbers = #tpu.dot_dimension_numbers<[1], [0], [0], [1], [0, 0, 1, 1], [], []>} : vector<3x32xbf16>, vector<32x64xbf16>, vector<3x64xf32> -> vector<3x64xf32>
      %54 = arith.addf %47, %53 : vector<3x64xf32>
      %c0_i32_53 = arith.constant 0 : i32
      %55 = arith.addi %0, %c0_i32_53 : i32
      %56 = arith.addi %55, %arg6 : i32
      %c0_54 = arith.constant 0 : index
      %57 = arith.index_cast %56 : i32 to index
      %c0_55 = arith.constant 0 : index
      %c3_56 = arith.constant 3 : index
      %c0_57 = arith.constant 0 : index
      %58 = vector.load %arg2[%c0_54, %57, %c0_55, %c3_56, %c0_57] : memref<1x6x1x6x32xbf16, #tpu.memory_space<vmem>>, vector<1x1x1x3x32xbf16>
      %59 = vector.shape_cast %58 : vector<1x1x1x3x32xbf16> to vector<3x32xbf16>
      %cst_58 = arith.constant dense<0.000000e+00> : vector<3x64xf32>
      %60 = tpu.matmul %59, %8, %cst_58 {dimension_numbers = #tpu.dot_dimension_numbers<[1], [0], [0], [1], [0, 0, 1, 1], [], []>} : vector<3x32xbf16>, vector<32x64xbf16>, vector<3x64xf32> -> vector<3x64xf32>
      %61 = arith.addf %54, %60 : vector<3x64xf32>
      %c1_i32_59 = arith.constant 1 : i32
      %62 = arith.addi %0, %c1_i32_59 : i32
      %63 = arith.addi %62, %arg6 : i32
      %c0_60 = arith.constant 0 : index
      %64 = arith.index_cast %63 : i32 to index
      %c0_61 = arith.constant 0 : index
      %c0_62 = arith.constant 0 : index
      %c0_63 = arith.constant 0 : index
      %65 = vector.load %arg2[%c0_60, %64, %c0_61, %c0_62, %c0_63] : memref<1x6x1x6x32xbf16, #tpu.memory_space<vmem>>, vector<1x1x1x3x32xbf16>
      %66 = vector.shape_cast %65 : vector<1x1x1x3x32xbf16> to vector<3x32xbf16>
      %cst_64 = arith.constant dense<0.000000e+00> : vector<3x64xf32>
      %67 = tpu.matmul %66, %10, %cst_64 {dimension_numbers = #tpu.dot_dimension_numbers<[1], [0], [0], [1], [0, 0, 1, 1], [], []>} : vector<3x32xbf16>, vector<32x64xbf16>, vector<3x64xf32> -> vector<3x64xf32>
      %68 = arith.addf %61, %67 : vector<3x64xf32>
      %c1_i32_65 = arith.constant 1 : i32
      %69 = arith.addi %0, %c1_i32_65 : i32
      %70 = arith.addi %69, %arg6 : i32
      %c0_66 = arith.constant 0 : index
      %71 = arith.index_cast %70 : i32 to index
      %c0_67 = arith.constant 0 : index
      %c1_68 = arith.constant 1 : index
      %c0_69 = arith.constant 0 : index
      %72 = vector.load %arg2[%c0_66, %71, %c0_67, %c1_68, %c0_69] : memref<1x6x1x6x32xbf16, #tpu.memory_space<vmem>>, vector<1x1x1x3x32xbf16>
      %73 = vector.shape_cast %72 : vector<1x1x1x3x32xbf16> to vector<3x32xbf16>
      %cst_70 = arith.constant dense<0.000000e+00> : vector<3x64xf32>
      %74 = tpu.matmul %73, %12, %cst_70 {dimension_numbers = #tpu.dot_dimension_numbers<[1], [0], [0], [1], [0, 0, 1, 1], [], []>} : vector<3x32xbf16>, vector<32x64xbf16>, vector<3x64xf32> -> vector<3x64xf32>
      %75 = arith.addf %68, %74 : vector<3x64xf32>
      %c1_i32_71 = arith.constant 1 : i32
      %76 = arith.addi %0, %c1_i32_71 : i32
      %77 = arith.addi %76, %arg6 : i32
      %c0_72 = arith.constant 0 : index
      %78 = arith.index_cast %77 : i32 to index
      %c0_73 = arith.constant 0 : index
      %c2_74 = arith.constant 2 : index
      %c0_75 = arith.constant 0 : index
      %79 = vector.load %arg2[%c0_72, %78, %c0_73, %c2_74, %c0_75] : memref<1x6x1x6x32xbf16, #tpu.memory_space<vmem>>, vector<1x1x1x3x32xbf16>
      %80 = vector.shape_cast %79 : vector<1x1x1x3x32xbf16> to vector<3x32xbf16>
      %cst_76 = arith.constant dense<0.000000e+00> : vector<3x64xf32>
      %81 = tpu.matmul %80, %14, %cst_76 {dimension_numbers = #tpu.dot_dimension_numbers<[1], [0], [0], [1], [0, 0, 1, 1], [], []>} : vector<3x32xbf16>, vector<32x64xbf16>, vector<3x64xf32> -> vector<3x64xf32>
      %82 = arith.addf %75, %81 : vector<3x64xf32>
      %c1_i32_77 = arith.constant 1 : i32
      %83 = arith.addi %0, %c1_i32_77 : i32
      %84 = arith.addi %83, %arg6 : i32
      %c0_78 = arith.constant 0 : index
      %85 = arith.index_cast %84 : i32 to index
      %c0_79 = arith.constant 0 : index
      %c3_80 = arith.constant 3 : index
      %c0_81 = arith.constant 0 : index
      %86 = vector.load %arg2[%c0_78, %85, %c0_79, %c3_80, %c0_81] : memref<1x6x1x6x32xbf16, #tpu.memory_space<vmem>>, vector<1x1x1x3x32xbf16>
      %87 = vector.shape_cast %86 : vector<1x1x1x3x32xbf16> to vector<3x32xbf16>
      %cst_82 = arith.constant dense<0.000000e+00> : vector<3x64xf32>
      %88 = tpu.matmul %87, %16, %cst_82 {dimension_numbers = #tpu.dot_dimension_numbers<[1], [0], [0], [1], [0, 0, 1, 1], [], []>} : vector<3x32xbf16>, vector<32x64xbf16>, vector<3x64xf32> -> vector<3x64xf32>
      %89 = arith.addf %82, %88 : vector<3x64xf32>
      %c2_i32 = arith.constant 2 : i32
      %90 = arith.addi %0, %c2_i32 : i32
      %91 = arith.addi %90, %arg6 : i32
      %c0_83 = arith.constant 0 : index
      %92 = arith.index_cast %91 : i32 to index
      %c0_84 = arith.constant 0 : index
      %c0_85 = arith.constant 0 : index
      %c0_86 = arith.constant 0 : index
      %93 = vector.load %arg2[%c0_83, %92, %c0_84, %c0_85, %c0_86] : memref<1x6x1x6x32xbf16, #tpu.memory_space<vmem>>, vector<1x1x1x3x32xbf16>
      %94 = vector.shape_cast %93 : vector<1x1x1x3x32xbf16> to vector<3x32xbf16>
      %cst_87 = arith.constant dense<0.000000e+00> : vector<3x64xf32>
      %95 = tpu.matmul %94, %18, %cst_87 {dimension_numbers = #tpu.dot_dimension_numbers<[1], [0], [0], [1], [0, 0, 1, 1], [], []>} : vector<3x32xbf16>, vector<32x64xbf16>, vector<3x64xf32> -> vector<3x64xf32>
      %96 = arith.addf %89, %95 : vector<3x64xf32>
      %c2_i32_88 = arith.constant 2 : i32
      %97 = arith.addi %0, %c2_i32_88 : i32
      %98 = arith.addi %97, %arg6 : i32
      %c0_89 = arith.constant 0 : index
      %99 = arith.index_cast %98 : i32 to index
      %c0_90 = arith.constant 0 : index
      %c1_91 = arith.constant 1 : index
      %c0_92 = arith.constant 0 : index
      %100 = vector.load %arg2[%c0_89, %99, %c0_90, %c1_91, %c0_92] : memref<1x6x1x6x32xbf16, #tpu.memory_space<vmem>>, vector<1x1x1x3x32xbf16>
      %101 = vector.shape_cast %100 : vector<1x1x1x3x32xbf16> to vector<3x32xbf16>
      %cst_93 = arith.constant dense<0.000000e+00> : vector<3x64xf32>
      %102 = tpu.matmul %101, %20, %cst_93 {dimension_numbers = #tpu.dot_dimension_numbers<[1], [0], [0], [1], [0, 0, 1, 1], [], []>} : vector<3x32xbf16>, vector<32x64xbf16>, vector<3x64xf32> -> vector<3x64xf32>
      %103 = arith.addf %96, %102 : vector<3x64xf32>
      %c2_i32_94 = arith.constant 2 : i32
      %104 = arith.addi %0, %c2_i32_94 : i32
      %105 = arith.addi %104, %arg6 : i32
      %c0_95 = arith.constant 0 : index
      %106 = arith.index_cast %105 : i32 to index
      %c0_96 = arith.constant 0 : index
      %c2_97 = arith.constant 2 : index
      %c0_98 = arith.constant 0 : index
      %107 = vector.load %arg2[%c0_95, %106, %c0_96, %c2_97, %c0_98] : memref<1x6x1x6x32xbf16, #tpu.memory_space<vmem>>, vector<1x1x1x3x32xbf16>
      %108 = vector.shape_cast %107 : vector<1x1x1x3x32xbf16> to vector<3x32xbf16>
      %cst_99 = arith.constant dense<0.000000e+00> : vector<3x64xf32>
      %109 = tpu.matmul %108, %22, %cst_99 {dimension_numbers = #tpu.dot_dimension_numbers<[1], [0], [0], [1], [0, 0, 1, 1], [], []>} : vector<3x32xbf16>, vector<32x64xbf16>, vector<3x64xf32> -> vector<3x64xf32>
      %110 = arith.addf %103, %109 : vector<3x64xf32>
      %c2_i32_100 = arith.constant 2 : i32
      %111 = arith.addi %0, %c2_i32_100 : i32
      %112 = arith.addi %111, %arg6 : i32
      %c0_101 = arith.constant 0 : index
      %113 = arith.index_cast %112 : i32 to index
      %c0_102 = arith.constant 0 : index
      %c3_103 = arith.constant 3 : index
      %c0_104 = arith.constant 0 : index
      %114 = vector.load %arg2[%c0_101, %113, %c0_102, %c3_103, %c0_104] : memref<1x6x1x6x32xbf16, #tpu.memory_space<vmem>>, vector<1x1x1x3x32xbf16>
      %115 = vector.shape_cast %114 : vector<1x1x1x3x32xbf16> to vector<3x32xbf16>
      %cst_105 = arith.constant dense<0.000000e+00> : vector<3x64xf32>
      %116 = tpu.matmul %115, %24, %cst_105 {dimension_numbers = #tpu.dot_dimension_numbers<[1], [0], [0], [1], [0, 0, 1, 1], [], []>} : vector<3x32xbf16>, vector<32x64xbf16>, vector<3x64xf32> -> vector<3x64xf32>
      %117 = arith.addf %110, %116 : vector<3x64xf32>
      %c3_i32_106 = arith.constant 3 : i32
      %118 = arith.addi %0, %c3_i32_106 : i32
      %119 = arith.addi %118, %arg6 : i32
      %c0_107 = arith.constant 0 : index
      %120 = arith.index_cast %119 : i32 to index
      %c0_108 = arith.constant 0 : index
      %c0_109 = arith.constant 0 : index
      %c0_110 = arith.constant 0 : index
      %121 = vector.load %arg2[%c0_107, %120, %c0_108, %c0_109, %c0_110] : memref<1x6x1x6x32xbf16, #tpu.memory_space<vmem>>, vector<1x1x1x3x32xbf16>
      %122 = vector.shape_cast %121 : vector<1x1x1x3x32xbf16> to vector<3x32xbf16>
      %cst_111 = arith.constant dense<0.000000e+00> : vector<3x64xf32>
      %123 = tpu.matmul %122, %26, %cst_111 {dimension_numbers = #tpu.dot_dimension_numbers<[1], [0], [0], [1], [0, 0, 1, 1], [], []>} : vector<3x32xbf16>, vector<32x64xbf16>, vector<3x64xf32> -> vector<3x64xf32>
      %124 = arith.addf %117, %123 : vector<3x64xf32>
      %c3_i32_112 = arith.constant 3 : i32
      %125 = arith.addi %0, %c3_i32_112 : i32
      %126 = arith.addi %125, %arg6 : i32
      %c0_113 = arith.constant 0 : index
      %127 = arith.index_cast %126 : i32 to index
      %c0_114 = arith.constant 0 : index
      %c1_115 = arith.constant 1 : index
      %c0_116 = arith.constant 0 : index
      %128 = vector.load %arg2[%c0_113, %127, %c0_114, %c1_115, %c0_116] : memref<1x6x1x6x32xbf16, #tpu.memory_space<vmem>>, vector<1x1x1x3x32xbf16>
      %129 = vector.shape_cast %128 : vector<1x1x1x3x32xbf16> to vector<3x32xbf16>
      %cst_117 = arith.constant dense<0.000000e+00> : vector<3x64xf32>
      %130 = tpu.matmul %129, %28, %cst_117 {dimension_numbers = #tpu.dot_dimension_numbers<[1], [0], [0], [1], [0, 0, 1, 1], [], []>} : vector<3x32xbf16>, vector<32x64xbf16>, vector<3x64xf32> -> vector<3x64xf32>
      %131 = arith.addf %124, %130 : vector<3x64xf32>
      %c3_i32_118 = arith.constant 3 : i32
      %132 = arith.addi %0, %c3_i32_118 : i32
      %133 = arith.addi %132, %arg6 : i32
      %c0_119 = arith.constant 0 : index
      %134 = arith.index_cast %133 : i32 to index
      %c0_120 = arith.constant 0 : index
      %c2_121 = arith.constant 2 : index
      %c0_122 = arith.constant 0 : index
      %135 = vector.load %arg2[%c0_119, %134, %c0_120, %c2_121, %c0_122] : memref<1x6x1x6x32xbf16, #tpu.memory_space<vmem>>, vector<1x1x1x3x32xbf16>
      %136 = vector.shape_cast %135 : vector<1x1x1x3x32xbf16> to vector<3x32xbf16>
      %cst_123 = arith.constant dense<0.000000e+00> : vector<3x64xf32>
      %137 = tpu.matmul %136, %30, %cst_123 {dimension_numbers = #tpu.dot_dimension_numbers<[1], [0], [0], [1], [0, 0, 1, 1], [], []>} : vector<3x32xbf16>, vector<32x64xbf16>, vector<3x64xf32> -> vector<3x64xf32>
      %138 = arith.addf %131, %137 : vector<3x64xf32>
      %c3_i32_124 = arith.constant 3 : i32
      %139 = arith.addi %0, %c3_i32_124 : i32
      %140 = arith.addi %139, %arg6 : i32
      %c0_125 = arith.constant 0 : index
      %141 = arith.index_cast %140 : i32 to index
      %c0_126 = arith.constant 0 : index
      %c3_127 = arith.constant 3 : index
      %c0_128 = arith.constant 0 : index
      %142 = vector.load %arg2[%c0_125, %141, %c0_126, %c3_127, %c0_128] : memref<1x6x1x6x32xbf16, #tpu.memory_space<vmem>>, vector<1x1x1x3x32xbf16>
      %143 = vector.shape_cast %142 : vector<1x1x1x3x32xbf16> to vector<3x32xbf16>
      %cst_129 = arith.constant dense<0.000000e+00> : vector<3x64xf32>
      %144 = tpu.matmul %143, %32, %cst_129 {dimension_numbers = #tpu.dot_dimension_numbers<[1], [0], [0], [1], [0, 0, 1, 1], [], []>} : vector<3x32xbf16>, vector<32x64xbf16>, vector<3x64xf32> -> vector<3x64xf32>
      %145 = arith.addf %138, %144 : vector<3x64xf32>
      %146 = vector.broadcast %33 : vector<1x64xf32> to vector<3x64xf32>
      %147 = arith.addf %145, %146 : vector<3x64xf32>
      %cst_130 = arith.constant 2.000000e-01 : f32
      %148 = vector.broadcast %cst_130 : f32 to vector<3x64xf32>
      %149 = arith.mulf %148, %147 : vector<3x64xf32>
      %150 = arith.maximumf %147, %149 : vector<3x64xf32>
      %151 = arith.truncf %150 : vector<3x64xf32> to vector<3x64xbf16>
      %c0_131 = arith.constant 0 : index
      %152 = arith.index_cast %arg6 : i32 to index
      %c0_132 = arith.constant 0 : index
      %c0_133 = arith.constant 0 : index
      %153 = vector.load %arg5[%c0_131, %152, %c0_132, %c0_133] : memref<1x3x3x64xbf16, #tpu.memory_space<vmem>>, vector<1x1x3x64xbf16>
      %154 = vector.shape_cast %153 : vector<1x1x3x64xbf16> to vector<3x64xbf16>
      %155 = vector.shape_cast %151 : vector<3x64xbf16> to vector<1x1x3x64xbf16>
      tpu.vector_store %arg5[%c0_131, %152, %c0_132, %c0_133], %155 {strides = array<i32>} : memref<1x3x3x64xbf16, #tpu.memory_space<vmem>>, vector<1x1x3x64xbf16>,
    }
    %c3_i32_35 = arith.constant 3 : i32
    return
  }
  func.func @transform_0(%arg0: i32, %arg1: i32) -> (i32, i32, i32, i32, i32) {
    %c0_i32 = arith.constant 0 : i32
    %c0_i32_0 = arith.constant 0 : i32
    %c0_i32_1 = arith.constant 0 : i32
    %c0_i32_2 = arith.constant 0 : i32
    %c0_i32_3 = arith.constant 0 : i32
    return %arg0, %c0_i32, %c0_i32_0, %c0_i32_1, %c0_i32_2 : i32, i32, i32, i32, i32
  }
  func.func @transform_1(%arg0: i32, %arg1: i32) -> (i32, i32, i32) {
    %c0_i32 = arith.constant 0 : i32
    %c0_i32_0 = arith.constant 0 : i32
    %c0_i32_1 = arith.constant 0 : i32
    %c0_i32_2 = arith.constant 0 : i32
    return %c0_i32, %c0_i32_0, %c0_i32_1 : i32, i32, i32
  }
  func.func @transform_2(%arg0: i32, %arg1: i32) -> (i32, i32) {
    %c0_i32 = arith.constant 0 : i32
    %c0_i32_0 = arith.constant 0 : i32
    %c0_i32_1 = arith.constant 0 : i32
    return %c0_i32, %c0_i32_0 : i32, i32
  }
  func.func @transform_3(%arg0: i32, %arg1: i32) -> (i32, i32, i32, i32) {
    %c0_i32 = arith.constant 0 : i32
    %c0_i32_0 = arith.constant 0 : i32
    %c0_i32_1 = arith.constant 0 : i32
    return %arg0, %arg1, %c0_i32, %c0_i32_0 : i32, i32, i32, i32
  }
}

module attributes {stable_mosaic.version = 11 : i64} {
  func.func @_conv_kernel(%arg0: i32, %arg1: i32, %arg2: memref<1x5x2x5x32xbf16, #tpu.memory_space<vmem>>, %arg3: memref<8x32x32xbf16, #tpu.memory_space<vmem>>, %arg4: memref<1x32xf32, #tpu.memory_space<vmem>>, %arg5: memref<1x4x4x32xbf16, #tpu.memory_space<vmem>>) attributes {dimension_semantics = [#tpu.dimension_semantics<parallel>, #tpu.dimension_semantics<parallel>], iteration_bounds = array<i64: 2, 1>, scalar_prefetch = 0 : i64, scratch_operands = 0 : i64, tpu.core_type = #tpu.core_type<tc>, window_params = [{transform_indices = @transform_0, window_bounds = array<i64: 1, 5, 2, 5, 32>}, {pipeline_mode = #tpu.pipeline_mode<synchronous>, transform_indices = @transform_1, window_bounds = array<i64: 8, 32, 32>}, {pipeline_mode = #tpu.pipeline_mode<synchronous>, transform_indices = @transform_2, window_bounds = array<i64: 1, 32>}, {transform_indices = @transform_3, window_bounds = array<i64: 1, 4, 4, 32>}]} {
    %c4_i32 = arith.constant 4 : i32
    %0 = arith.muli %arg1, %c4_i32 : i32
    %c0 = arith.constant 0 : index
    %c0_0 = arith.constant 0 : index
    %c0_1 = arith.constant 0 : index
    %1 = vector.load %arg3[%c0, %c0_0, %c0_1] : memref<8x32x32xbf16, #tpu.memory_space<vmem>>, vector<1x32x32xbf16>
    %2 = vector.shape_cast %1 : vector<1x32x32xbf16> to vector<32x32xbf16>
    %c1 = arith.constant 1 : index
    %c0_2 = arith.constant 0 : index
    %c0_3 = arith.constant 0 : index
    %3 = vector.load %arg3[%c1, %c0_2, %c0_3] : memref<8x32x32xbf16, #tpu.memory_space<vmem>>, vector<1x32x32xbf16>
    %4 = vector.shape_cast %3 : vector<1x32x32xbf16> to vector<32x32xbf16>
    %c2 = arith.constant 2 : index
    %c0_4 = arith.constant 0 : index
    %c0_5 = arith.constant 0 : index
    %5 = vector.load %arg3[%c2, %c0_4, %c0_5] : memref<8x32x32xbf16, #tpu.memory_space<vmem>>, vector<1x32x32xbf16>
    %6 = vector.shape_cast %5 : vector<1x32x32xbf16> to vector<32x32xbf16>
    %c3 = arith.constant 3 : index
    %c0_6 = arith.constant 0 : index
    %c0_7 = arith.constant 0 : index
    %7 = vector.load %arg3[%c3, %c0_6, %c0_7] : memref<8x32x32xbf16, #tpu.memory_space<vmem>>, vector<1x32x32xbf16>
    %8 = vector.shape_cast %7 : vector<1x32x32xbf16> to vector<32x32xbf16>
    %c4 = arith.constant 4 : index
    %c0_8 = arith.constant 0 : index
    %c0_9 = arith.constant 0 : index
    %9 = vector.load %arg3[%c4, %c0_8, %c0_9] : memref<8x32x32xbf16, #tpu.memory_space<vmem>>, vector<1x32x32xbf16>
    %10 = vector.shape_cast %9 : vector<1x32x32xbf16> to vector<32x32xbf16>
    %c5 = arith.constant 5 : index
    %c0_10 = arith.constant 0 : index
    %c0_11 = arith.constant 0 : index
    %11 = vector.load %arg3[%c5, %c0_10, %c0_11] : memref<8x32x32xbf16, #tpu.memory_space<vmem>>, vector<1x32x32xbf16>
    %12 = vector.shape_cast %11 : vector<1x32x32xbf16> to vector<32x32xbf16>
    %c6 = arith.constant 6 : index
    %c0_12 = arith.constant 0 : index
    %c0_13 = arith.constant 0 : index
    %13 = vector.load %arg3[%c6, %c0_12, %c0_13] : memref<8x32x32xbf16, #tpu.memory_space<vmem>>, vector<1x32x32xbf16>
    %14 = vector.shape_cast %13 : vector<1x32x32xbf16> to vector<32x32xbf16>
    %c7 = arith.constant 7 : index
    %c0_14 = arith.constant 0 : index
    %c0_15 = arith.constant 0 : index
    %15 = vector.load %arg3[%c7, %c0_14, %c0_15] : memref<8x32x32xbf16, #tpu.memory_space<vmem>>, vector<1x32x32xbf16>
    %16 = vector.shape_cast %15 : vector<1x32x32xbf16> to vector<32x32xbf16>
    %c0_16 = arith.constant 0 : index
    %c0_17 = arith.constant 0 : index
    %17 = vector.load %arg4[%c0_16, %c0_17] : memref<1x32xf32, #tpu.memory_space<vmem>>, vector<1x32xf32>
    %c0_i32 = arith.constant 0 : i32
    %c4_i32_18 = arith.constant 4 : i32
    %18 = arith.addi %c0_i32, %c4_i32_18 : i32
    %c1_i32 = arith.constant 1 : i32
    scf.for %arg6 = %c0_i32 to %18 step %c1_i32  : i32 {
      %c0_i32_20 = arith.constant 0 : i32
      %19 = arith.addi %0, %c0_i32_20 : i32
      %20 = arith.addi %19, %arg6 : i32
      %c0_21 = arith.constant 0 : index
      %21 = arith.index_cast %20 : i32 to index
      %c0_22 = arith.constant 0 : index
      %c0_23 = arith.constant 0 : index
      %c0_24 = arith.constant 0 : index
      %22 = vector.load %arg2[%c0_21, %21, %c0_22, %c0_23, %c0_24] : memref<1x5x2x5x32xbf16, #tpu.memory_space<vmem>>, vector<1x1x1x4x32xbf16>
      %23 = vector.shape_cast %22 : vector<1x1x1x4x32xbf16> to vector<4x32xbf16>
      %cst = arith.constant dense<0.000000e+00> : vector<4x32xf32>
      %24 = tpu.matmul %23, %2, %cst {dimension_numbers = #tpu.dot_dimension_numbers<[1], [0], [0], [1], [0, 0, 1, 1], [], []>} : vector<4x32xbf16>, vector<32x32xbf16>, vector<4x32xf32> -> vector<4x32xf32>
      %c0_i32_25 = arith.constant 0 : i32
      %25 = arith.addi %0, %c0_i32_25 : i32
      %26 = arith.addi %25, %arg6 : i32
      %c0_26 = arith.constant 0 : index
      %27 = arith.index_cast %26 : i32 to index
      %c0_27 = arith.constant 0 : index
      %c1_28 = arith.constant 1 : index
      %c0_29 = arith.constant 0 : index
      %28 = vector.load %arg2[%c0_26, %27, %c0_27, %c1_28, %c0_29] : memref<1x5x2x5x32xbf16, #tpu.memory_space<vmem>>, vector<1x1x1x4x32xbf16>
      %29 = vector.shape_cast %28 : vector<1x1x1x4x32xbf16> to vector<4x32xbf16>
      %cst_30 = arith.constant dense<0.000000e+00> : vector<4x32xf32>
      %30 = tpu.matmul %29, %4, %cst_30 {dimension_numbers = #tpu.dot_dimension_numbers<[1], [0], [0], [1], [0, 0, 1, 1], [], []>} : vector<4x32xbf16>, vector<32x32xbf16>, vector<4x32xf32> -> vector<4x32xf32>
      %31 = arith.addf %24, %30 : vector<4x32xf32>
      %c0_i32_31 = arith.constant 0 : i32
      %32 = arith.addi %0, %c0_i32_31 : i32
      %33 = arith.addi %32, %arg6 : i32
      %c0_32 = arith.constant 0 : index
      %34 = arith.index_cast %33 : i32 to index
      %c1_33 = arith.constant 1 : index
      %c0_34 = arith.constant 0 : index
      %c0_35 = arith.constant 0 : index
      %35 = vector.load %arg2[%c0_32, %34, %c1_33, %c0_34, %c0_35] : memref<1x5x2x5x32xbf16, #tpu.memory_space<vmem>>, vector<1x1x1x4x32xbf16>
      %36 = vector.shape_cast %35 : vector<1x1x1x4x32xbf16> to vector<4x32xbf16>
      %cst_36 = arith.constant dense<0.000000e+00> : vector<4x32xf32>
      %37 = tpu.matmul %36, %6, %cst_36 {dimension_numbers = #tpu.dot_dimension_numbers<[1], [0], [0], [1], [0, 0, 1, 1], [], []>} : vector<4x32xbf16>, vector<32x32xbf16>, vector<4x32xf32> -> vector<4x32xf32>
      %38 = arith.addf %31, %37 : vector<4x32xf32>
      %c0_i32_37 = arith.constant 0 : i32
      %39 = arith.addi %0, %c0_i32_37 : i32
      %40 = arith.addi %39, %arg6 : i32
      %c0_38 = arith.constant 0 : index
      %41 = arith.index_cast %40 : i32 to index
      %c1_39 = arith.constant 1 : index
      %c1_40 = arith.constant 1 : index
      %c0_41 = arith.constant 0 : index
      %42 = vector.load %arg2[%c0_38, %41, %c1_39, %c1_40, %c0_41] : memref<1x5x2x5x32xbf16, #tpu.memory_space<vmem>>, vector<1x1x1x4x32xbf16>
      %43 = vector.shape_cast %42 : vector<1x1x1x4x32xbf16> to vector<4x32xbf16>
      %cst_42 = arith.constant dense<0.000000e+00> : vector<4x32xf32>
      %44 = tpu.matmul %43, %8, %cst_42 {dimension_numbers = #tpu.dot_dimension_numbers<[1], [0], [0], [1], [0, 0, 1, 1], [], []>} : vector<4x32xbf16>, vector<32x32xbf16>, vector<4x32xf32> -> vector<4x32xf32>
      %45 = arith.addf %38, %44 : vector<4x32xf32>
      %c1_i32_43 = arith.constant 1 : i32
      %46 = arith.addi %0, %c1_i32_43 : i32
      %47 = arith.addi %46, %arg6 : i32
      %c0_44 = arith.constant 0 : index
      %48 = arith.index_cast %47 : i32 to index
      %c0_45 = arith.constant 0 : index
      %c0_46 = arith.constant 0 : index
      %c0_47 = arith.constant 0 : index
      %49 = vector.load %arg2[%c0_44, %48, %c0_45, %c0_46, %c0_47] : memref<1x5x2x5x32xbf16, #tpu.memory_space<vmem>>, vector<1x1x1x4x32xbf16>
      %50 = vector.shape_cast %49 : vector<1x1x1x4x32xbf16> to vector<4x32xbf16>
      %cst_48 = arith.constant dense<0.000000e+00> : vector<4x32xf32>
      %51 = tpu.matmul %50, %10, %cst_48 {dimension_numbers = #tpu.dot_dimension_numbers<[1], [0], [0], [1], [0, 0, 1, 1], [], []>} : vector<4x32xbf16>, vector<32x32xbf16>, vector<4x32xf32> -> vector<4x32xf32>
      %52 = arith.addf %45, %51 : vector<4x32xf32>
      %c1_i32_49 = arith.constant 1 : i32
      %53 = arith.addi %0, %c1_i32_49 : i32
      %54 = arith.addi %53, %arg6 : i32
      %c0_50 = arith.constant 0 : index
      %55 = arith.index_cast %54 : i32 to index
      %c0_51 = arith.constant 0 : index
      %c1_52 = arith.constant 1 : index
      %c0_53 = arith.constant 0 : index
      %56 = vector.load %arg2[%c0_50, %55, %c0_51, %c1_52, %c0_53] : memref<1x5x2x5x32xbf16, #tpu.memory_space<vmem>>, vector<1x1x1x4x32xbf16>
      %57 = vector.shape_cast %56 : vector<1x1x1x4x32xbf16> to vector<4x32xbf16>
      %cst_54 = arith.constant dense<0.000000e+00> : vector<4x32xf32>
      %58 = tpu.matmul %57, %12, %cst_54 {dimension_numbers = #tpu.dot_dimension_numbers<[1], [0], [0], [1], [0, 0, 1, 1], [], []>} : vector<4x32xbf16>, vector<32x32xbf16>, vector<4x32xf32> -> vector<4x32xf32>
      %59 = arith.addf %52, %58 : vector<4x32xf32>
      %c1_i32_55 = arith.constant 1 : i32
      %60 = arith.addi %0, %c1_i32_55 : i32
      %61 = arith.addi %60, %arg6 : i32
      %c0_56 = arith.constant 0 : index
      %62 = arith.index_cast %61 : i32 to index
      %c1_57 = arith.constant 1 : index
      %c0_58 = arith.constant 0 : index
      %c0_59 = arith.constant 0 : index
      %63 = vector.load %arg2[%c0_56, %62, %c1_57, %c0_58, %c0_59] : memref<1x5x2x5x32xbf16, #tpu.memory_space<vmem>>, vector<1x1x1x4x32xbf16>
      %64 = vector.shape_cast %63 : vector<1x1x1x4x32xbf16> to vector<4x32xbf16>
      %cst_60 = arith.constant dense<0.000000e+00> : vector<4x32xf32>
      %65 = tpu.matmul %64, %14, %cst_60 {dimension_numbers = #tpu.dot_dimension_numbers<[1], [0], [0], [1], [0, 0, 1, 1], [], []>} : vector<4x32xbf16>, vector<32x32xbf16>, vector<4x32xf32> -> vector<4x32xf32>
      %66 = arith.addf %59, %65 : vector<4x32xf32>
      %c1_i32_61 = arith.constant 1 : i32
      %67 = arith.addi %0, %c1_i32_61 : i32
      %68 = arith.addi %67, %arg6 : i32
      %c0_62 = arith.constant 0 : index
      %69 = arith.index_cast %68 : i32 to index
      %c1_63 = arith.constant 1 : index
      %c1_64 = arith.constant 1 : index
      %c0_65 = arith.constant 0 : index
      %70 = vector.load %arg2[%c0_62, %69, %c1_63, %c1_64, %c0_65] : memref<1x5x2x5x32xbf16, #tpu.memory_space<vmem>>, vector<1x1x1x4x32xbf16>
      %71 = vector.shape_cast %70 : vector<1x1x1x4x32xbf16> to vector<4x32xbf16>
      %cst_66 = arith.constant dense<0.000000e+00> : vector<4x32xf32>
      %72 = tpu.matmul %71, %16, %cst_66 {dimension_numbers = #tpu.dot_dimension_numbers<[1], [0], [0], [1], [0, 0, 1, 1], [], []>} : vector<4x32xbf16>, vector<32x32xbf16>, vector<4x32xf32> -> vector<4x32xf32>
      %73 = arith.addf %66, %72 : vector<4x32xf32>
      %74 = vector.broadcast %17 : vector<1x32xf32> to vector<4x32xf32>
      %75 = arith.addf %73, %74 : vector<4x32xf32>
      %cst_67 = arith.constant 2.000000e-01 : f32
      %76 = vector.broadcast %cst_67 : f32 to vector<4x32xf32>
      %77 = arith.mulf %76, %75 : vector<4x32xf32>
      %78 = arith.maximumf %75, %77 : vector<4x32xf32>
      %79 = arith.truncf %78 : vector<4x32xf32> to vector<4x32xbf16>
      %c0_68 = arith.constant 0 : index
      %80 = arith.index_cast %arg6 : i32 to index
      %c0_69 = arith.constant 0 : index
      %c0_70 = arith.constant 0 : index
      %81 = vector.load %arg5[%c0_68, %80, %c0_69, %c0_70] : memref<1x4x4x32xbf16, #tpu.memory_space<vmem>>, vector<1x1x4x32xbf16>
      %82 = vector.shape_cast %81 : vector<1x1x4x32xbf16> to vector<4x32xbf16>
      %83 = vector.shape_cast %79 : vector<4x32xbf16> to vector<1x1x4x32xbf16>
      tpu.vector_store %arg5[%c0_68, %80, %c0_69, %c0_70], %83 {strides = array<i32>} : memref<1x4x4x32xbf16, #tpu.memory_space<vmem>>, vector<1x1x4x32xbf16>,
    }
    %c4_i32_19 = arith.constant 4 : i32
    return
  }
  func.func @transform_0(%arg0: i32, %arg1: i32) -> (i32, i32, i32, i32, i32) {
    %c0_i32 = arith.constant 0 : i32
    %c0_i32_0 = arith.constant 0 : i32
    %c0_i32_1 = arith.constant 0 : i32
    %c0_i32_2 = arith.constant 0 : i32
    %c0_i32_3 = arith.constant 0 : i32
    return %arg0, %c0_i32, %c0_i32_0, %c0_i32_1, %c0_i32_2 : i32, i32, i32, i32, i32
  }
  func.func @transform_1(%arg0: i32, %arg1: i32) -> (i32, i32, i32) {
    %c0_i32 = arith.constant 0 : i32
    %c0_i32_0 = arith.constant 0 : i32
    %c0_i32_1 = arith.constant 0 : i32
    %c0_i32_2 = arith.constant 0 : i32
    return %c0_i32, %c0_i32_0, %c0_i32_1 : i32, i32, i32
  }
  func.func @transform_2(%arg0: i32, %arg1: i32) -> (i32, i32) {
    %c0_i32 = arith.constant 0 : i32
    %c0_i32_0 = arith.constant 0 : i32
    %c0_i32_1 = arith.constant 0 : i32
    return %c0_i32, %c0_i32_0 : i32, i32
  }
  func.func @transform_3(%arg0: i32, %arg1: i32) -> (i32, i32, i32, i32) {
    %c0_i32 = arith.constant 0 : i32
    %c0_i32_0 = arith.constant 0 : i32
    %c0_i32_1 = arith.constant 0 : i32
    return %arg0, %arg1, %c0_i32, %c0_i32_0 : i32, i32, i32, i32
  }
}

module attributes {stable_mosaic.version = 11 : i64} {
  func.func @_conv_kernel(%arg0: i32, %arg1: i32, %arg2: memref<1x5x1x5x64xbf16, #tpu.memory_space<vmem>>, %arg3: memref<16x64x1xbf16, #tpu.memory_space<vmem>>, %arg4: memref<1x1xf32, #tpu.memory_space<vmem>>, %arg5: memref<1x2x2x1xf32, #tpu.memory_space<vmem>>) attributes {dimension_semantics = [#tpu.dimension_semantics<parallel>, #tpu.dimension_semantics<parallel>], iteration_bounds = array<i64: 2, 1>, scalar_prefetch = 0 : i64, scratch_operands = 0 : i64, tpu.core_type = #tpu.core_type<tc>, window_params = [{transform_indices = @transform_0, window_bounds = array<i64: 1, 5, 1, 5, 64>}, {pipeline_mode = #tpu.pipeline_mode<synchronous>, transform_indices = @transform_1, window_bounds = array<i64: 16, 64, 1>}, {pipeline_mode = #tpu.pipeline_mode<synchronous>, transform_indices = @transform_2, window_bounds = array<i64: 1, 1>}, {transform_indices = @transform_3, window_bounds = array<i64: 1, 2, 2, 1>}]} {
    %c2_i32 = arith.constant 2 : i32
    %0 = arith.muli %arg1, %c2_i32 : i32
    %c0 = arith.constant 0 : index
    %c0_0 = arith.constant 0 : index
    %c0_1 = arith.constant 0 : index
    %1 = vector.load %arg3[%c0, %c0_0, %c0_1] : memref<16x64x1xbf16, #tpu.memory_space<vmem>>, vector<1x64x1xbf16>
    %2 = vector.shape_cast %1 : vector<1x64x1xbf16> to vector<64x1xbf16>
    %c1 = arith.constant 1 : index
    %c0_2 = arith.constant 0 : index
    %c0_3 = arith.constant 0 : index
    %3 = vector.load %arg3[%c1, %c0_2, %c0_3] : memref<16x64x1xbf16, #tpu.memory_space<vmem>>, vector<1x64x1xbf16>
    %4 = vector.shape_cast %3 : vector<1x64x1xbf16> to vector<64x1xbf16>
    %c2 = arith.constant 2 : index
    %c0_4 = arith.constant 0 : index
    %c0_5 = arith.constant 0 : index
    %5 = vector.load %arg3[%c2, %c0_4, %c0_5] : memref<16x64x1xbf16, #tpu.memory_space<vmem>>, vector<1x64x1xbf16>
    %6 = vector.shape_cast %5 : vector<1x64x1xbf16> to vector<64x1xbf16>
    %c3 = arith.constant 3 : index
    %c0_6 = arith.constant 0 : index
    %c0_7 = arith.constant 0 : index
    %7 = vector.load %arg3[%c3, %c0_6, %c0_7] : memref<16x64x1xbf16, #tpu.memory_space<vmem>>, vector<1x64x1xbf16>
    %8 = vector.shape_cast %7 : vector<1x64x1xbf16> to vector<64x1xbf16>
    %c4 = arith.constant 4 : index
    %c0_8 = arith.constant 0 : index
    %c0_9 = arith.constant 0 : index
    %9 = vector.load %arg3[%c4, %c0_8, %c0_9] : memref<16x64x1xbf16, #tpu.memory_space<vmem>>, vector<1x64x1xbf16>
    %10 = vector.shape_cast %9 : vector<1x64x1xbf16> to vector<64x1xbf16>
    %c5 = arith.constant 5 : index
    %c0_10 = arith.constant 0 : index
    %c0_11 = arith.constant 0 : index
    %11 = vector.load %arg3[%c5, %c0_10, %c0_11] : memref<16x64x1xbf16, #tpu.memory_space<vmem>>, vector<1x64x1xbf16>
    %12 = vector.shape_cast %11 : vector<1x64x1xbf16> to vector<64x1xbf16>
    %c6 = arith.constant 6 : index
    %c0_12 = arith.constant 0 : index
    %c0_13 = arith.constant 0 : index
    %13 = vector.load %arg3[%c6, %c0_12, %c0_13] : memref<16x64x1xbf16, #tpu.memory_space<vmem>>, vector<1x64x1xbf16>
    %14 = vector.shape_cast %13 : vector<1x64x1xbf16> to vector<64x1xbf16>
    %c7 = arith.constant 7 : index
    %c0_14 = arith.constant 0 : index
    %c0_15 = arith.constant 0 : index
    %15 = vector.load %arg3[%c7, %c0_14, %c0_15] : memref<16x64x1xbf16, #tpu.memory_space<vmem>>, vector<1x64x1xbf16>
    %16 = vector.shape_cast %15 : vector<1x64x1xbf16> to vector<64x1xbf16>
    %c8 = arith.constant 8 : index
    %c0_16 = arith.constant 0 : index
    %c0_17 = arith.constant 0 : index
    %17 = vector.load %arg3[%c8, %c0_16, %c0_17] : memref<16x64x1xbf16, #tpu.memory_space<vmem>>, vector<1x64x1xbf16>
    %18 = vector.shape_cast %17 : vector<1x64x1xbf16> to vector<64x1xbf16>
    %c9 = arith.constant 9 : index
    %c0_18 = arith.constant 0 : index
    %c0_19 = arith.constant 0 : index
    %19 = vector.load %arg3[%c9, %c0_18, %c0_19] : memref<16x64x1xbf16, #tpu.memory_space<vmem>>, vector<1x64x1xbf16>
    %20 = vector.shape_cast %19 : vector<1x64x1xbf16> to vector<64x1xbf16>
    %c10 = arith.constant 10 : index
    %c0_20 = arith.constant 0 : index
    %c0_21 = arith.constant 0 : index
    %21 = vector.load %arg3[%c10, %c0_20, %c0_21] : memref<16x64x1xbf16, #tpu.memory_space<vmem>>, vector<1x64x1xbf16>
    %22 = vector.shape_cast %21 : vector<1x64x1xbf16> to vector<64x1xbf16>
    %c11 = arith.constant 11 : index
    %c0_22 = arith.constant 0 : index
    %c0_23 = arith.constant 0 : index
    %23 = vector.load %arg3[%c11, %c0_22, %c0_23] : memref<16x64x1xbf16, #tpu.memory_space<vmem>>, vector<1x64x1xbf16>
    %24 = vector.shape_cast %23 : vector<1x64x1xbf16> to vector<64x1xbf16>
    %c12 = arith.constant 12 : index
    %c0_24 = arith.constant 0 : index
    %c0_25 = arith.constant 0 : index
    %25 = vector.load %arg3[%c12, %c0_24, %c0_25] : memref<16x64x1xbf16, #tpu.memory_space<vmem>>, vector<1x64x1xbf16>
    %26 = vector.shape_cast %25 : vector<1x64x1xbf16> to vector<64x1xbf16>
    %c13 = arith.constant 13 : index
    %c0_26 = arith.constant 0 : index
    %c0_27 = arith.constant 0 : index
    %27 = vector.load %arg3[%c13, %c0_26, %c0_27] : memref<16x64x1xbf16, #tpu.memory_space<vmem>>, vector<1x64x1xbf16>
    %28 = vector.shape_cast %27 : vector<1x64x1xbf16> to vector<64x1xbf16>
    %c14 = arith.constant 14 : index
    %c0_28 = arith.constant 0 : index
    %c0_29 = arith.constant 0 : index
    %29 = vector.load %arg3[%c14, %c0_28, %c0_29] : memref<16x64x1xbf16, #tpu.memory_space<vmem>>, vector<1x64x1xbf16>
    %30 = vector.shape_cast %29 : vector<1x64x1xbf16> to vector<64x1xbf16>
    %c15 = arith.constant 15 : index
    %c0_30 = arith.constant 0 : index
    %c0_31 = arith.constant 0 : index
    %31 = vector.load %arg3[%c15, %c0_30, %c0_31] : memref<16x64x1xbf16, #tpu.memory_space<vmem>>, vector<1x64x1xbf16>
    %32 = vector.shape_cast %31 : vector<1x64x1xbf16> to vector<64x1xbf16>
    %c0_32 = arith.constant 0 : index
    %c0_33 = arith.constant 0 : index
    %33 = vector.load %arg4[%c0_32, %c0_33] : memref<1x1xf32, #tpu.memory_space<vmem>>, vector<1x1xf32>
    %c0_i32 = arith.constant 0 : i32
    %c2_i32_34 = arith.constant 2 : i32
    %34 = arith.addi %c0_i32, %c2_i32_34 : i32
    %c1_i32 = arith.constant 1 : i32
    scf.for %arg6 = %c0_i32 to %34 step %c1_i32  : i32 {
      %c0_i32_36 = arith.constant 0 : i32
      %35 = arith.addi %0, %c0_i32_36 : i32
      %36 = arith.addi %35, %arg6 : i32
      %c0_37 = arith.constant 0 : index
      %37 = arith.index_cast %36 : i32 to index
      %c0_38 = arith.constant 0 : index
      %c0_39 = arith.constant 0 : index
      %c0_40 = arith.constant 0 : index
      %38 = vector.load %arg2[%c0_37, %37, %c0_38, %c0_39, %c0_40] : memref<1x5x1x5x64xbf16, #tpu.memory_space<vmem>>, vector<1x1x1x2x64xbf16>
      %39 = vector.shape_cast %38 : vector<1x1x1x2x64xbf16> to vector<2x64xbf16>
      %cst = arith.constant dense<0.000000e+00> : vector<2x1xf32>
      %40 = tpu.matmul %39, %2, %cst {dimension_numbers = #tpu.dot_dimension_numbers<[1], [0], [0], [1], [0, 0, 1, 1], [], []>} : vector<2x64xbf16>, vector<64x1xbf16>, vector<2x1xf32> -> vector<2x1xf32>
      %c0_i32_41 = arith.constant 0 : i32
      %41 = arith.addi %0, %c0_i32_41 : i32
      %42 = arith.addi %41, %arg6 : i32
      %c0_42 = arith.constant 0 : index
      %43 = arith.index_cast %42 : i32 to index
      %c0_43 = arith.constant 0 : index
      %c1_44 = arith.constant 1 : index
      %c0_45 = arith.constant 0 : index
      %44 = vector.load %arg2[%c0_42, %43, %c0_43, %c1_44, %c0_45] : memref<1x5x1x5x64xbf16, #tpu.memory_space<vmem>>, vector<1x1x1x2x64xbf16>
      %45 = vector.shape_cast %44 : vector<1x1x1x2x64xbf16> to vector<2x64xbf16>
      %cst_46 = arith.constant dense<0.000000e+00> : vector<2x1xf32>
      %46 = tpu.matmul %45, %4, %cst_46 {dimension_numbers = #tpu.dot_dimension_numbers<[1], [0], [0], [1], [0, 0, 1, 1], [], []>} : vector<2x64xbf16>, vector<64x1xbf16>, vector<2x1xf32> -> vector<2x1xf32>
      %47 = arith.addf %40, %46 : vector<2x1xf32>
      %c0_i32_47 = arith.constant 0 : i32
      %48 = arith.addi %0, %c0_i32_47 : i32
      %49 = arith.addi %48, %arg6 : i32
      %c0_48 = arith.constant 0 : index
      %50 = arith.index_cast %49 : i32 to index
      %c0_49 = arith.constant 0 : index
      %c2_50 = arith.constant 2 : index
      %c0_51 = arith.constant 0 : index
      %51 = vector.load %arg2[%c0_48, %50, %c0_49, %c2_50, %c0_51] : memref<1x5x1x5x64xbf16, #tpu.memory_space<vmem>>, vector<1x1x1x2x64xbf16>
      %52 = vector.shape_cast %51 : vector<1x1x1x2x64xbf16> to vector<2x64xbf16>
      %cst_52 = arith.constant dense<0.000000e+00> : vector<2x1xf32>
      %53 = tpu.matmul %52, %6, %cst_52 {dimension_numbers = #tpu.dot_dimension_numbers<[1], [0], [0], [1], [0, 0, 1, 1], [], []>} : vector<2x64xbf16>, vector<64x1xbf16>, vector<2x1xf32> -> vector<2x1xf32>
      %54 = arith.addf %47, %53 : vector<2x1xf32>
      %c0_i32_53 = arith.constant 0 : i32
      %55 = arith.addi %0, %c0_i32_53 : i32
      %56 = arith.addi %55, %arg6 : i32
      %c0_54 = arith.constant 0 : index
      %57 = arith.index_cast %56 : i32 to index
      %c0_55 = arith.constant 0 : index
      %c3_56 = arith.constant 3 : index
      %c0_57 = arith.constant 0 : index
      %58 = vector.load %arg2[%c0_54, %57, %c0_55, %c3_56, %c0_57] : memref<1x5x1x5x64xbf16, #tpu.memory_space<vmem>>, vector<1x1x1x2x64xbf16>
      %59 = vector.shape_cast %58 : vector<1x1x1x2x64xbf16> to vector<2x64xbf16>
      %cst_58 = arith.constant dense<0.000000e+00> : vector<2x1xf32>
      %60 = tpu.matmul %59, %8, %cst_58 {dimension_numbers = #tpu.dot_dimension_numbers<[1], [0], [0], [1], [0, 0, 1, 1], [], []>} : vector<2x64xbf16>, vector<64x1xbf16>, vector<2x1xf32> -> vector<2x1xf32>
      %61 = arith.addf %54, %60 : vector<2x1xf32>
      %c1_i32_59 = arith.constant 1 : i32
      %62 = arith.addi %0, %c1_i32_59 : i32
      %63 = arith.addi %62, %arg6 : i32
      %c0_60 = arith.constant 0 : index
      %64 = arith.index_cast %63 : i32 to index
      %c0_61 = arith.constant 0 : index
      %c0_62 = arith.constant 0 : index
      %c0_63 = arith.constant 0 : index
      %65 = vector.load %arg2[%c0_60, %64, %c0_61, %c0_62, %c0_63] : memref<1x5x1x5x64xbf16, #tpu.memory_space<vmem>>, vector<1x1x1x2x64xbf16>
      %66 = vector.shape_cast %65 : vector<1x1x1x2x64xbf16> to vector<2x64xbf16>
      %cst_64 = arith.constant dense<0.000000e+00> : vector<2x1xf32>
      %67 = tpu.matmul %66, %10, %cst_64 {dimension_numbers = #tpu.dot_dimension_numbers<[1], [0], [0], [1], [0, 0, 1, 1], [], []>} : vector<2x64xbf16>, vector<64x1xbf16>, vector<2x1xf32> -> vector<2x1xf32>
      %68 = arith.addf %61, %67 : vector<2x1xf32>
      %c1_i32_65 = arith.constant 1 : i32
      %69 = arith.addi %0, %c1_i32_65 : i32
      %70 = arith.addi %69, %arg6 : i32
      %c0_66 = arith.constant 0 : index
      %71 = arith.index_cast %70 : i32 to index
      %c0_67 = arith.constant 0 : index
      %c1_68 = arith.constant 1 : index
      %c0_69 = arith.constant 0 : index
      %72 = vector.load %arg2[%c0_66, %71, %c0_67, %c1_68, %c0_69] : memref<1x5x1x5x64xbf16, #tpu.memory_space<vmem>>, vector<1x1x1x2x64xbf16>
      %73 = vector.shape_cast %72 : vector<1x1x1x2x64xbf16> to vector<2x64xbf16>
      %cst_70 = arith.constant dense<0.000000e+00> : vector<2x1xf32>
      %74 = tpu.matmul %73, %12, %cst_70 {dimension_numbers = #tpu.dot_dimension_numbers<[1], [0], [0], [1], [0, 0, 1, 1], [], []>} : vector<2x64xbf16>, vector<64x1xbf16>, vector<2x1xf32> -> vector<2x1xf32>
      %75 = arith.addf %68, %74 : vector<2x1xf32>
      %c1_i32_71 = arith.constant 1 : i32
      %76 = arith.addi %0, %c1_i32_71 : i32
      %77 = arith.addi %76, %arg6 : i32
      %c0_72 = arith.constant 0 : index
      %78 = arith.index_cast %77 : i32 to index
      %c0_73 = arith.constant 0 : index
      %c2_74 = arith.constant 2 : index
      %c0_75 = arith.constant 0 : index
      %79 = vector.load %arg2[%c0_72, %78, %c0_73, %c2_74, %c0_75] : memref<1x5x1x5x64xbf16, #tpu.memory_space<vmem>>, vector<1x1x1x2x64xbf16>
      %80 = vector.shape_cast %79 : vector<1x1x1x2x64xbf16> to vector<2x64xbf16>
      %cst_76 = arith.constant dense<0.000000e+00> : vector<2x1xf32>
      %81 = tpu.matmul %80, %14, %cst_76 {dimension_numbers = #tpu.dot_dimension_numbers<[1], [0], [0], [1], [0, 0, 1, 1], [], []>} : vector<2x64xbf16>, vector<64x1xbf16>, vector<2x1xf32> -> vector<2x1xf32>
      %82 = arith.addf %75, %81 : vector<2x1xf32>
      %c1_i32_77 = arith.constant 1 : i32
      %83 = arith.addi %0, %c1_i32_77 : i32
      %84 = arith.addi %83, %arg6 : i32
      %c0_78 = arith.constant 0 : index
      %85 = arith.index_cast %84 : i32 to index
      %c0_79 = arith.constant 0 : index
      %c3_80 = arith.constant 3 : index
      %c0_81 = arith.constant 0 : index
      %86 = vector.load %arg2[%c0_78, %85, %c0_79, %c3_80, %c0_81] : memref<1x5x1x5x64xbf16, #tpu.memory_space<vmem>>, vector<1x1x1x2x64xbf16>
      %87 = vector.shape_cast %86 : vector<1x1x1x2x64xbf16> to vector<2x64xbf16>
      %cst_82 = arith.constant dense<0.000000e+00> : vector<2x1xf32>
      %88 = tpu.matmul %87, %16, %cst_82 {dimension_numbers = #tpu.dot_dimension_numbers<[1], [0], [0], [1], [0, 0, 1, 1], [], []>} : vector<2x64xbf16>, vector<64x1xbf16>, vector<2x1xf32> -> vector<2x1xf32>
      %89 = arith.addf %82, %88 : vector<2x1xf32>
      %c2_i32_83 = arith.constant 2 : i32
      %90 = arith.addi %0, %c2_i32_83 : i32
      %91 = arith.addi %90, %arg6 : i32
      %c0_84 = arith.constant 0 : index
      %92 = arith.index_cast %91 : i32 to index
      %c0_85 = arith.constant 0 : index
      %c0_86 = arith.constant 0 : index
      %c0_87 = arith.constant 0 : index
      %93 = vector.load %arg2[%c0_84, %92, %c0_85, %c0_86, %c0_87] : memref<1x5x1x5x64xbf16, #tpu.memory_space<vmem>>, vector<1x1x1x2x64xbf16>
      %94 = vector.shape_cast %93 : vector<1x1x1x2x64xbf16> to vector<2x64xbf16>
      %cst_88 = arith.constant dense<0.000000e+00> : vector<2x1xf32>
      %95 = tpu.matmul %94, %18, %cst_88 {dimension_numbers = #tpu.dot_dimension_numbers<[1], [0], [0], [1], [0, 0, 1, 1], [], []>} : vector<2x64xbf16>, vector<64x1xbf16>, vector<2x1xf32> -> vector<2x1xf32>
      %96 = arith.addf %89, %95 : vector<2x1xf32>
      %c2_i32_89 = arith.constant 2 : i32
      %97 = arith.addi %0, %c2_i32_89 : i32
      %98 = arith.addi %97, %arg6 : i32
      %c0_90 = arith.constant 0 : index
      %99 = arith.index_cast %98 : i32 to index
      %c0_91 = arith.constant 0 : index
      %c1_92 = arith.constant 1 : index
      %c0_93 = arith.constant 0 : index
      %100 = vector.load %arg2[%c0_90, %99, %c0_91, %c1_92, %c0_93] : memref<1x5x1x5x64xbf16, #tpu.memory_space<vmem>>, vector<1x1x1x2x64xbf16>
      %101 = vector.shape_cast %100 : vector<1x1x1x2x64xbf16> to vector<2x64xbf16>
      %cst_94 = arith.constant dense<0.000000e+00> : vector<2x1xf32>
      %102 = tpu.matmul %101, %20, %cst_94 {dimension_numbers = #tpu.dot_dimension_numbers<[1], [0], [0], [1], [0, 0, 1, 1], [], []>} : vector<2x64xbf16>, vector<64x1xbf16>, vector<2x1xf32> -> vector<2x1xf32>
      %103 = arith.addf %96, %102 : vector<2x1xf32>
      %c2_i32_95 = arith.constant 2 : i32
      %104 = arith.addi %0, %c2_i32_95 : i32
      %105 = arith.addi %104, %arg6 : i32
      %c0_96 = arith.constant 0 : index
      %106 = arith.index_cast %105 : i32 to index
      %c0_97 = arith.constant 0 : index
      %c2_98 = arith.constant 2 : index
      %c0_99 = arith.constant 0 : index
      %107 = vector.load %arg2[%c0_96, %106, %c0_97, %c2_98, %c0_99] : memref<1x5x1x5x64xbf16, #tpu.memory_space<vmem>>, vector<1x1x1x2x64xbf16>
      %108 = vector.shape_cast %107 : vector<1x1x1x2x64xbf16> to vector<2x64xbf16>
      %cst_100 = arith.constant dense<0.000000e+00> : vector<2x1xf32>
      %109 = tpu.matmul %108, %22, %cst_100 {dimension_numbers = #tpu.dot_dimension_numbers<[1], [0], [0], [1], [0, 0, 1, 1], [], []>} : vector<2x64xbf16>, vector<64x1xbf16>, vector<2x1xf32> -> vector<2x1xf32>
      %110 = arith.addf %103, %109 : vector<2x1xf32>
      %c2_i32_101 = arith.constant 2 : i32
      %111 = arith.addi %0, %c2_i32_101 : i32
      %112 = arith.addi %111, %arg6 : i32
      %c0_102 = arith.constant 0 : index
      %113 = arith.index_cast %112 : i32 to index
      %c0_103 = arith.constant 0 : index
      %c3_104 = arith.constant 3 : index
      %c0_105 = arith.constant 0 : index
      %114 = vector.load %arg2[%c0_102, %113, %c0_103, %c3_104, %c0_105] : memref<1x5x1x5x64xbf16, #tpu.memory_space<vmem>>, vector<1x1x1x2x64xbf16>
      %115 = vector.shape_cast %114 : vector<1x1x1x2x64xbf16> to vector<2x64xbf16>
      %cst_106 = arith.constant dense<0.000000e+00> : vector<2x1xf32>
      %116 = tpu.matmul %115, %24, %cst_106 {dimension_numbers = #tpu.dot_dimension_numbers<[1], [0], [0], [1], [0, 0, 1, 1], [], []>} : vector<2x64xbf16>, vector<64x1xbf16>, vector<2x1xf32> -> vector<2x1xf32>
      %117 = arith.addf %110, %116 : vector<2x1xf32>
      %c3_i32 = arith.constant 3 : i32
      %118 = arith.addi %0, %c3_i32 : i32
      %119 = arith.addi %118, %arg6 : i32
      %c0_107 = arith.constant 0 : index
      %120 = arith.index_cast %119 : i32 to index
      %c0_108 = arith.constant 0 : index
      %c0_109 = arith.constant 0 : index
      %c0_110 = arith.constant 0 : index
      %121 = vector.load %arg2[%c0_107, %120, %c0_108, %c0_109, %c0_110] : memref<1x5x1x5x64xbf16, #tpu.memory_space<vmem>>, vector<1x1x1x2x64xbf16>
      %122 = vector.shape_cast %121 : vector<1x1x1x2x64xbf16> to vector<2x64xbf16>
      %cst_111 = arith.constant dense<0.000000e+00> : vector<2x1xf32>
      %123 = tpu.matmul %122, %26, %cst_111 {dimension_numbers = #tpu.dot_dimension_numbers<[1], [0], [0], [1], [0, 0, 1, 1], [], []>} : vector<2x64xbf16>, vector<64x1xbf16>, vector<2x1xf32> -> vector<2x1xf32>
      %124 = arith.addf %117, %123 : vector<2x1xf32>
      %c3_i32_112 = arith.constant 3 : i32
      %125 = arith.addi %0, %c3_i32_112 : i32
      %126 = arith.addi %125, %arg6 : i32
      %c0_113 = arith.constant 0 : index
      %127 = arith.index_cast %126 : i32 to index
      %c0_114 = arith.constant 0 : index
      %c1_115 = arith.constant 1 : index
      %c0_116 = arith.constant 0 : index
      %128 = vector.load %arg2[%c0_113, %127, %c0_114, %c1_115, %c0_116] : memref<1x5x1x5x64xbf16, #tpu.memory_space<vmem>>, vector<1x1x1x2x64xbf16>
      %129 = vector.shape_cast %128 : vector<1x1x1x2x64xbf16> to vector<2x64xbf16>
      %cst_117 = arith.constant dense<0.000000e+00> : vector<2x1xf32>
      %130 = tpu.matmul %129, %28, %cst_117 {dimension_numbers = #tpu.dot_dimension_numbers<[1], [0], [0], [1], [0, 0, 1, 1], [], []>} : vector<2x64xbf16>, vector<64x1xbf16>, vector<2x1xf32> -> vector<2x1xf32>
      %131 = arith.addf %124, %130 : vector<2x1xf32>
      %c3_i32_118 = arith.constant 3 : i32
      %132 = arith.addi %0, %c3_i32_118 : i32
      %133 = arith.addi %132, %arg6 : i32
      %c0_119 = arith.constant 0 : index
      %134 = arith.index_cast %133 : i32 to index
      %c0_120 = arith.constant 0 : index
      %c2_121 = arith.constant 2 : index
      %c0_122 = arith.constant 0 : index
      %135 = vector.load %arg2[%c0_119, %134, %c0_120, %c2_121, %c0_122] : memref<1x5x1x5x64xbf16, #tpu.memory_space<vmem>>, vector<1x1x1x2x64xbf16>
      %136 = vector.shape_cast %135 : vector<1x1x1x2x64xbf16> to vector<2x64xbf16>
      %cst_123 = arith.constant dense<0.000000e+00> : vector<2x1xf32>
      %137 = tpu.matmul %136, %30, %cst_123 {dimension_numbers = #tpu.dot_dimension_numbers<[1], [0], [0], [1], [0, 0, 1, 1], [], []>} : vector<2x64xbf16>, vector<64x1xbf16>, vector<2x1xf32> -> vector<2x1xf32>
      %138 = arith.addf %131, %137 : vector<2x1xf32>
      %c3_i32_124 = arith.constant 3 : i32
      %139 = arith.addi %0, %c3_i32_124 : i32
      %140 = arith.addi %139, %arg6 : i32
      %c0_125 = arith.constant 0 : index
      %141 = arith.index_cast %140 : i32 to index
      %c0_126 = arith.constant 0 : index
      %c3_127 = arith.constant 3 : index
      %c0_128 = arith.constant 0 : index
      %142 = vector.load %arg2[%c0_125, %141, %c0_126, %c3_127, %c0_128] : memref<1x5x1x5x64xbf16, #tpu.memory_space<vmem>>, vector<1x1x1x2x64xbf16>
      %143 = vector.shape_cast %142 : vector<1x1x1x2x64xbf16> to vector<2x64xbf16>
      %cst_129 = arith.constant dense<0.000000e+00> : vector<2x1xf32>
      %144 = tpu.matmul %143, %32, %cst_129 {dimension_numbers = #tpu.dot_dimension_numbers<[1], [0], [0], [1], [0, 0, 1, 1], [], []>} : vector<2x64xbf16>, vector<64x1xbf16>, vector<2x1xf32> -> vector<2x1xf32>
      %145 = arith.addf %138, %144 : vector<2x1xf32>
      %146 = vector.broadcast %33 : vector<1x1xf32> to vector<2x1xf32>
      %147 = arith.addf %145, %146 : vector<2x1xf32>
      %148 = arith.negf %147 : vector<2x1xf32>
      %149 = math.exp %148 : vector<2x1xf32>
      %cst_130 = arith.constant 1.000000e+00 : f32
      %150 = vector.broadcast %cst_130 : f32 to vector<2x1xf32>
      %151 = arith.addf %150, %149 : vector<2x1xf32>
      %152 = arith.divf %150, %151 : vector<2x1xf32>
      %c0_131 = arith.constant 0 : index
      %153 = arith.index_cast %arg6 : i32 to index
      %c0_132 = arith.constant 0 : index
      %c0_133 = arith.constant 0 : index
      %154 = vector.load %arg5[%c0_131, %153, %c0_132, %c0_133] : memref<1x2x2x1xf32, #tpu.memory_space<vmem>>, vector<1x1x2x1xf32>
      %155 = vector.shape_cast %154 : vector<1x1x2x1xf32> to vector<2x1xf32>
      %156 = vector.shape_cast %152 : vector<2x1xf32> to vector<1x1x2x1xf32>
      tpu.vector_store %arg5[%c0_131, %153, %c0_132, %c0_133], %156 {strides = array<i32>} : memref<1x2x2x1xf32, #tpu.memory_space<vmem>>, vector<1x1x2x1xf32>,
    }
    %c2_i32_35 = arith.constant 2 : i32
    return
  }
  func.func @transform_0(%arg0: i32, %arg1: i32) -> (i32, i32, i32, i32, i32) {
    %c0_i32 = arith.constant 0 : i32
    %c0_i32_0 = arith.constant 0 : i32
    %c0_i32_1 = arith.constant 0 : i32
    %c0_i32_2 = arith.constant 0 : i32
    %c0_i32_3 = arith.constant 0 : i32
    return %arg0, %c0_i32, %c0_i32_0, %c0_i32_1, %c0_i32_2 : i32, i32, i32, i32, i32
  }
  func.func @transform_1(%arg0: i32, %arg1: i32) -> (i32, i32, i32) {
    %c0_i32 = arith.constant 0 : i32
    %c0_i32_0 = arith.constant 0 : i32
    %c0_i32_1 = arith.constant 0 : i32
    %c0_i32_2 = arith.constant 0 : i32
    return %c0_i32, %c0_i32_0, %c0_i32_1 : i32, i32, i32
  }
  func.func @transform_2(%arg0: i32, %arg1: i32) -> (i32, i32) {
    %c0_i32 = arith.constant 0 : i32
    %c0_i32_0 = arith.constant 0 : i32
    %c0_i32_1 = arith.constant 0 : i32
    return %c0_i32, %c0_i32_0 : i32, i32
  }
  func.func @transform_3(%arg0: i32, %arg1: i32) -> (i32, i32, i32, i32) {
    %c0_i32 = arith.constant 0 : i32
    %c0_i32_0 = arith.constant 0 : i32
    %c0_i32_1 = arith.constant 0 : i32
    return %arg0, %arg1, %c0_i32, %c0_i32_0 : i32, i32, i32, i32
  }
}

</mosaic_0001>

<llo_original>
// kernel: _lambda_.5
$region0: #{_lambda_.5}
  #allocation0 [shape = 'u32[]', space=smem, size = 0x4, offset = 0x4, fixed_abs, tag = 'smem constant byte address 0x4 - core index']
  #allocation1 [shape = 'u32[72,128]{1,0:T(1,128)}', space=vmem, size = 0x9000, scoped, tag = 'internal scratch']
  %s0 = inlined_call_operand.vmem [shape: bf16[2,17,2,17,6], index: 0, kind: input, shape index: {}]
  %s1 = inlined_call_operand.vmem [shape: bf16[8,6,8], index: 1, kind: input, shape index: {}]
  %s2 = inlined_call_operand.vmem [shape: f32[1,8], index: 2, kind: input, shape index: {}]
  %s3 = inlined_call_operand.vmem [shape: bf16[2,16,16,8], index: 3, kind: output, shape index: {}]
  %s4 = sld [smem:[#allocation0]]
  $region52: #{_lambda_.5} parent=0
    _
  %s6 = ssub.s32 1, %s4
  %s7 = scalar_select 0, %s6, %s4
  loop: start=0, step=1, limit=4
  $region2: #{_lambda_.5} parent=0 // loop_pre_header
    _
  $region3: #{_lambda_.5} parent=0 // loop_header
    %s9 = sphi 0, %s13
    %p10 = scmp.ge.s32.totalorder %s9, 4
    %s16 = sphi 0, %s28
    %s17 = sphi 0, %s24
    %s18 = sphi 0, %s16
    %s19 = sphi 0, %s17
    %s20 = sphi 0, %s18
    %s21 = sphi 0, %s19
    %s31 = sphi 0, %s33
    %s34 = sphi 0, %s31
    %s35 = sphi 0, %s34
    %s51 = sphi 0, %s35
    %s55 = sphi 0, %s55
    %s57 = sphi 0, %s55
    %s58 = sphi 0, %s57
    %s72 = sphi 0, %s58
    %s76 = sphi 0, %s76
    %s78 = sphi 0, %s76
    %s79 = sphi 0, %s78
    %s93 = sphi 0, %s79
    %s101 = sphi 0, %s103
    %s104 = sphi 0, %s101
    %s105 = sphi 0, %s104
    %s121 = sphi 0, %s105
  $region4: #{_lambda_.5} parent=0 // loop_header_branch
    %12 = sbr.rel (%p10) target = $region8
  $region5: #{_lambda_.5} parent=0 // loop_body
    %s14 = ssub.s32 %s9, 1
    %s15 = ssub.s32 %s9, 2
    %s22 = sadd.s32 1, %s17
    %p23 = scmp.ge.s32.totalorder %s22, 1
    %s24 = scalar_select %p23, 0, %s22
    %s25 = sadd.s32 1, %s16
    %s26 = scalar_select %p23, %s25, %s16
    %p27 = scmp.ge.s32.totalorder %s26, 2
    %s28 = scalar_select %p27, 0, %s26
    %s29 = ssub.s32 %s16, %s28
    %p30 = scmp.eq.s32.totalorder %s29, 0
    %s32 = sadd.s32 %s31, 1
    %s33 = scalar_select %p30, %s31, %s32
    %p36 = pneg %p30
    %p37 = scmp.eq.s32.totalorder %s9, 1
    %p38 = por %p36, %p37
    %p39 = scmp.ne.s32.totalorder %s31, %s34
    %p40 = scmp.eq.s32.totalorder %s9, 0
    %p41 = por %p39, %p40
    %p42 = scmp.ne.s32.totalorder %s31, %s34
    %p43 = scmp.eq.s32.totalorder %s14, 1
    %p44 = por %p42, %p43
    %p45 = scmp.ne.s32.totalorder %s34, %s35
    %p46 = scmp.eq.s32.totalorder %s14, 0
    %p47 = por %p45, %p46
    %p48 = scmp.ne.s32.totalorder %s34, %s35
    %p49 = scmp.eq.s32.totalorder %s15, 1
    %p50 = por %p48, %p49
    %p52 = scmp.ne.s32.totalorder %s35, %s51
    %p53 = scmp.eq.s32.totalorder %s15, 0
    %p54 = por %p52, %p53
    %s56 = sadd.s32 %s55, 1
    %p59 = scmp.eq.s32.totalorder %s9, 1
    %p60 = scmp.ne.s32.totalorder %s55, %s57
    %p61 = scmp.eq.s32.totalorder %s9, 0
    %p62 = por %p60, %p61
    %p63 = scmp.ne.s32.totalorder %s55, %s57
    %p64 = scmp.eq.s32.totalorder %s14, 1
    %p65 = por %p63, %p64
    %p66 = scmp.ne.s32.totalorder %s57, %s58
    %p67 = scmp.eq.s32.totalorder %s14, 0
    %p68 = por %p66, %p67
    %p69 = scmp.ne.s32.totalorder %s57, %s58
    %p70 = scmp.eq.s32.totalorder %s15, 1
    %p71 = por %p69, %p70
    %p73 = scmp.ne.s32.totalorder %s58, %s72
    %p74 = scmp.eq.s32.totalorder %s15, 0
    %p75 = por %p73, %p74
    %s77 = sadd.s32 %s76, 1
    %p80 = scmp.eq.s32.totalorder %s9, 1
    %p81 = scmp.ne.s32.totalorder %s76, %s78
    %p82 = scmp.eq.s32.totalorder %s9, 0
    %p83 = por %p81, %p82
    %p84 = scmp.ne.s32.totalorder %s76, %s78
    %p85 = scmp.eq.s32.totalorder %s14, 1
    %p86 = por %p84, %p85
    %p87 = scmp.ne.s32.totalorder %s78, %s79
    %p88 = scmp.eq.s32.totalorder %s14, 0
    %p89 = por %p87, %p88
    %p90 = scmp.ne.s32.totalorder %s78, %s79
    %p91 = scmp.eq.s32.totalorder %s15, 1
    %p92 = por %p90, %p91
    %p94 = scmp.ne.s32.totalorder %s79, %s93
    %p95 = scmp.eq.s32.totalorder %s15, 0
    %p96 = por %p94, %p95
    %s97 = ssub.s32 %s16, %s28
    %s98 = ssub.s32 %s17, %s24
    %s99 = sor.u32 %s97, %s98
    %p100 = scmp.eq.s32.totalorder %s99, 0
    %s102 = sadd.s32 %s101, 1
    %s103 = scalar_select %p100, %s101, %s102
    %p106 = pneg %p100
    %p107 = scmp.eq.s32.totalorder %s9, 1
    %p108 = por %p106, %p107
    %p109 = scmp.ne.s32.totalorder %s101, %s104
    %p110 = scmp.eq.s32.totalorder %s9, 0
    %p111 = por %p109, %p110
    %p112 = scmp.ne.s32.totalorder %s101, %s104
    %p113 = scmp.eq.s32.totalorder %s14, 1
    %p114 = por %p112, %p113
    %p115 = scmp.ne.s32.totalorder %s104, %s105
    %p116 = scmp.eq.s32.totalorder %s14, 0
    %p117 = por %p115, %p116
    %p118 = scmp.ne.s32.totalorder %s104, %s105
    %p119 = scmp.eq.s32.totalorder %s15, 1
    %p120 = por %p118, %p119
    %p122 = scmp.ne.s32.totalorder %s105, %s121
    %p123 = scmp.eq.s32.totalorder %s15, 0
    %p124 = por %p122, %p123
    %p125 = scmp.le.s32.totalorder 1, %s9
    %p126 = scmp.lt.s32.totalorder %s9, 3
    %p127 = pnand %p125, %p126
    %p128 = pneg %p127
    // Predicated region
    $region9: #{_lambda_.5} parent=5 // pred_check
      _
    $region10: #{_lambda_.5} parent=5 // pred_check_branch
      %130 = sbr.rel (%p127) target = $region12
    $region11: #{_lambda_.5} parent=5 // pred_region
      %s131 = ssub.s32 %s9, 1
      // Predicated region
      $region13: #{_lambda_.5} parent=11 // pred_check
        %p132 = pneg %p68
      $region14: #{_lambda_.5} parent=11 // pred_check_branch
        %134 = sbr.rel (%p132) target = $region16
      $region15: #{_lambda_.5} parent=11 // pred_region
        _
      $region16: #{_lambda_.5} parent=11 // pred_fallthru
        _
      // Predicated region
      $region17: #{_lambda_.5} parent=11 // pred_check
        %p135 = pneg %p89
      $region18: #{_lambda_.5} parent=11 // pred_check_branch
        %137 = sbr.rel (%p135) target = $region20
      $region19: #{_lambda_.5} parent=11 // pred_region
        _
      $region20: #{_lambda_.5} parent=11 // pred_fallthru
        _
    $region12: #{_lambda_.5} parent=5 // pred_fallthru
      _
    %p138 = scmp.lt.s32.totalorder %s9, 2
    // Predicated region
    $region21: #{_lambda_.5} parent=5 // pred_check
      %p139 = pneg %p138
    $region22: #{_lambda_.5} parent=5 // pred_check_branch
      %141 = sbr.rel (%p139) target = $region24
    $region23: #{_lambda_.5} parent=5 // pred_region
      // Predicated region
      $region25: #{_lambda_.5} parent=23 // pred_check
        %p142 = pneg %p41
      $region26: #{_lambda_.5} parent=23 // pred_check_branch
        %144 = sbr.rel (%p142) target = $region28
      $region27: #{_lambda_.5} parent=23 // pred_region
        %p145 = scmp.lt.s32.totalorder %s16, 1
        %s146 = scalar_select %p145, %s16, 1
        %s147 = smul.addr %s146, 102
        %s148 = smul.addr %s147, 4
        %s149 = scalar_lea.vmem %s0, %s148
      $region28: #{_lambda_.5} parent=23 // pred_fallthru
        _
    $region24: #{_lambda_.5} parent=5 // pred_fallthru
      _
    %p150 = scmp.le.s32.totalorder 1, %s9
    %p151 = scmp.lt.s32.totalorder %s9, 3
    %p152 = pnand %p150, %p151
    %p153 = pneg %p152
    // Predicated region
    $region29: #{_lambda_.5} parent=5 // pred_check
      _
    $region30: #{_lambda_.5} parent=5 // pred_check_branch
      %155 = sbr.rel (%p152) target = $region32
    $region31: #{_lambda_.5} parent=5 // pred_region
      %s156 = ssub.s32 %s9, 1
      %p157 = scmp.lt.s32.totalorder %s18, 1
      %s158 = scalar_select %p157, %s18, 1
      %s159 = smul.addr %s158, 102
      %s160 = smul.addr %s159, 4
      %s161 = scalar_lea.vmem %s0, %s160
      %p162 = pneg %p47
      %p163 = pneg %p44
      %p164 = pneg %p68
      %p165 = pneg %p65
      %p166 = pneg %p89
      %p167 = pneg %p86
      %p168 = pneg %p117
      %p169 = pneg %p114
      %s170 = smul.u32 16, %s19
      %p171 = scmp.lt.s32.totalorder %s18, 1
      %s172 = scalar_select %p171, %s18, 1
      %p173 = scmp.lt.s32.totalorder %s170, 15
      %s174 = scalar_select %p173, %s170, 15
      %s175 = smul.addr %s174, 2
      %s176 = smul.addr %s172, 32
      %s177 = sadd.s32 %s175, %s176
      %s178 = smul.addr %s177, 4
      %s179 = scalar_lea.vmem %s3, %s178
      %p180 = scmp.lt.s32.totalorder %s18, 1
      %s181 = scalar_select %p180, %s18, 1
      %s182 = smul.addr %s181, 102
      %s183 = smul.addr %s182, 4
      %s184 = scalar_lea.vmem %s0, %s183
      %s185 = smul.u32 16, %s19
      %p186 = scmp.lt.s32.totalorder %s18, 1
      %s187 = scalar_select %p186, %s18, 1
      %p188 = scmp.lt.s32.totalorder %s185, 15
      %s189 = scalar_select %p188, %s185, 15
      %s190 = smul.addr %s189, 2
      %s191 = smul.addr %s187, 32
      %s192 = sadd.s32 %s190, %s191
      %s193 = smul.addr %s192, 4
      %s194 = scalar_lea.vmem %s3, %s193
      %s195 = smul.u32 16, %s19
      %s197 = smul.u32 %s19, 16
      %v198 = vld [vmem:[%s1] sm:$0x7]
      %s199 = scalar_lea.vmem %s1, 4
      %v200 = vld [vmem:[%s199] sm:$0x7]
      %s201 = scalar_lea.vmem %s1, 8
      %v202 = vld [vmem:[%s201] sm:$0x7]
      %s203 = scalar_lea.vmem %s1, 12
      %v204 = vld [vmem:[%s203] sm:$0x7]
      %s205 = scalar_lea.vmem %s1, 16
      %v206 = vld [vmem:[%s205] sm:$0x7]
      %s207 = scalar_lea.vmem %s1, 20
      %v208 = vld [vmem:[%s207] sm:$0x7]
      %s209 = scalar_lea.vmem %s1, 24
      %v210 = vld [vmem:[%s209] sm:$0x7]
      %s211 = scalar_lea.vmem %s1, 28
      %v212 = vld [vmem:[%s211] sm:$0x7]
      %v213 = vld [vmem:[%s2] sm:$0x1]
      loop: start=0, step=1, limit=16
      $region33: #{_lambda_.5} parent=31 // loop_pre_header
        _
      $region34: #{_lambda_.5} parent=31 // loop_header
        %s215 = sphi 0, %s219
        %p216 = scmp.ge.s32.totalorder %s215, 16
      $region35: #{_lambda_.5} parent=31 // loop_header_branch
        %218 = sbr.rel (%p216) target = $region39
      $region36: #{_lambda_.5} parent=31 // loop_body
        %s220 = sadd.s32 %s197, %s215
        %s221 = smul.u32 %s220, 6
        %s222 = smul.addr %s221, 4
        %s223 = scalar_lea.vmem %s184, %s222
        %v224 = vld [vmem:[%s223] sm:$0xf]
        %v225 = vld [vmem:[%s223 + $0x4] sm:$0xf]
        %v226 = vld [vmem:[%s223 + $0x8] sm:$0x1]
        %v230 = vunpack.c.l.b16 %v224
        %v231 = vunpack.c.l.b16 %v225
        %v232 = vunpack.c.l.b16 %v226
        %v233 = vpack.c.b16 %v231, %v230
        %v234 = vpack.c.b16 %v232, %v232
        %vm235 = vsmask.f32 7424
        %v237 = vshrl.u32 %v233, 16
        %v239 = vshll.u32 %v233, 16
        %v241 = vrot.slane %v239, 1
        %v242 = vor.u32 %v237, %v241
        %v244 = vshll.u32 %v234, 16
        %v246 = vrot.slane %v244, 1
        %v247 = vsel %vm235, %v242, %v246
        %vm248 = vcmask 48128
        %v250 = vsel %vm248, %v247, 0
        %vm252 = vcmask 1042432
        %v254 = vsel %vm252, %v200, 0
        %256 = vmatpush.bf16.msra.mxu0 0
        %257 = vmatpush.bf16.msra.mxu0 0
        %258 = vmatpush.bf16.msra.mxu0 0
        %259 = vmatpush.bf16.msra.mxu0 0
        %260 = vmatpush.bf16.msra.mxu0 0
        %261 = vmatpush.bf16.msra.mxu0 0
        %262 = vmatpush.bf16.msra.mxu0 0
        %263 = vmatpush.bf16.msra.mxu0 %v254
        %264 = vmatmul.bf16.gmra.mxu0 %v250
        %v265 = vpop.f32.mrf.mxu0
        %v266 = vadd.f32 0.0, %v265
        %v267 = vpop.f32.mrf.mxu0
        %v268 = vadd.f32 0.0, %v267
        %269 = vdwg.mxu0
        %v270 = vsel %vm248, %v233, 0
        %v273 = vsel %vm252, %v198, 0
        %275 = vmatpush.bf16.msra.mxu0 0
        %276 = vmatpush.bf16.msra.mxu0 0
        %277 = vmatpush.bf16.msra.mxu0 0
        %278 = vmatpush.bf16.msra.mxu0 0
        %279 = vmatpush.bf16.msra.mxu0 0
        %280 = vmatpush.bf16.msra.mxu0 0
        %281 = vmatpush.bf16.msra.mxu0 0
        %282 = vmatpush.bf16.msra.mxu0 %v273
        %283 = vmatmul.bf16.gmra.mxu0 %v270
        %v284 = vpop.f32.mrf.mxu0
        %v285 = vadd.f32 %v266, %v284
        %v286 = vpop.f32.mrf.mxu0
        %v287 = vadd.f32 %v268, %v286
        %288 = vdwg.mxu0
        %s289 = sadd.s32 3, %s221
        %s290 = smul.addr %s289, 4
        %s291 = scalar_lea.vmem %s184, %s290
        %v292 = vld [vmem:[%s291] sm:$0xf]
        %v293 = vld [vmem:[%s291 + $0x4] sm:$0xf]
        %v296 = vunpack.c.l.b16 %v292
        %v297 = vunpack.c.l.b16 %v293
        %v298 = vpack.c.b16 %v297, %v296
        %v300 = vsel %vm248, %v298, 0
        %v303 = vsel %vm252, %v202, 0
        %305 = vmatpush.bf16.msra.mxu0 0
        %306 = vmatpush.bf16.msra.mxu0 0
        %307 = vmatpush.bf16.msra.mxu0 0
        %308 = vmatpush.bf16.msra.mxu0 0
        %309 = vmatpush.bf16.msra.mxu0 0
        %310 = vmatpush.bf16.msra.mxu0 0
        %311 = vmatpush.bf16.msra.mxu0 0
        %312 = vmatpush.bf16.msra.mxu0 %v303
        %313 = vmatmul.bf16.gmra.mxu0 %v300
        %v314 = vpop.f32.mrf.mxu0
        %v315 = vadd.f32 0.0, %v314
        %v316 = vpop.f32.mrf.mxu0
        %v317 = vadd.f32 0.0, %v316
        %318 = vdwg.mxu0
        %v319 = vadd.f32 %v285, %v315
        %v320 = vadd.f32 %v287, %v317
        %v321 = vld [vmem:[%s291] sm:$0xf]
        %v322 = vld [vmem:[%s291 + $0x4] sm:$0xf]
        %v323 = vld [vmem:[%s291 + $0x8] sm:$0x1]
        %v327 = vunpack.c.l.b16 %v321
        %v328 = vunpack.c.l.b16 %v322
        %v329 = vunpack.c.l.b16 %v323
        %v330 = vpack.c.b16 %v328, %v327
        %v331 = vpack.c.b16 %v329, %v329
        %v333 = vshrl.u32 %v330, 16
        %v335 = vshll.u32 %v330, 16
        %v337 = vrot.slane %v335, 1
        %v338 = vor.u32 %v333, %v337
        %v340 = vshll.u32 %v331, 16
        %v342 = vrot.slane %v340, 1
        %v343 = vsel %vm235, %v338, %v342
        %v345 = vsel %vm248, %v343, 0
        %v348 = vsel %vm252, %v204, 0
        %350 = vmatpush.bf16.msra.mxu0 0
        %351 = vmatpush.bf16.msra.mxu0 0
        %352 = vmatpush.bf16.msra.mxu0 0
        %353 = vmatpush.bf16.msra.mxu0 0
        %354 = vmatpush.bf16.msra.mxu0 0
        %355 = vmatpush.bf16.msra.mxu0 0
        %356 = vmatpush.bf16.msra.mxu0 0
        %357 = vmatpush.bf16.msra.mxu0 %v348
        %358 = vmatmul.bf16.gmra.mxu0 %v345
        %v359 = vpop.f32.mrf.mxu0
        %v360 = vadd.f32 0.0, %v359
        %v361 = vpop.f32.mrf.mxu0
        %v362 = vadd.f32 0.0, %v361
        %363 = vdwg.mxu0
        %v364 = vadd.f32 %v319, %v360
        %v365 = vadd.f32 %v320, %v362
        %s366 = sadd.s32 %s197, 1
        %s367 = sadd.s32 %s366, %s215
        %s368 = smul.u32 %s367, 6
        %s369 = smul.addr %s368, 4
        %s370 = scalar_lea.vmem %s184, %s369
        %v371 = vld [vmem:[%s370] sm:$0xf]
        %v372 = vld [vmem:[%s370 + $0x4] sm:$0xf]
        %v375 = vunpack.c.l.b16 %v371
        %v376 = vunpack.c.l.b16 %v372
        %v377 = vpack.c.b16 %v376, %v375
        %v379 = vsel %vm248, %v377, 0
        %v382 = vsel %vm252, %v206, 0
        %384 = vmatpush.bf16.msra.mxu0 0
        %385 = vmatpush.bf16.msra.mxu0 0
        %386 = vmatpush.bf16.msra.mxu0 0
        %387 = vmatpush.bf16.msra.mxu0 0
        %388 = vmatpush.bf16.msra.mxu0 0
        %389 = vmatpush.bf16.msra.mxu0 0
        %390 = vmatpush.bf16.msra.mxu0 0
        %391 = vmatpush.bf16.msra.mxu0 %v382
        %392 = vmatmul.bf16.gmra.mxu0 %v379
        %v393 = vpop.f32.mrf.mxu0
        %v394 = vadd.f32 0.0, %v393
        %v395 = vpop.f32.mrf.mxu0
        %v396 = vadd.f32 0.0, %v395
        %397 = vdwg.mxu0
        %v398 = vadd.f32 %v364, %v394
        %v399 = vadd.f32 %v365, %v396
        %v400 = vld [vmem:[%s370] sm:$0xf]
        %v401 = vld [vmem:[%s370 + $0x4] sm:$0xf]
        %v402 = vld [vmem:[%s370 + $0x8] sm:$0x1]
        %v406 = vunpack.c.l.b16 %v400
        %v407 = vunpack.c.l.b16 %v401
        %v408 = vunpack.c.l.b16 %v402
        %v409 = vpack.c.b16 %v407, %v406
        %v410 = vpack.c.b16 %v408, %v408
        %v412 = vshrl.u32 %v409, 16
        %v414 = vshll.u32 %v409, 16
        %v416 = vrot.slane %v414, 1
        %v417 = vor.u32 %v412, %v416
        %v419 = vshll.u32 %v410, 16
        %v421 = vrot.slane %v419, 1
        %v422 = vsel %vm235, %v417, %v421
        %v424 = vsel %vm248, %v422, 0
        %v427 = vsel %vm252, %v208, 0
        %429 = vmatpush.bf16.msra.mxu0 0
        %430 = vmatpush.bf16.msra.mxu0 0
        %431 = vmatpush.bf16.msra.mxu0 0
        %432 = vmatpush.bf16.msra.mxu0 0
        %433 = vmatpush.bf16.msra.mxu0 0
        %434 = vmatpush.bf16.msra.mxu0 0
        %435 = vmatpush.bf16.msra.mxu0 0
        %436 = vmatpush.bf16.msra.mxu0 %v427
        %437 = vmatmul.bf16.gmra.mxu0 %v424
        %v438 = vpop.f32.mrf.mxu0
        %v439 = vadd.f32 0.0, %v438
        %v440 = vpop.f32.mrf.mxu0
        %v441 = vadd.f32 0.0, %v440
        %442 = vdwg.mxu0
        %v443 = vadd.f32 %v398, %v439
        %v444 = vadd.f32 %v399, %v441
        %s445 = sadd.s32 3, %s368
        %s446 = smul.addr %s445, 4
        %s447 = scalar_lea.vmem %s184, %s446
        %v448 = vld [vmem:[%s447] sm:$0xf]
        %v449 = vld [vmem:[%s447 + $0x4] sm:$0xf]
        %v452 = vunpack.c.l.b16 %v448
        %v453 = vunpack.c.l.b16 %v449
        %v454 = vpack.c.b16 %v453, %v452
        %v456 = vsel %vm248, %v454, 0
        %v459 = vsel %vm252, %v210, 0
        %461 = vmatpush.bf16.msra.mxu0 0
        %462 = vmatpush.bf16.msra.mxu0 0
        %463 = vmatpush.bf16.msra.mxu0 0
        %464 = vmatpush.bf16.msra.mxu0 0
        %465 = vmatpush.bf16.msra.mxu0 0
        %466 = vmatpush.bf16.msra.mxu0 0
        %467 = vmatpush.bf16.msra.mxu0 0
        %468 = vmatpush.bf16.msra.mxu0 %v459
        %469 = vmatmul.bf16.gmra.mxu0 %v456
        %v470 = vpop.f32.mrf.mxu0
        %v471 = vadd.f32 0.0, %v470
        %v472 = vpop.f32.mrf.mxu0
        %v473 = vadd.f32 0.0, %v472
        %474 = vdwg.mxu0
        %v475 = vadd.f32 %v443, %v471
        %v476 = vadd.f32 %v444, %v473
        %v477 = vld [vmem:[%s447] sm:$0xf]
        %v478 = vld [vmem:[%s447 + $0x4] sm:$0xf]
        %v479 = vld [vmem:[%s447 + $0x8] sm:$0x1]
        %v483 = vunpack.c.l.b16 %v477
        %v484 = vunpack.c.l.b16 %v478
        %v485 = vunpack.c.l.b16 %v479
        %v486 = vpack.c.b16 %v484, %v483
        %v487 = vpack.c.b16 %v485, %v485
        %v489 = vshrl.u32 %v486, 16
        %v491 = vshll.u32 %v486, 16
        %v493 = vrot.slane %v491, 1
        %v494 = vor.u32 %v489, %v493
        %v496 = vshll.u32 %v487, 16
        %v498 = vrot.slane %v496, 1
        %v499 = vsel %vm235, %v494, %v498
        %v501 = vsel %vm248, %v499, 0
        %v504 = vsel %vm252, %v212, 0
        %506 = vmatpush.bf16.msra.mxu0 0
        %507 = vmatpush.bf16.msra.mxu0 0
        %508 = vmatpush.bf16.msra.mxu0 0
        %509 = vmatpush.bf16.msra.mxu0 0
        %510 = vmatpush.bf16.msra.mxu0 0
        %511 = vmatpush.bf16.msra.mxu0 0
        %512 = vmatpush.bf16.msra.mxu0 0
        %513 = vmatpush.bf16.msra.mxu0 %v504
        %514 = vmatmul.bf16.gmra.mxu0 %v501
        %v515 = vpop.f32.mrf.mxu0
        %v516 = vadd.f32 0.0, %v515
        %v517 = vpop.f32.mrf.mxu0
        %v518 = vadd.f32 0.0, %v517
        %519 = vdwg.mxu0
        %v520 = vadd.f32 %v475, %v516
        %v521 = vadd.f32 %v476, %v518
        %v523 = vperm.slane %v213, 0
        %v525 = vadd.f32 %v520, %v523
        %v526 = vadd.f32 %v521, %v523
        %v527 = vmul.f32 %v525, 0.2
        %v528 = vmul.f32 %v526, 0.2
        %v529 = vmax.f32 %v525, %v527
        %v530 = vmax.f32 %v526, %v528
        %v531 = vpack.c.bf16 %v529, %v529
        %v532 = vpack.c.bf16 %v530, %v530
        %s533 = smul.u32 %s215, 2
        %s534 = smul.addr %s533, 4
        %s535 = scalar_lea.vmem %s194, %s534
        %vm536 = vcmask 60416
        %537 = vst.msk [vmem:[%s535] sm:$0xf] %vm536, %v531
        %538 = vst.msk [vmem:[%s535 + $0x4] sm:$0xf] %vm536, %v532
      $region37: #{_lambda_.5} parent=31 // loop_footer
        %s219 = sadd.s32 1, %s215
      $region38: #{_lambda_.5} parent=31 // loop_footer_branch
        %214 = sbr.rel target = $region34
      $region39: #{_lambda_.5} parent=31 // loop_exit
        _
      %s539 = smul.u32 16, %s19
      %p540 = scmp.lt.s32.totalorder %s18, 1
      %s541 = scalar_select %p540, %s18, 1
      %p542 = scmp.lt.s32.totalorder %s539, 15
      %s543 = scalar_select %p542, %s539, 15
      %s544 = smul.addr %s543, 2
      %s545 = smul.addr %s541, 32
      %s546 = sadd.s32 %s544, %s545
      %s547 = smul.addr %s546, 4
      %s548 = scalar_lea.vmem %s3, %s547
      // Predicated region
      $region40: #{_lambda_.5} parent=31 // pred_check
        %p549 = pneg %p114
      $region41: #{_lambda_.5} parent=31 // pred_check_branch
        %551 = sbr.rel (%p549) target = $region43
      $region42: #{_lambda_.5} parent=31 // pred_region
        %s552 = smul.u32 16, %s19
      $region43: #{_lambda_.5} parent=31 // pred_fallthru
        _
    $region32: #{_lambda_.5} parent=5 // pred_fallthru
      _
    %p553 = scmp.le.s32.totalorder 2, %s9
    // Predicated region
    $region44: #{_lambda_.5} parent=5 // pred_check
      %p554 = pneg %p553
    $region45: #{_lambda_.5} parent=5 // pred_check_branch
      %556 = sbr.rel (%p554) target = $region47
    $region46: #{_lambda_.5} parent=5 // pred_region
      %s557 = ssub.s32 %s9, 2
      // Predicated region
      $region48: #{_lambda_.5} parent=46 // pred_check
        %p558 = pneg %p120
      $region49: #{_lambda_.5} parent=46 // pred_check_branch
        %560 = sbr.rel (%p558) target = $region51
      $region50: #{_lambda_.5} parent=46 // pred_region
        %s561 = smul.u32 16, %s21
        %p562 = scmp.lt.s32.totalorder %s20, 1
        %s563 = scalar_select %p562, %s20, 1
        %p564 = scmp.lt.s32.totalorder %s561, 15
        %s565 = scalar_select %p564, %s561, 15
        %s566 = smul.addr %s565, 2
        %s567 = smul.addr %s563, 32
        %s568 = sadd.s32 %s566, %s567
        %s569 = smul.addr %s568, 4
        %s570 = scalar_lea.vmem %s3, %s569
      $region51: #{_lambda_.5} parent=46 // pred_fallthru
        _
    $region47: #{_lambda_.5} parent=5 // pred_fallthru
      _
  $region6: #{_lambda_.5} parent=0 // loop_footer
    %s13 = sadd.s32 1, %s9
  $region7: #{_lambda_.5} parent=0 // loop_footer_branch
    %8 = sbr.rel target = $region3
  $region8: #{_lambda_.5} parent=0 // loop_exit
    _

// kernel: _lambda_.6
$region0: #{_lambda_.6}
  #allocation0 [shape = 'u32[]', space=smem, size = 0x4, offset = 0x4, fixed_abs, tag = 'smem constant byte address 0x4 - core index']
  #allocation1 [shape = 'u32[72,128]{1,0:T(1,128)}', space=vmem, size = 0x9000, scoped, tag = 'internal scratch']
  %s0 = inlined_call_operand.vmem [shape: bf16[2,9,2,9,16], index: 0, kind: input, shape index: {}]
  %s1 = inlined_call_operand.vmem [shape: bf16[8,16,16], index: 1, kind: input, shape index: {}]
  %s2 = inlined_call_operand.vmem [shape: f32[1,16], index: 2, kind: input, shape index: {}]
  %s3 = inlined_call_operand.vmem [shape: bf16[2,8,8,16], index: 3, kind: output, shape index: {}]
  %s4 = sld [smem:[#allocation0]]
  $region52: #{_lambda_.6} parent=0
    _
  %s6 = ssub.s32 1, %s4
  %s7 = scalar_select 0, %s6, %s4
  loop: start=0, step=1, limit=4
  $region2: #{_lambda_.6} parent=0 // loop_pre_header
    _
  $region3: #{_lambda_.6} parent=0 // loop_header
    %s9 = sphi 0, %s13
    %p10 = scmp.ge.s32.totalorder %s9, 4
    %s16 = sphi 0, %s28
    %s17 = sphi 0, %s24
    %s18 = sphi 0, %s16
    %s19 = sphi 0, %s17
    %s20 = sphi 0, %s18
    %s21 = sphi 0, %s19
    %s31 = sphi 0, %s33
    %s34 = sphi 0, %s31
    %s35 = sphi 0, %s34
    %s51 = sphi 0, %s35
    %s55 = sphi 0, %s55
    %s57 = sphi 0, %s55
    %s58 = sphi 0, %s57
    %s72 = sphi 0, %s58
    %s76 = sphi 0, %s76
    %s78 = sphi 0, %s76
    %s79 = sphi 0, %s78
    %s93 = sphi 0, %s79
    %s101 = sphi 0, %s103
    %s104 = sphi 0, %s101
    %s105 = sphi 0, %s104
    %s121 = sphi 0, %s105
  $region4: #{_lambda_.6} parent=0 // loop_header_branch
    %12 = sbr.rel (%p10) target = $region8
  $region5: #{_lambda_.6} parent=0 // loop_body
    %s14 = ssub.s32 %s9, 1
    %s15 = ssub.s32 %s9, 2
    %s22 = sadd.s32 1, %s17
    %p23 = scmp.ge.s32.totalorder %s22, 1
    %s24 = scalar_select %p23, 0, %s22
    %s25 = sadd.s32 1, %s16
    %s26 = scalar_select %p23, %s25, %s16
    %p27 = scmp.ge.s32.totalorder %s26, 2
    %s28 = scalar_select %p27, 0, %s26
    %s29 = ssub.s32 %s16, %s28
    %p30 = scmp.eq.s32.totalorder %s29, 0
    %s32 = sadd.s32 %s31, 1
    %s33 = scalar_select %p30, %s31, %s32
    %p36 = pneg %p30
    %p37 = scmp.eq.s32.totalorder %s9, 1
    %p38 = por %p36, %p37
    %p39 = scmp.ne.s32.totalorder %s31, %s34
    %p40 = scmp.eq.s32.totalorder %s9, 0
    %p41 = por %p39, %p40
    %p42 = scmp.ne.s32.totalorder %s31, %s34
    %p43 = scmp.eq.s32.totalorder %s14, 1
    %p44 = por %p42, %p43
    %p45 = scmp.ne.s32.totalorder %s34, %s35
    %p46 = scmp.eq.s32.totalorder %s14, 0
    %p47 = por %p45, %p46
    %p48 = scmp.ne.s32.totalorder %s34, %s35
    %p49 = scmp.eq.s32.totalorder %s15, 1
    %p50 = por %p48, %p49
    %p52 = scmp.ne.s32.totalorder %s35, %s51
    %p53 = scmp.eq.s32.totalorder %s15, 0
    %p54 = por %p52, %p53
    %s56 = sadd.s32 %s55, 1
    %p59 = scmp.eq.s32.totalorder %s9, 1
    %p60 = scmp.ne.s32.totalorder %s55, %s57
    %p61 = scmp.eq.s32.totalorder %s9, 0
    %p62 = por %p60, %p61
    %p63 = scmp.ne.s32.totalorder %s55, %s57
    %p64 = scmp.eq.s32.totalorder %s14, 1
    %p65 = por %p63, %p64
    %p66 = scmp.ne.s32.totalorder %s57, %s58
    %p67 = scmp.eq.s32.totalorder %s14, 0
    %p68 = por %p66, %p67
    %p69 = scmp.ne.s32.totalorder %s57, %s58
    %p70 = scmp.eq.s32.totalorder %s15, 1
    %p71 = por %p69, %p70
    %p73 = scmp.ne.s32.totalorder %s58, %s72
    %p74 = scmp.eq.s32.totalorder %s15, 0
    %p75 = por %p73, %p74
    %s77 = sadd.s32 %s76, 1
    %p80 = scmp.eq.s32.totalorder %s9, 1
    %p81 = scmp.ne.s32.totalorder %s76, %s78
    %p82 = scmp.eq.s32.totalorder %s9, 0
    %p83 = por %p81, %p82
    %p84 = scmp.ne.s32.totalorder %s76, %s78
    %p85 = scmp.eq.s32.totalorder %s14, 1
    %p86 = por %p84, %p85
    %p87 = scmp.ne.s32.totalorder %s78, %s79
    %p88 = scmp.eq.s32.totalorder %s14, 0
    %p89 = por %p87, %p88
    %p90 = scmp.ne.s32.totalorder %s78, %s79
    %p91 = scmp.eq.s32.totalorder %s15, 1
    %p92 = por %p90, %p91
    %p94 = scmp.ne.s32.totalorder %s79, %s93
    %p95 = scmp.eq.s32.totalorder %s15, 0
    %p96 = por %p94, %p95
    %s97 = ssub.s32 %s16, %s28
    %s98 = ssub.s32 %s17, %s24
    %s99 = sor.u32 %s97, %s98
    %p100 = scmp.eq.s32.totalorder %s99, 0
    %s102 = sadd.s32 %s101, 1
    %s103 = scalar_select %p100, %s101, %s102
    %p106 = pneg %p100
    %p107 = scmp.eq.s32.totalorder %s9, 1
    %p108 = por %p106, %p107
    %p109 = scmp.ne.s32.totalorder %s101, %s104
    %p110 = scmp.eq.s32.totalorder %s9, 0
    %p111 = por %p109, %p110
    %p112 = scmp.ne.s32.totalorder %s101, %s104
    %p113 = scmp.eq.s32.totalorder %s14, 1
    %p114 = por %p112, %p113
    %p115 = scmp.ne.s32.totalorder %s104, %s105
    %p116 = scmp.eq.s32.totalorder %s14, 0
    %p117 = por %p115, %p116
    %p118 = scmp.ne.s32.totalorder %s104, %s105
    %p119 = scmp.eq.s32.totalorder %s15, 1
    %p120 = por %p118, %p119
    %p122 = scmp.ne.s32.totalorder %s105, %s121
    %p123 = scmp.eq.s32.totalorder %s15, 0
    %p124 = por %p122, %p123
    %p125 = scmp.le.s32.totalorder 1, %s9
    %p126 = scmp.lt.s32.totalorder %s9, 3
    %p127 = pnand %p125, %p126
    %p128 = pneg %p127
    // Predicated region
    $region9: #{_lambda_.6} parent=5 // pred_check
      _
    $region10: #{_lambda_.6} parent=5 // pred_check_branch
      %130 = sbr.rel (%p127) target = $region12
    $region11: #{_lambda_.6} parent=5 // pred_region
      %s131 = ssub.s32 %s9, 1
      // Predicated region
      $region13: #{_lambda_.6} parent=11 // pred_check
        %p132 = pneg %p68
      $region14: #{_lambda_.6} parent=11 // pred_check_branch
        %134 = sbr.rel (%p132) target = $region16
      $region15: #{_lambda_.6} parent=11 // pred_region
        _
      $region16: #{_lambda_.6} parent=11 // pred_fallthru
        _
      // Predicated region
      $region17: #{_lambda_.6} parent=11 // pred_check
        %p135 = pneg %p89
      $region18: #{_lambda_.6} parent=11 // pred_check_branch
        %137 = sbr.rel (%p135) target = $region20
      $region19: #{_lambda_.6} parent=11 // pred_region
        _
      $region20: #{_lambda_.6} parent=11 // pred_fallthru
        _
    $region12: #{_lambda_.6} parent=5 // pred_fallthru
      _
    %p138 = scmp.lt.s32.totalorder %s9, 2
    // Predicated region
    $region21: #{_lambda_.6} parent=5 // pred_check
      %p139 = pneg %p138
    $region22: #{_lambda_.6} parent=5 // pred_check_branch
      %141 = sbr.rel (%p139) target = $region24
    $region23: #{_lambda_.6} parent=5 // pred_region
      // Predicated region
      $region25: #{_lambda_.6} parent=23 // pred_check
        %p142 = pneg %p41
      $region26: #{_lambda_.6} parent=23 // pred_check_branch
        %144 = sbr.rel (%p142) target = $region28
      $region27: #{_lambda_.6} parent=23 // pred_region
        %p145 = scmp.lt.s32.totalorder %s16, 1
        %s146 = scalar_select %p145, %s16, 1
        %s147 = smul.addr %s146, 36
        %s148 = smul.addr %s147, 4
        %s149 = scalar_lea.vmem %s0, %s148
      $region28: #{_lambda_.6} parent=23 // pred_fallthru
        _
    $region24: #{_lambda_.6} parent=5 // pred_fallthru
      _
    %p150 = scmp.le.s32.totalorder 1, %s9
    %p151 = scmp.lt.s32.totalorder %s9, 3
    %p152 = pnand %p150, %p151
    %p153 = pneg %p152
    // Predicated region
    $region29: #{_lambda_.6} parent=5 // pred_check
      _
    $region30: #{_lambda_.6} parent=5 // pred_check_branch
      %155 = sbr.rel (%p152) target = $region32
    $region31: #{_lambda_.6} parent=5 // pred_region
      %s156 = ssub.s32 %s9, 1
      %p157 = scmp.lt.s32.totalorder %s18, 1
      %s158 = scalar_select %p157, %s18, 1
      %s159 = smul.addr %s158, 36
      %s160 = smul.addr %s159, 4
      %s161 = scalar_lea.vmem %s0, %s160
      %p162 = pneg %p47
      %p163 = pneg %p44
      %p164 = pneg %p68
      %p165 = pneg %p65
      %p166 = pneg %p89
      %p167 = pneg %p86
      %p168 = pneg %p117
      %p169 = pneg %p114
      %s170 = smul.u32 8, %s19
      %p171 = scmp.lt.s32.totalorder %s18, 1
      %s172 = scalar_select %p171, %s18, 1
      %p173 = scmp.lt.s32.totalorder %s170, 7
      %s174 = scalar_select %p173, %s170, 7
      %s175 = smul.addr %s172, 8
      %s176 = sadd.s32 %s174, %s175
      %s177 = smul.addr %s176, 4
      %s178 = scalar_lea.vmem %s3, %s177
      %p179 = scmp.lt.s32.totalorder %s18, 1
      %s180 = scalar_select %p179, %s18, 1
      %s181 = smul.addr %s180, 36
      %s182 = smul.addr %s181, 4
      %s183 = scalar_lea.vmem %s0, %s182
      %s184 = smul.u32 8, %s19
      %p185 = scmp.lt.s32.totalorder %s18, 1
      %s186 = scalar_select %p185, %s18, 1
      %p187 = scmp.lt.s32.totalorder %s184, 7
      %s188 = scalar_select %p187, %s184, 7
      %s189 = smul.addr %s186, 8
      %s190 = sadd.s32 %s188, %s189
      %s191 = smul.addr %s190, 4
      %s192 = scalar_lea.vmem %s3, %s191
      %s193 = smul.u32 8, %s19
      %s195 = smul.u32 %s19, 8
      %v196 = vld [vmem:[%s1] sm:$0xf]
      %v197 = vld [vmem:[%s1 + $0x4] sm:$0xf]
      %s198 = scalar_lea.vmem %s1, 8
      %v199 = vld [vmem:[%s198] sm:$0xf]
      %v200 = vld [vmem:[%s198 + $0x4] sm:$0xf]
      %s201 = scalar_lea.vmem %s1, 16
      %v202 = vld [vmem:[%s201] sm:$0xf]
      %v203 = vld [vmem:[%s201 + $0x4] sm:$0xf]
      %s204 = scalar_lea.vmem %s1, 24
      %v205 = vld [vmem:[%s204] sm:$0xf]
      %v206 = vld [vmem:[%s204 + $0x4] sm:$0xf]
      %s207 = scalar_lea.vmem %s1, 32
      %v208 = vld [vmem:[%s207] sm:$0xf]
      %v209 = vld [vmem:[%s207 + $0x4] sm:$0xf]
      %s210 = scalar_lea.vmem %s1, 40
      %v211 = vld [vmem:[%s210] sm:$0xf]
      %v212 = vld [vmem:[%s210 + $0x4] sm:$0xf]
      %s213 = scalar_lea.vmem %s1, 48
      %v214 = vld [vmem:[%s213] sm:$0xf]
      %v215 = vld [vmem:[%s213 + $0x4] sm:$0xf]
      %s216 = scalar_lea.vmem %s1, 56
      %v217 = vld [vmem:[%s216] sm:$0xf]
      %v218 = vld [vmem:[%s216 + $0x4] sm:$0xf]
      %v219 = vld [vmem:[%s2] sm:$0x1]
      loop: start=0, step=1, limit=8
      $region33: #{_lambda_.6} parent=31 // loop_pre_header
        _
      $region34: #{_lambda_.6} parent=31 // loop_header
        %s221 = sphi 0, %s225
        %p222 = scmp.ge.s32.totalorder %s221, 8
      $region35: #{_lambda_.6} parent=31 // loop_header_branch
        %224 = sbr.rel (%p222) target = $region39
      $region36: #{_lambda_.6} parent=31 // loop_body
        %s226 = sadd.s32 %s195, %s221
        %s227 = smul.u32 %s226, 4
        %s228 = smul.addr %s227, 4
        %s229 = scalar_lea.vmem %s183, %s228
        %v230 = vld [vmem:[%s229] sm:$0xf]
        %v231 = vld [vmem:[%s229 + $0x4] sm:$0x1]
        %v234 = vunpack.c.l.b16 %v230
        %v235 = vunpack.c.l.b16 %v231
        %v236 = vpack.c.b16 %v235, %v234
        %v238 = vshrl.u32 %v236, 16
        %v240 = vshll.u32 %v236, 16
        %v242 = vrot.slane %v240, 1
        %v243 = vor.u32 %v238, %v242
        %v246 = vunpack.c.l.b16 %v199
        %v247 = vunpack.c.l.b16 %v200
        %v248 = vpack.c.b16 %v247, %v246
        %vm250 = vcmask 130048
        %v252 = vsel %vm250, %v243, 0
        %254 = vmatpush.bf16.msra.mxu0 0
        %255 = vmatpush.bf16.msra.mxu0 0
        %256 = vmatpush.bf16.msra.mxu0 0
        %257 = vmatpush.bf16.msra.mxu0 0
        %258 = vmatpush.bf16.msra.mxu0 0
        %259 = vmatpush.bf16.msra.mxu0 0
        %260 = vmatpush.bf16.msra.mxu0 0
        %261 = vmatpush.bf16.msra.mxu0 %v248
        %262 = vmatmul.bf16.gmra.mxu0 %v252
        %v263 = vpop.f32.mrf.mxu0
        %v264 = vadd.f32 0.0, %v263
        %v265 = vpop.f32.mrf.mxu0
        %266 = vdwg.mxu0
        %v269 = vunpack.c.l.b16 %v196
        %v270 = vunpack.c.l.b16 %v197
        %v271 = vpack.c.b16 %v270, %v269
        %v274 = vsel %vm250, %v230, 0
        %276 = vmatpush.bf16.msra.mxu0 0
        %277 = vmatpush.bf16.msra.mxu0 0
        %278 = vmatpush.bf16.msra.mxu0 0
        %279 = vmatpush.bf16.msra.mxu0 0
        %280 = vmatpush.bf16.msra.mxu0 0
        %281 = vmatpush.bf16.msra.mxu0 0
        %282 = vmatpush.bf16.msra.mxu0 0
        %283 = vmatpush.bf16.msra.mxu0 %v271
        %284 = vmatmul.bf16.gmra.mxu0 %v274
        %v285 = vpop.f32.mrf.mxu0
        %v286 = vadd.f32 %v264, %v285
        %v287 = vpop.f32.mrf.mxu0
        %288 = vdwg.mxu0
        %s289 = sadd.s32 2, %s227
        %s290 = smul.addr %s289, 4
        %s291 = scalar_lea.vmem %s183, %s290
        %v292 = vld [vmem:[%s291] sm:$0xf]
        %v295 = vunpack.c.l.b16 %v202
        %v296 = vunpack.c.l.b16 %v203
        %v297 = vpack.c.b16 %v296, %v295
        %v300 = vsel %vm250, %v292, 0
        %302 = vmatpush.bf16.msra.mxu0 0
        %303 = vmatpush.bf16.msra.mxu0 0
        %304 = vmatpush.bf16.msra.mxu0 0
        %305 = vmatpush.bf16.msra.mxu0 0
        %306 = vmatpush.bf16.msra.mxu0 0
        %307 = vmatpush.bf16.msra.mxu0 0
        %308 = vmatpush.bf16.msra.mxu0 0
        %309 = vmatpush.bf16.msra.mxu0 %v297
        %310 = vmatmul.bf16.gmra.mxu0 %v300
        %v311 = vpop.f32.mrf.mxu0
        %v312 = vadd.f32 0.0, %v311
        %v313 = vpop.f32.mrf.mxu0
        %314 = vdwg.mxu0
        %v315 = vadd.f32 %v286, %v312
        %v316 = vld [vmem:[%s291] sm:$0xf]
        %v317 = vld [vmem:[%s291 + $0x4] sm:$0x1]
        %v320 = vunpack.c.l.b16 %v316
        %v321 = vunpack.c.l.b16 %v317
        %v322 = vpack.c.b16 %v321, %v320
        %v324 = vshrl.u32 %v322, 16
        %v326 = vshll.u32 %v322, 16
        %v328 = vrot.slane %v326, 1
        %v329 = vor.u32 %v324, %v328
        %v332 = vunpack.c.l.b16 %v205
        %v333 = vunpack.c.l.b16 %v206
        %v334 = vpack.c.b16 %v333, %v332
        %v337 = vsel %vm250, %v329, 0
        %339 = vmatpush.bf16.msra.mxu0 0
        %340 = vmatpush.bf16.msra.mxu0 0
        %341 = vmatpush.bf16.msra.mxu0 0
        %342 = vmatpush.bf16.msra.mxu0 0
        %343 = vmatpush.bf16.msra.mxu0 0
        %344 = vmatpush.bf16.msra.mxu0 0
        %345 = vmatpush.bf16.msra.mxu0 0
        %346 = vmatpush.bf16.msra.mxu0 %v334
        %347 = vmatmul.bf16.gmra.mxu0 %v337
        %v348 = vpop.f32.mrf.mxu0
        %v349 = vadd.f32 0.0, %v348
        %v350 = vpop.f32.mrf.mxu0
        %351 = vdwg.mxu0
        %v352 = vadd.f32 %v315, %v349
        %s353 = sadd.s32 %s195, 1
        %s354 = sadd.s32 %s353, %s221
        %s355 = smul.u32 %s354, 4
        %s356 = smul.addr %s355, 4
        %s357 = scalar_lea.vmem %s183, %s356
        %v358 = vld [vmem:[%s357] sm:$0xf]
        %v361 = vunpack.c.l.b16 %v208
        %v362 = vunpack.c.l.b16 %v209
        %v363 = vpack.c.b16 %v362, %v361
        %v366 = vsel %vm250, %v358, 0
        %368 = vmatpush.bf16.msra.mxu0 0
        %369 = vmatpush.bf16.msra.mxu0 0
        %370 = vmatpush.bf16.msra.mxu0 0
        %371 = vmatpush.bf16.msra.mxu0 0
        %372 = vmatpush.bf16.msra.mxu0 0
        %373 = vmatpush.bf16.msra.mxu0 0
        %374 = vmatpush.bf16.msra.mxu0 0
        %375 = vmatpush.bf16.msra.mxu0 %v363
        %376 = vmatmul.bf16.gmra.mxu0 %v366
        %v377 = vpop.f32.mrf.mxu0
        %v378 = vadd.f32 0.0, %v377
        %v379 = vpop.f32.mrf.mxu0
        %380 = vdwg.mxu0
        %v381 = vadd.f32 %v352, %v378
        %v382 = vld [vmem:[%s357] sm:$0xf]
        %v383 = vld [vmem:[%s357 + $0x4] sm:$0x1]
        %v386 = vunpack.c.l.b16 %v382
        %v387 = vunpack.c.l.b16 %v383
        %v388 = vpack.c.b16 %v387, %v386
        %v390 = vshrl.u32 %v388, 16
        %v392 = vshll.u32 %v388, 16
        %v394 = vrot.slane %v392, 1
        %v395 = vor.u32 %v390, %v394
        %v398 = vunpack.c.l.b16 %v211
        %v399 = vunpack.c.l.b16 %v212
        %v400 = vpack.c.b16 %v399, %v398
        %v403 = vsel %vm250, %v395, 0
        %405 = vmatpush.bf16.msra.mxu0 0
        %406 = vmatpush.bf16.msra.mxu0 0
        %407 = vmatpush.bf16.msra.mxu0 0
        %408 = vmatpush.bf16.msra.mxu0 0
        %409 = vmatpush.bf16.msra.mxu0 0
        %410 = vmatpush.bf16.msra.mxu0 0
        %411 = vmatpush.bf16.msra.mxu0 0
        %412 = vmatpush.bf16.msra.mxu0 %v400
        %413 = vmatmul.bf16.gmra.mxu0 %v403
        %v414 = vpop.f32.mrf.mxu0
        %v415 = vadd.f32 0.0, %v414
        %v416 = vpop.f32.mrf.mxu0
        %417 = vdwg.mxu0
        %v418 = vadd.f32 %v381, %v415
        %s419 = sadd.s32 2, %s355
        %s420 = smul.addr %s419, 4
        %s421 = scalar_lea.vmem %s183, %s420
        %v422 = vld [vmem:[%s421] sm:$0xf]
        %v425 = vunpack.c.l.b16 %v214
        %v426 = vunpack.c.l.b16 %v215
        %v427 = vpack.c.b16 %v426, %v425
        %v430 = vsel %vm250, %v422, 0
        %432 = vmatpush.bf16.msra.mxu0 0
        %433 = vmatpush.bf16.msra.mxu0 0
        %434 = vmatpush.bf16.msra.mxu0 0
        %435 = vmatpush.bf16.msra.mxu0 0
        %436 = vmatpush.bf16.msra.mxu0 0
        %437 = vmatpush.bf16.msra.mxu0 0
        %438 = vmatpush.bf16.msra.mxu0 0
        %439 = vmatpush.bf16.msra.mxu0 %v427
        %440 = vmatmul.bf16.gmra.mxu0 %v430
        %v441 = vpop.f32.mrf.mxu0
        %v442 = vadd.f32 0.0, %v441
        %v443 = vpop.f32.mrf.mxu0
        %444 = vdwg.mxu0
        %v445 = vadd.f32 %v418, %v442
        %v446 = vld [vmem:[%s421] sm:$0xf]
        %v447 = vld [vmem:[%s421 + $0x4] sm:$0x1]
        %v450 = vunpack.c.l.b16 %v446
        %v451 = vunpack.c.l.b16 %v447
        %v452 = vpack.c.b16 %v451, %v450
        %v454 = vshrl.u32 %v452, 16
        %v456 = vshll.u32 %v452, 16
        %v458 = vrot.slane %v456, 1
        %v459 = vor.u32 %v454, %v458
        %v462 = vunpack.c.l.b16 %v217
        %v463 = vunpack.c.l.b16 %v218
        %v464 = vpack.c.b16 %v463, %v462
        %v467 = vsel %vm250, %v459, 0
        %469 = vmatpush.bf16.msra.mxu0 0
        %470 = vmatpush.bf16.msra.mxu0 0
        %471 = vmatpush.bf16.msra.mxu0 0
        %472 = vmatpush.bf16.msra.mxu0 0
        %473 = vmatpush.bf16.msra.mxu0 0
        %474 = vmatpush.bf16.msra.mxu0 0
        %475 = vmatpush.bf16.msra.mxu0 0
        %476 = vmatpush.bf16.msra.mxu0 %v464
        %477 = vmatmul.bf16.gmra.mxu0 %v467
        %v478 = vpop.f32.mrf.mxu0
        %v479 = vadd.f32 0.0, %v478
        %v480 = vpop.f32.mrf.mxu0
        %481 = vdwg.mxu0
        %v482 = vadd.f32 %v445, %v479
        %v484 = vperm.slane %v219, 0
        %v486 = vadd.f32 %v482, %v484
        %v487 = vmul.f32 %v486, 0.2
        %v488 = vmax.f32 %v486, %v487
        %v489 = vpack.c.bf16 %v488, %v488
        %s490 = smul.addr %s221, 4
        %s491 = scalar_lea.vmem %s192, %s490
        %vm492 = vcmask 125952
        %493 = vst.msk [vmem:[%s491] sm:$0xf] %vm492, %v489
      $region37: #{_lambda_.6} parent=31 // loop_footer
        %s225 = sadd.s32 1, %s221
      $region38: #{_lambda_.6} parent=31 // loop_footer_branch
        %220 = sbr.rel target = $region34
      $region39: #{_lambda_.6} parent=31 // loop_exit
        _
      %s494 = smul.u32 8, %s19
      %p495 = scmp.lt.s32.totalorder %s18, 1
      %s496 = scalar_select %p495, %s18, 1
      %p497 = scmp.lt.s32.totalorder %s494, 7
      %s498 = scalar_select %p497, %s494, 7
      %s499 = smul.addr %s496, 8
      %s500 = sadd.s32 %s498, %s499
      %s501 = smul.addr %s500, 4
      %s502 = scalar_lea.vmem %s3, %s501
      // Predicated region
      $region40: #{_lambda_.6} parent=31 // pred_check
        %p503 = pneg %p114
      $region41: #{_lambda_.6} parent=31 // pred_check_branch
        %505 = sbr.rel (%p503) target = $region43
      $region42: #{_lambda_.6} parent=31 // pred_region
        %s506 = smul.u32 8, %s19
      $region43: #{_lambda_.6} parent=31 // pred_fallthru
        _
    $region32: #{_lambda_.6} parent=5 // pred_fallthru
      _
    %p507 = scmp.le.s32.totalorder 2, %s9
    // Predicated region
    $region44: #{_lambda_.6} parent=5 // pred_check
      %p508 = pneg %p507
    $region45: #{_lambda_.6} parent=5 // pred_check_branch
      %510 = sbr.rel (%p508) target = $region47
    $region46: #{_lambda_.6} parent=5 // pred_region
      %s511 = ssub.s32 %s9, 2
      // Predicated region
      $region48: #{_lambda_.6} parent=46 // pred_check
        %p512 = pneg %p120
      $region49: #{_lambda_.6} parent=46 // pred_check_branch
        %514 = sbr.rel (%p512) target = $region51
      $region50: #{_lambda_.6} parent=46 // pred_region
        %s515 = smul.u32 8, %s21
        %p516 = scmp.lt.s32.totalorder %s20, 1
        %s517 = scalar_select %p516, %s20, 1
        %p518 = scmp.lt.s32.totalorder %s515, 7
        %s519 = scalar_select %p518, %s515, 7
        %s520 = smul.addr %s517, 8
        %s521 = sadd.s32 %s519, %s520
        %s522 = smul.addr %s521, 4
        %s523 = scalar_lea.vmem %s3, %s522
      $region51: #{_lambda_.6} parent=46 // pred_fallthru
        _
    $region47: #{_lambda_.6} parent=5 // pred_fallthru
      _
  $region6: #{_lambda_.6} parent=0 // loop_footer
    %s13 = sadd.s32 1, %s9
  $region7: #{_lambda_.6} parent=0 // loop_footer_branch
    %8 = sbr.rel target = $region3
  $region8: #{_lambda_.6} parent=0 // loop_exit
    _

// kernel: _lambda_.7
$region0: #{_lambda_.7}
  #allocation0 [shape = 'u32[]', space=smem, size = 0x4, offset = 0x4, fixed_abs, tag = 'smem constant byte address 0x4 - core index']
  #allocation1 [shape = 'u32[72,128]{1,0:T(1,128)}', space=vmem, size = 0x9000, scoped, tag = 'internal scratch']
  %s0 = inlined_call_operand.vmem [shape: bf16[2,5,2,5,32], index: 0, kind: input, shape index: {}]
  %s1 = inlined_call_operand.vmem [shape: bf16[8,32,32], index: 1, kind: input, shape index: {}]
  %s2 = inlined_call_operand.vmem [shape: f32[1,32], index: 2, kind: input, shape index: {}]
  %s3 = inlined_call_operand.vmem [shape: bf16[2,4,4,32], index: 3, kind: output, shape index: {}]
  %s4 = sld [smem:[#allocation0]]
  $region52: #{_lambda_.7} parent=0
    _
  %s6 = ssub.s32 1, %s4
  %s7 = scalar_select 0, %s6, %s4
  loop: start=0, step=1, limit=4
  $region2: #{_lambda_.7} parent=0 // loop_pre_header
    _
  $region3: #{_lambda_.7} parent=0 // loop_header
    %s9 = sphi 0, %s13
    %p10 = scmp.ge.s32.totalorder %s9, 4
    %s16 = sphi 0, %s28
    %s17 = sphi 0, %s24
    %s18 = sphi 0, %s16
    %s19 = sphi 0, %s17
    %s20 = sphi 0, %s18
    %s21 = sphi 0, %s19
    %s31 = sphi 0, %s33
    %s34 = sphi 0, %s31
    %s35 = sphi 0, %s34
    %s51 = sphi 0, %s35
    %s55 = sphi 0, %s55
    %s57 = sphi 0, %s55
    %s58 = sphi 0, %s57
    %s72 = sphi 0, %s58
    %s76 = sphi 0, %s76
    %s78 = sphi 0, %s76
    %s79 = sphi 0, %s78
    %s93 = sphi 0, %s79
    %s101 = sphi 0, %s103
    %s104 = sphi 0, %s101
    %s105 = sphi 0, %s104
    %s121 = sphi 0, %s105
  $region4: #{_lambda_.7} parent=0 // loop_header_branch
    %12 = sbr.rel (%p10) target = $region8
  $region5: #{_lambda_.7} parent=0 // loop_body
    %s14 = ssub.s32 %s9, 1
    %s15 = ssub.s32 %s9, 2
    %s22 = sadd.s32 1, %s17
    %p23 = scmp.ge.s32.totalorder %s22, 1
    %s24 = scalar_select %p23, 0, %s22
    %s25 = sadd.s32 1, %s16
    %s26 = scalar_select %p23, %s25, %s16
    %p27 = scmp.ge.s32.totalorder %s26, 2
    %s28 = scalar_select %p27, 0, %s26
    %s29 = ssub.s32 %s16, %s28
    %p30 = scmp.eq.s32.totalorder %s29, 0
    %s32 = sadd.s32 %s31, 1
    %s33 = scalar_select %p30, %s31, %s32
    %p36 = pneg %p30
    %p37 = scmp.eq.s32.totalorder %s9, 1
    %p38 = por %p36, %p37
    %p39 = scmp.ne.s32.totalorder %s31, %s34
    %p40 = scmp.eq.s32.totalorder %s9, 0
    %p41 = por %p39, %p40
    %p42 = scmp.ne.s32.totalorder %s31, %s34
    %p43 = scmp.eq.s32.totalorder %s14, 1
    %p44 = por %p42, %p43
    %p45 = scmp.ne.s32.totalorder %s34, %s35
    %p46 = scmp.eq.s32.totalorder %s14, 0
    %p47 = por %p45, %p46
    %p48 = scmp.ne.s32.totalorder %s34, %s35
    %p49 = scmp.eq.s32.totalorder %s15, 1
    %p50 = por %p48, %p49
    %p52 = scmp.ne.s32.totalorder %s35, %s51
    %p53 = scmp.eq.s32.totalorder %s15, 0
    %p54 = por %p52, %p53
    %s56 = sadd.s32 %s55, 1
    %p59 = scmp.eq.s32.totalorder %s9, 1
    %p60 = scmp.ne.s32.totalorder %s55, %s57
    %p61 = scmp.eq.s32.totalorder %s9, 0
    %p62 = por %p60, %p61
    %p63 = scmp.ne.s32.totalorder %s55, %s57
    %p64 = scmp.eq.s32.totalorder %s14, 1
    %p65 = por %p63, %p64
    %p66 = scmp.ne.s32.totalorder %s57, %s58
    %p67 = scmp.eq.s32.totalorder %s14, 0
    %p68 = por %p66, %p67
    %p69 = scmp.ne.s32.totalorder %s57, %s58
    %p70 = scmp.eq.s32.totalorder %s15, 1
    %p71 = por %p69, %p70
    %p73 = scmp.ne.s32.totalorder %s58, %s72
    %p74 = scmp.eq.s32.totalorder %s15, 0
    %p75 = por %p73, %p74
    %s77 = sadd.s32 %s76, 1
    %p80 = scmp.eq.s32.totalorder %s9, 1
    %p81 = scmp.ne.s32.totalorder %s76, %s78
    %p82 = scmp.eq.s32.totalorder %s9, 0
    %p83 = por %p81, %p82
    %p84 = scmp.ne.s32.totalorder %s76, %s78
    %p85 = scmp.eq.s32.totalorder %s14, 1
    %p86 = por %p84, %p85
    %p87 = scmp.ne.s32.totalorder %s78, %s79
    %p88 = scmp.eq.s32.totalorder %s14, 0
    %p89 = por %p87, %p88
    %p90 = scmp.ne.s32.totalorder %s78, %s79
    %p91 = scmp.eq.s32.totalorder %s15, 1
    %p92 = por %p90, %p91
    %p94 = scmp.ne.s32.totalorder %s79, %s93
    %p95 = scmp.eq.s32.totalorder %s15, 0
    %p96 = por %p94, %p95
    %s97 = ssub.s32 %s16, %s28
    %s98 = ssub.s32 %s17, %s24
    %s99 = sor.u32 %s97, %s98
    %p100 = scmp.eq.s32.totalorder %s99, 0
    %s102 = sadd.s32 %s101, 1
    %s103 = scalar_select %p100, %s101, %s102
    %p106 = pneg %p100
    %p107 = scmp.eq.s32.totalorder %s9, 1
    %p108 = por %p106, %p107
    %p109 = scmp.ne.s32.totalorder %s101, %s104
    %p110 = scmp.eq.s32.totalorder %s9, 0
    %p111 = por %p109, %p110
    %p112 = scmp.ne.s32.totalorder %s101, %s104
    %p113 = scmp.eq.s32.totalorder %s14, 1
    %p114 = por %p112, %p113
    %p115 = scmp.ne.s32.totalorder %s104, %s105
    %p116 = scmp.eq.s32.totalorder %s14, 0
    %p117 = por %p115, %p116
    %p118 = scmp.ne.s32.totalorder %s104, %s105
    %p119 = scmp.eq.s32.totalorder %s15, 1
    %p120 = por %p118, %p119
    %p122 = scmp.ne.s32.totalorder %s105, %s121
    %p123 = scmp.eq.s32.totalorder %s15, 0
    %p124 = por %p122, %p123
    %p125 = scmp.le.s32.totalorder 1, %s9
    %p126 = scmp.lt.s32.totalorder %s9, 3
    %p127 = pnand %p125, %p126
    %p128 = pneg %p127
    // Predicated region
    $region9: #{_lambda_.7} parent=5 // pred_check
      _
    $region10: #{_lambda_.7} parent=5 // pred_check_branch
      %130 = sbr.rel (%p127) target = $region12
    $region11: #{_lambda_.7} parent=5 // pred_region
      %s131 = ssub.s32 %s9, 1
      // Predicated region
      $region13: #{_lambda_.7} parent=11 // pred_check
        %p132 = pneg %p68
      $region14: #{_lambda_.7} parent=11 // pred_check_branch
        %134 = sbr.rel (%p132) target = $region16
      $region15: #{_lambda_.7} parent=11 // pred_region
        _
      $region16: #{_lambda_.7} parent=11 // pred_fallthru
        _
      // Predicated region
      $region17: #{_lambda_.7} parent=11 // pred_check
        %p135 = pneg %p89
      $region18: #{_lambda_.7} parent=11 // pred_check_branch
        %137 = sbr.rel (%p135) target = $region20
      $region19: #{_lambda_.7} parent=11 // pred_region
        _
      $region20: #{_lambda_.7} parent=11 // pred_fallthru
        _
    $region12: #{_lambda_.7} parent=5 // pred_fallthru
      _
    %p138 = scmp.lt.s32.totalorder %s9, 2
    // Predicated region
    $region21: #{_lambda_.7} parent=5 // pred_check
      %p139 = pneg %p138
    $region22: #{_lambda_.7} parent=5 // pred_check_branch
      %141 = sbr.rel (%p139) target = $region24
    $region23: #{_lambda_.7} parent=5 // pred_region
      // Predicated region
      $region25: #{_lambda_.7} parent=23 // pred_check
        %p142 = pneg %p41
      $region26: #{_lambda_.7} parent=23 // pred_check_branch
        %144 = sbr.rel (%p142) target = $region28
      $region27: #{_lambda_.7} parent=23 // pred_region
        %p145 = scmp.lt.s32.totalorder %s16, 1
        %s146 = scalar_select %p145, %s16, 1
        %s147 = smul.addr %s146, 10
        %s148 = smul.addr %s147, 4
        %s149 = scalar_lea.vmem %s0, %s148
      $region28: #{_lambda_.7} parent=23 // pred_fallthru
        _
    $region24: #{_lambda_.7} parent=5 // pred_fallthru
      _
    %p150 = scmp.le.s32.totalorder 1, %s9
    %p151 = scmp.lt.s32.totalorder %s9, 3
    %p152 = pnand %p150, %p151
    %p153 = pneg %p152
    // Predicated region
    $region29: #{_lambda_.7} parent=5 // pred_check
      _
    $region30: #{_lambda_.7} parent=5 // pred_check_branch
      %155 = sbr.rel (%p152) target = $region32
    $region31: #{_lambda_.7} parent=5 // pred_region
      %s156 = ssub.s32 %s9, 1
      %p157 = scmp.lt.s32.totalorder %s18, 1
      %s158 = scalar_select %p157, %s18, 1
      %s159 = smul.addr %s158, 10
      %s160 = smul.addr %s159, 4
      %s161 = scalar_lea.vmem %s0, %s160
      %p162 = pneg %p47
      %p163 = pneg %p44
      %p164 = pneg %p68
      %p165 = pneg %p65
      %p166 = pneg %p89
      %p167 = pneg %p86
      %p168 = pneg %p117
      %p169 = pneg %p114
      %s170 = smul.u32 4, %s19
      %p171 = scmp.lt.s32.totalorder %s18, 1
      %s172 = scalar_select %p171, %s18, 1
      %p173 = scmp.lt.s32.totalorder %s170, 3
      %s174 = scalar_select %p173, %s170, 3
      %s175 = smul.addr %s172, 4
      %s176 = sadd.s32 %s174, %s175
      %s177 = smul.addr %s176, 2
      %s178 = scalar_lea.vmem %s3, %s177
      %p179 = scmp.lt.s32.totalorder %s18, 1
      %s180 = scalar_select %p179, %s18, 1
      %s181 = smul.addr %s180, 10
      %s182 = smul.addr %s181, 4
      %s183 = scalar_lea.vmem %s0, %s182
      %s184 = smul.u32 4, %s19
      %p185 = scmp.lt.s32.totalorder %s18, 1
      %s186 = scalar_select %p185, %s18, 1
      %p187 = scmp.lt.s32.totalorder %s184, 3
      %s188 = scalar_select %p187, %s184, 3
      %s189 = smul.addr %s186, 4
      %s190 = sadd.s32 %s188, %s189
      %s191 = smul.addr %s190, 2
      %s192 = scalar_lea.vmem %s3, %s191
      %s193 = smul.u32 4, %s19
      %s195 = smul.u32 %s19, 4
      %v196 = vld [vmem:[%s1] sm:$0xf]
      %v197 = vld [vmem:[%s1 + $0x4] sm:$0xf]
      %v198 = vld [vmem:[%s1 + $0x8] sm:$0xf]
      %v199 = vld [vmem:[%s1 + $0xc] sm:$0xf]
      %s200 = scalar_lea.vmem %s1, 16
      %v201 = vld [vmem:[%s200] sm:$0xf]
      %v202 = vld [vmem:[%s200 + $0x4] sm:$0xf]
      %v203 = vld [vmem:[%s200 + $0x8] sm:$0xf]
      %v204 = vld [vmem:[%s200 + $0xc] sm:$0xf]
      %s205 = scalar_lea.vmem %s1, 32
      %v206 = vld [vmem:[%s205] sm:$0xf]
      %v207 = vld [vmem:[%s205 + $0x4] sm:$0xf]
      %v208 = vld [vmem:[%s205 + $0x8] sm:$0xf]
      %v209 = vld [vmem:[%s205 + $0xc] sm:$0xf]
      %s210 = scalar_lea.vmem %s1, 48
      %v211 = vld [vmem:[%s210] sm:$0xf]
      %v212 = vld [vmem:[%s210 + $0x4] sm:$0xf]
      %v213 = vld [vmem:[%s210 + $0x8] sm:$0xf]
      %v214 = vld [vmem:[%s210 + $0xc] sm:$0xf]
      %s215 = scalar_lea.vmem %s1, 64
      %v216 = vld [vmem:[%s215] sm:$0xf]
      %v217 = vld [vmem:[%s215 + $0x4] sm:$0xf]
      %v218 = vld [vmem:[%s215 + $0x8] sm:$0xf]
      %v219 = vld [vmem:[%s215 + $0xc] sm:$0xf]
      %s220 = scalar_lea.vmem %s1, 80
      %v221 = vld [vmem:[%s220] sm:$0xf]
      %v222 = vld [vmem:[%s220 + $0x4] sm:$0xf]
      %v223 = vld [vmem:[%s220 + $0x8] sm:$0xf]
      %v224 = vld [vmem:[%s220 + $0xc] sm:$0xf]
      %s225 = scalar_lea.vmem %s1, 96
      %v226 = vld [vmem:[%s225] sm:$0xf]
      %v227 = vld [vmem:[%s225 + $0x4] sm:$0xf]
      %v228 = vld [vmem:[%s225 + $0x8] sm:$0xf]
      %v229 = vld [vmem:[%s225 + $0xc] sm:$0xf]
      %s230 = scalar_lea.vmem %s1, 112
      %v231 = vld [vmem:[%s230] sm:$0xf]
      %v232 = vld [vmem:[%s230 + $0x4] sm:$0xf]
      %v233 = vld [vmem:[%s230 + $0x8] sm:$0xf]
      %v234 = vld [vmem:[%s230 + $0xc] sm:$0xf]
      %v235 = vld [vmem:[%s2] sm:$0x1]
      loop: start=0, step=1, limit=4
      $region33: #{_lambda_.7} parent=31 // loop_pre_header
        _
      $region34: #{_lambda_.7} parent=31 // loop_header
        %s237 = sphi 0, %s241
        %p238 = scmp.ge.s32.totalorder %s237, 4
      $region35: #{_lambda_.7} parent=31 // loop_header_branch
        %240 = sbr.rel (%p238) target = $region39
      $region36: #{_lambda_.7} parent=31 // loop_body
        %s242 = sadd.s32 %s195, %s237
        %s243 = smul.u32 %s242, 2
        %s244 = smul.addr %s243, 4
        %s245 = scalar_lea.vmem %s183, %s244
        %v246 = vld [vmem:[%s245] sm:$0x3]
        %v247 = vld [vmem:[%s245] sm:$0x7]
        %v249 = vunpack.c.l.b16 %v247
        %v250 = vpack.c.b16 %v249, %v249
        %v252 = vshrl.u32 %v250, 16
        %v254 = vshll.u32 %v250, 16
        %v256 = vrot.slane %v254, 1
        %v257 = vor.u32 %v252, %v256
        %v262 = vunpack.c.l.b16 %v201
        %v263 = vunpack.c.l.b16 %v202
        %v264 = vunpack.c.l.b16 %v203
        %v265 = vunpack.c.l.b16 %v204
        %v266 = vpack.c.b16 %v263, %v262
        %v267 = vpack.c.b16 %v265, %v264
        %vm270 = vcmask 261120
        %v272 = vsel %vm270, %v257, 0
        %274 = vmatpush.bf16.msra.mxu0 0
        %275 = vmatpush.bf16.msra.mxu0 0
        %276 = vmatpush.bf16.msra.mxu0 0
        %277 = vmatpush.bf16.msra.mxu0 0
        %278 = vmatpush.bf16.msra.mxu0 0
        %279 = vmatpush.bf16.msra.mxu0 0
        %280 = vmatpush.bf16.msra.mxu0 %v267
        %281 = vmatpush.bf16.msra.mxu0 %v266
        %282 = vmatmul.bf16.gmra.mxu0 %v272
        %v283 = vpop.f32.mrf.mxu0
        %v284 = vadd.f32 0.0, %v283
        %v285 = vpop.f32.mrf.mxu0
        %286 = vdwg.mxu0
        %v291 = vunpack.c.l.b16 %v196
        %v292 = vunpack.c.l.b16 %v197
        %v293 = vunpack.c.l.b16 %v198
        %v294 = vunpack.c.l.b16 %v199
        %v295 = vpack.c.b16 %v292, %v291
        %v296 = vpack.c.b16 %v294, %v293
        %v300 = vsel %vm270, %v246, 0
        %302 = vmatpush.bf16.msra.mxu0 0
        %303 = vmatpush.bf16.msra.mxu0 0
        %304 = vmatpush.bf16.msra.mxu0 0
        %305 = vmatpush.bf16.msra.mxu0 0
        %306 = vmatpush.bf16.msra.mxu0 0
        %307 = vmatpush.bf16.msra.mxu0 0
        %308 = vmatpush.bf16.msra.mxu0 %v296
        %309 = vmatpush.bf16.msra.mxu0 %v295
        %310 = vmatmul.bf16.gmra.mxu0 %v300
        %v311 = vpop.f32.mrf.mxu0
        %v312 = vadd.f32 %v284, %v311
        %v313 = vpop.f32.mrf.mxu0
        %314 = vdwg.mxu0
        %s315 = sadd.s32 1, %s243
        %s316 = smul.addr %s315, 4
        %s317 = scalar_lea.vmem %s183, %s316
        %v318 = vld [vmem:[%s317] sm:$0x3]
        %v323 = vunpack.c.l.b16 %v206
        %v324 = vunpack.c.l.b16 %v207
        %v325 = vunpack.c.l.b16 %v208
        %v326 = vunpack.c.l.b16 %v209
        %v327 = vpack.c.b16 %v324, %v323
        %v328 = vpack.c.b16 %v326, %v325
        %v332 = vsel %vm270, %v318, 0
        %334 = vmatpush.bf16.msra.mxu0 0
        %335 = vmatpush.bf16.msra.mxu0 0
        %336 = vmatpush.bf16.msra.mxu0 0
        %337 = vmatpush.bf16.msra.mxu0 0
        %338 = vmatpush.bf16.msra.mxu0 0
        %339 = vmatpush.bf16.msra.mxu0 0
        %340 = vmatpush.bf16.msra.mxu0 %v328
        %341 = vmatpush.bf16.msra.mxu0 %v327
        %342 = vmatmul.bf16.gmra.mxu0 %v332
        %v343 = vpop.f32.mrf.mxu0
        %v344 = vadd.f32 0.0, %v343
        %v345 = vpop.f32.mrf.mxu0
        %346 = vdwg.mxu0
        %v347 = vadd.f32 %v312, %v344
        %v348 = vld [vmem:[%s317] sm:$0x7]
        %v350 = vunpack.c.l.b16 %v348
        %v351 = vpack.c.b16 %v350, %v350
        %v353 = vshrl.u32 %v351, 16
        %v355 = vshll.u32 %v351, 16
        %v357 = vrot.slane %v355, 1
        %v358 = vor.u32 %v353, %v357
        %v363 = vunpack.c.l.b16 %v211
        %v364 = vunpack.c.l.b16 %v212
        %v365 = vunpack.c.l.b16 %v213
        %v366 = vunpack.c.l.b16 %v214
        %v367 = vpack.c.b16 %v364, %v363
        %v368 = vpack.c.b16 %v366, %v365
        %v372 = vsel %vm270, %v358, 0
        %374 = vmatpush.bf16.msra.mxu0 0
        %375 = vmatpush.bf16.msra.mxu0 0
        %376 = vmatpush.bf16.msra.mxu0 0
        %377 = vmatpush.bf16.msra.mxu0 0
        %378 = vmatpush.bf16.msra.mxu0 0
        %379 = vmatpush.bf16.msra.mxu0 0
        %380 = vmatpush.bf16.msra.mxu0 %v368
        %381 = vmatpush.bf16.msra.mxu0 %v367
        %382 = vmatmul.bf16.gmra.mxu0 %v372
        %v383 = vpop.f32.mrf.mxu0
        %v384 = vadd.f32 0.0, %v383
        %v385 = vpop.f32.mrf.mxu0
        %386 = vdwg.mxu0
        %v387 = vadd.f32 %v347, %v384
        %s388 = sadd.s32 %s195, 1
        %s389 = sadd.s32 %s388, %s237
        %s390 = smul.u32 %s389, 2
        %s391 = smul.addr %s390, 4
        %s392 = scalar_lea.vmem %s183, %s391
        %v393 = vld [vmem:[%s392] sm:$0x3]
        %v398 = vunpack.c.l.b16 %v216
        %v399 = vunpack.c.l.b16 %v217
        %v400 = vunpack.c.l.b16 %v218
        %v401 = vunpack.c.l.b16 %v219
        %v402 = vpack.c.b16 %v399, %v398
        %v403 = vpack.c.b16 %v401, %v400
        %v407 = vsel %vm270, %v393, 0
        %409 = vmatpush.bf16.msra.mxu0 0
        %410 = vmatpush.bf16.msra.mxu0 0
        %411 = vmatpush.bf16.msra.mxu0 0
        %412 = vmatpush.bf16.msra.mxu0 0
        %413 = vmatpush.bf16.msra.mxu0 0
        %414 = vmatpush.bf16.msra.mxu0 0
        %415 = vmatpush.bf16.msra.mxu0 %v403
        %416 = vmatpush.bf16.msra.mxu0 %v402
        %417 = vmatmul.bf16.gmra.mxu0 %v407
        %v418 = vpop.f32.mrf.mxu0
        %v419 = vadd.f32 0.0, %v418
        %v420 = vpop.f32.mrf.mxu0
        %421 = vdwg.mxu0
        %v422 = vadd.f32 %v387, %v419
        %v423 = vld [vmem:[%s392] sm:$0x7]
        %v425 = vunpack.c.l.b16 %v423
        %v426 = vpack.c.b16 %v425, %v425
        %v428 = vshrl.u32 %v426, 16
        %v430 = vshll.u32 %v426, 16
        %v432 = vrot.slane %v430, 1
        %v433 = vor.u32 %v428, %v432
        %v438 = vunpack.c.l.b16 %v221
        %v439 = vunpack.c.l.b16 %v222
        %v440 = vunpack.c.l.b16 %v223
        %v441 = vunpack.c.l.b16 %v224
        %v442 = vpack.c.b16 %v439, %v438
        %v443 = vpack.c.b16 %v441, %v440
        %v447 = vsel %vm270, %v433, 0
        %449 = vmatpush.bf16.msra.mxu0 0
        %450 = vmatpush.bf16.msra.mxu0 0
        %451 = vmatpush.bf16.msra.mxu0 0
        %452 = vmatpush.bf16.msra.mxu0 0
        %453 = vmatpush.bf16.msra.mxu0 0
        %454 = vmatpush.bf16.msra.mxu0 0
        %455 = vmatpush.bf16.msra.mxu0 %v443
        %456 = vmatpush.bf16.msra.mxu0 %v442
        %457 = vmatmul.bf16.gmra.mxu0 %v447
        %v458 = vpop.f32.mrf.mxu0
        %v459 = vadd.f32 0.0, %v458
        %v460 = vpop.f32.mrf.mxu0
        %461 = vdwg.mxu0
        %v462 = vadd.f32 %v422, %v459
        %s463 = sadd.s32 1, %s390
        %s464 = smul.addr %s463, 4
        %s465 = scalar_lea.vmem %s183, %s464
        %v466 = vld [vmem:[%s465] sm:$0x3]
        %v471 = vunpack.c.l.b16 %v226
        %v472 = vunpack.c.l.b16 %v227
        %v473 = vunpack.c.l.b16 %v228
        %v474 = vunpack.c.l.b16 %v229
        %v475 = vpack.c.b16 %v472, %v471
        %v476 = vpack.c.b16 %v474, %v473
        %v480 = vsel %vm270, %v466, 0
        %482 = vmatpush.bf16.msra.mxu0 0
        %483 = vmatpush.bf16.msra.mxu0 0
        %484 = vmatpush.bf16.msra.mxu0 0
        %485 = vmatpush.bf16.msra.mxu0 0
        %486 = vmatpush.bf16.msra.mxu0 0
        %487 = vmatpush.bf16.msra.mxu0 0
        %488 = vmatpush.bf16.msra.mxu0 %v476
        %489 = vmatpush.bf16.msra.mxu0 %v475
        %490 = vmatmul.bf16.gmra.mxu0 %v480
        %v491 = vpop.f32.mrf.mxu0
        %v492 = vadd.f32 0.0, %v491
        %v493 = vpop.f32.mrf.mxu0
        %494 = vdwg.mxu0
        %v495 = vadd.f32 %v462, %v492
        %v496 = vld [vmem:[%s465] sm:$0x7]
        %v498 = vunpack.c.l.b16 %v496
        %v499 = vpack.c.b16 %v498, %v498
        %v501 = vshrl.u32 %v499, 16
        %v503 = vshll.u32 %v499, 16
        %v505 = vrot.slane %v503, 1
        %v506 = vor.u32 %v501, %v505
        %v511 = vunpack.c.l.b16 %v231
        %v512 = vunpack.c.l.b16 %v232
        %v513 = vunpack.c.l.b16 %v233
        %v514 = vunpack.c.l.b16 %v234
        %v515 = vpack.c.b16 %v512, %v511
        %v516 = vpack.c.b16 %v514, %v513
        %v520 = vsel %vm270, %v506, 0
        %522 = vmatpush.bf16.msra.mxu0 0
        %523 = vmatpush.bf16.msra.mxu0 0
        %524 = vmatpush.bf16.msra.mxu0 0
        %525 = vmatpush.bf16.msra.mxu0 0
        %526 = vmatpush.bf16.msra.mxu0 0
        %527 = vmatpush.bf16.msra.mxu0 0
        %528 = vmatpush.bf16.msra.mxu0 %v516
        %529 = vmatpush.bf16.msra.mxu0 %v515
        %530 = vmatmul.bf16.gmra.mxu0 %v520
        %v531 = vpop.f32.mrf.mxu0
        %v532 = vadd.f32 0.0, %v531
        %v533 = vpop.f32.mrf.mxu0
        %534 = vdwg.mxu0
        %v535 = vadd.f32 %v495, %v532
        %v537 = vperm.slane %v235, 0
        %v539 = vadd.f32 %v535, %v537
        %v540 = vmul.f32 %v539, 0.2
        %v541 = vmax.f32 %v539, %v540
        %v542 = vpack.c.bf16 %v541, %v541
        %s543 = smul.addr %s237, 2
        %s544 = scalar_lea.vmem %s192, %s543
        %vm545 = vcmask 254976
        %546 = vst.msk [vmem:[%s544] sm:$0x3] %vm545, %v542
      $region37: #{_lambda_.7} parent=31 // loop_footer
        %s241 = sadd.s32 1, %s237
      $region38: #{_lambda_.7} parent=31 // loop_footer_branch
        %236 = sbr.rel target = $region34
      $region39: #{_lambda_.7} parent=31 // loop_exit
        _
      %s547 = smul.u32 4, %s19
      %p548 = scmp.lt.s32.totalorder %s18, 1
      %s549 = scalar_select %p548, %s18, 1
      %p550 = scmp.lt.s32.totalorder %s547, 3
      %s551 = scalar_select %p550, %s547, 3
      %s552 = smul.addr %s549, 4
      %s553 = sadd.s32 %s551, %s552
      %s554 = smul.addr %s553, 2
      %s555 = scalar_lea.vmem %s3, %s554
      // Predicated region
      $region40: #{_lambda_.7} parent=31 // pred_check
        %p556 = pneg %p114
      $region41: #{_lambda_.7} parent=31 // pred_check_branch
        %558 = sbr.rel (%p556) target = $region43
      $region42: #{_lambda_.7} parent=31 // pred_region
        %s559 = smul.u32 4, %s19
      $region43: #{_lambda_.7} parent=31 // pred_fallthru
        _
    $region32: #{_lambda_.7} parent=5 // pred_fallthru
      _
    %p560 = scmp.le.s32.totalorder 2, %s9
    // Predicated region
    $region44: #{_lambda_.7} parent=5 // pred_check
      %p561 = pneg %p560
    $region45: #{_lambda_.7} parent=5 // pred_check_branch
      %563 = sbr.rel (%p561) target = $region47
    $region46: #{_lambda_.7} parent=5 // pred_region
      %s564 = ssub.s32 %s9, 2
      // Predicated region
      $region48: #{_lambda_.7} parent=46 // pred_check
        %p565 = pneg %p120
      $region49: #{_lambda_.7} parent=46 // pred_check_branch
        %567 = sbr.rel (%p565) target = $region51
      $region50: #{_lambda_.7} parent=46 // pred_region
        %s568 = smul.u32 4, %s21
        %p569 = scmp.lt.s32.totalorder %s20, 1
        %s570 = scalar_select %p569, %s20, 1
        %p571 = scmp.lt.s32.totalorder %s568, 3
        %s572 = scalar_select %p571, %s568, 3
        %s573 = smul.addr %s570, 4
        %s574 = sadd.s32 %s572, %s573
        %s575 = smul.addr %s574, 2
        %s576 = scalar_lea.vmem %s3, %s575
      $region51: #{_lambda_.7} parent=46 // pred_fallthru
        _
    $region47: #{_lambda_.7} parent=5 // pred_fallthru
      _
  $region6: #{_lambda_.7} parent=0 // loop_footer
    %s13 = sadd.s32 1, %s9
  $region7: #{_lambda_.7} parent=0 // loop_footer_branch
    %8 = sbr.rel target = $region3
  $region8: #{_lambda_.7} parent=0 // loop_exit
    _

// kernel: _lambda_.8
$region0: #{_lambda_.8}
  #allocation0 [shape = 'u32[]', space=smem, size = 0x4, offset = 0x4, fixed_abs, tag = 'smem constant byte address 0x4 - core index']
  #allocation1 [shape = 'u32[72,128]{1,0:T(1,128)}', space=vmem, size = 0x9000, scoped, tag = 'internal scratch']
  %s0 = inlined_call_operand.vmem [shape: bf16[2,6,1,6,32], index: 0, kind: input, shape index: {}]
  %s1 = inlined_call_operand.vmem [shape: bf16[16,32,64], index: 1, kind: input, shape index: {}]
  %s2 = inlined_call_operand.vmem [shape: f32[1,64], index: 2, kind: input, shape index: {}]
  %s3 = inlined_call_operand.vmem [shape: bf16[2,3,3,64], index: 3, kind: output, shape index: {}]
  %s4 = sld [smem:[#allocation0]]
  $region52: #{_lambda_.8} parent=0
    _
  %s6 = ssub.s32 1, %s4
  %s7 = scalar_select 0, %s6, %s4
  loop: start=0, step=1, limit=4
  $region2: #{_lambda_.8} parent=0 // loop_pre_header
    _
  $region3: #{_lambda_.8} parent=0 // loop_header
    %s9 = sphi 0, %s13
    %p10 = scmp.ge.s32.totalorder %s9, 4
    %s16 = sphi 0, %s28
    %s17 = sphi 0, %s24
    %s18 = sphi 0, %s16
    %s19 = sphi 0, %s17
    %s20 = sphi 0, %s18
    %s21 = sphi 0, %s19
    %s31 = sphi 0, %s33
    %s34 = sphi 0, %s31
    %s35 = sphi 0, %s34
    %s51 = sphi 0, %s35
    %s55 = sphi 0, %s55
    %s57 = sphi 0, %s55
    %s58 = sphi 0, %s57
    %s72 = sphi 0, %s58
    %s76 = sphi 0, %s76
    %s78 = sphi 0, %s76
    %s79 = sphi 0, %s78
    %s93 = sphi 0, %s79
    %s101 = sphi 0, %s103
    %s104 = sphi 0, %s101
    %s105 = sphi 0, %s104
    %s121 = sphi 0, %s105
  $region4: #{_lambda_.8} parent=0 // loop_header_branch
    %12 = sbr.rel (%p10) target = $region8
  $region5: #{_lambda_.8} parent=0 // loop_body
    %s14 = ssub.s32 %s9, 1
    %s15 = ssub.s32 %s9, 2
    %s22 = sadd.s32 1, %s17
    %p23 = scmp.ge.s32.totalorder %s22, 1
    %s24 = scalar_select %p23, 0, %s22
    %s25 = sadd.s32 1, %s16
    %s26 = scalar_select %p23, %s25, %s16
    %p27 = scmp.ge.s32.totalorder %s26, 2
    %s28 = scalar_select %p27, 0, %s26
    %s29 = ssub.s32 %s16, %s28
    %p30 = scmp.eq.s32.totalorder %s29, 0
    %s32 = sadd.s32 %s31, 1
    %s33 = scalar_select %p30, %s31, %s32
    %p36 = pneg %p30
    %p37 = scmp.eq.s32.totalorder %s9, 1
    %p38 = por %p36, %p37
    %p39 = scmp.ne.s32.totalorder %s31, %s34
    %p40 = scmp.eq.s32.totalorder %s9, 0
    %p41 = por %p39, %p40
    %p42 = scmp.ne.s32.totalorder %s31, %s34
    %p43 = scmp.eq.s32.totalorder %s14, 1
    %p44 = por %p42, %p43
    %p45 = scmp.ne.s32.totalorder %s34, %s35
    %p46 = scmp.eq.s32.totalorder %s14, 0
    %p47 = por %p45, %p46
    %p48 = scmp.ne.s32.totalorder %s34, %s35
    %p49 = scmp.eq.s32.totalorder %s15, 1
    %p50 = por %p48, %p49
    %p52 = scmp.ne.s32.totalorder %s35, %s51
    %p53 = scmp.eq.s32.totalorder %s15, 0
    %p54 = por %p52, %p53
    %s56 = sadd.s32 %s55, 1
    %p59 = scmp.eq.s32.totalorder %s9, 1
    %p60 = scmp.ne.s32.totalorder %s55, %s57
    %p61 = scmp.eq.s32.totalorder %s9, 0
    %p62 = por %p60, %p61
    %p63 = scmp.ne.s32.totalorder %s55, %s57
    %p64 = scmp.eq.s32.totalorder %s14, 1
    %p65 = por %p63, %p64
    %p66 = scmp.ne.s32.totalorder %s57, %s58
    %p67 = scmp.eq.s32.totalorder %s14, 0
    %p68 = por %p66, %p67
    %p69 = scmp.ne.s32.totalorder %s57, %s58
    %p70 = scmp.eq.s32.totalorder %s15, 1
    %p71 = por %p69, %p70
    %p73 = scmp.ne.s32.totalorder %s58, %s72
    %p74 = scmp.eq.s32.totalorder %s15, 0
    %p75 = por %p73, %p74
    %s77 = sadd.s32 %s76, 1
    %p80 = scmp.eq.s32.totalorder %s9, 1
    %p81 = scmp.ne.s32.totalorder %s76, %s78
    %p82 = scmp.eq.s32.totalorder %s9, 0
    %p83 = por %p81, %p82
    %p84 = scmp.ne.s32.totalorder %s76, %s78
    %p85 = scmp.eq.s32.totalorder %s14, 1
    %p86 = por %p84, %p85
    %p87 = scmp.ne.s32.totalorder %s78, %s79
    %p88 = scmp.eq.s32.totalorder %s14, 0
    %p89 = por %p87, %p88
    %p90 = scmp.ne.s32.totalorder %s78, %s79
    %p91 = scmp.eq.s32.totalorder %s15, 1
    %p92 = por %p90, %p91
    %p94 = scmp.ne.s32.totalorder %s79, %s93
    %p95 = scmp.eq.s32.totalorder %s15, 0
    %p96 = por %p94, %p95
    %s97 = ssub.s32 %s16, %s28
    %s98 = ssub.s32 %s17, %s24
    %s99 = sor.u32 %s97, %s98
    %p100 = scmp.eq.s32.totalorder %s99, 0
    %s102 = sadd.s32 %s101, 1
    %s103 = scalar_select %p100, %s101, %s102
    %p106 = pneg %p100
    %p107 = scmp.eq.s32.totalorder %s9, 1
    %p108 = por %p106, %p107
    %p109 = scmp.ne.s32.totalorder %s101, %s104
    %p110 = scmp.eq.s32.totalorder %s9, 0
    %p111 = por %p109, %p110
    %p112 = scmp.ne.s32.totalorder %s101, %s104
    %p113 = scmp.eq.s32.totalorder %s14, 1
    %p114 = por %p112, %p113
    %p115 = scmp.ne.s32.totalorder %s104, %s105
    %p116 = scmp.eq.s32.totalorder %s14, 0
    %p117 = por %p115, %p116
    %p118 = scmp.ne.s32.totalorder %s104, %s105
    %p119 = scmp.eq.s32.totalorder %s15, 1
    %p120 = por %p118, %p119
    %p122 = scmp.ne.s32.totalorder %s105, %s121
    %p123 = scmp.eq.s32.totalorder %s15, 0
    %p124 = por %p122, %p123
    %p125 = scmp.le.s32.totalorder 1, %s9
    %p126 = scmp.lt.s32.totalorder %s9, 3
    %p127 = pnand %p125, %p126
    %p128 = pneg %p127
    // Predicated region
    $region9: #{_lambda_.8} parent=5 // pred_check
      _
    $region10: #{_lambda_.8} parent=5 // pred_check_branch
      %130 = sbr.rel (%p127) target = $region12
    $region11: #{_lambda_.8} parent=5 // pred_region
      %s131 = ssub.s32 %s9, 1
      // Predicated region
      $region13: #{_lambda_.8} parent=11 // pred_check
        %p132 = pneg %p68
      $region14: #{_lambda_.8} parent=11 // pred_check_branch
        %134 = sbr.rel (%p132) target = $region16
      $region15: #{_lambda_.8} parent=11 // pred_region
        _
      $region16: #{_lambda_.8} parent=11 // pred_fallthru
        _
      // Predicated region
      $region17: #{_lambda_.8} parent=11 // pred_check
        %p135 = pneg %p89
      $region18: #{_lambda_.8} parent=11 // pred_check_branch
        %137 = sbr.rel (%p135) target = $region20
      $region19: #{_lambda_.8} parent=11 // pred_region
        _
      $region20: #{_lambda_.8} parent=11 // pred_fallthru
        _
    $region12: #{_lambda_.8} parent=5 // pred_fallthru
      _
    %p138 = scmp.lt.s32.totalorder %s9, 2
    // Predicated region
    $region21: #{_lambda_.8} parent=5 // pred_check
      %p139 = pneg %p138
    $region22: #{_lambda_.8} parent=5 // pred_check_branch
      %141 = sbr.rel (%p139) target = $region24
    $region23: #{_lambda_.8} parent=5 // pred_region
      // Predicated region
      $region25: #{_lambda_.8} parent=23 // pred_check
        %p142 = pneg %p41
      $region26: #{_lambda_.8} parent=23 // pred_check_branch
        %144 = sbr.rel (%p142) target = $region28
      $region27: #{_lambda_.8} parent=23 // pred_region
        %p145 = scmp.lt.s32.totalorder %s16, 1
        %s146 = scalar_select %p145, %s16, 1
        %s147 = smul.addr %s146, 6
        %s148 = smul.addr %s147, 4
        %s149 = scalar_lea.vmem %s0, %s148
      $region28: #{_lambda_.8} parent=23 // pred_fallthru
        _
    $region24: #{_lambda_.8} parent=5 // pred_fallthru
      _
    %p150 = scmp.le.s32.totalorder 1, %s9
    %p151 = scmp.lt.s32.totalorder %s9, 3
    %p152 = pnand %p150, %p151
    %p153 = pneg %p152
    // Predicated region
    $region29: #{_lambda_.8} parent=5 // pred_check
      _
    $region30: #{_lambda_.8} parent=5 // pred_check_branch
      %155 = sbr.rel (%p152) target = $region32
    $region31: #{_lambda_.8} parent=5 // pred_region
      %s156 = ssub.s32 %s9, 1
      %p157 = scmp.lt.s32.totalorder %s18, 1
      %s158 = scalar_select %p157, %s18, 1
      %s159 = smul.addr %s158, 6
      %s160 = smul.addr %s159, 4
      %s161 = scalar_lea.vmem %s0, %s160
      %p162 = pneg %p47
      %p163 = pneg %p44
      %p164 = pneg %p68
      %p165 = pneg %p65
      %p166 = pneg %p89
      %p167 = pneg %p86
      %p168 = pneg %p117
      %p169 = pneg %p114
      %s170 = smul.u32 3, %s19
      %p171 = scmp.lt.s32.totalorder %s18, 1
      %s172 = scalar_select %p171, %s18, 1
      %p173 = scmp.lt.s32.totalorder %s170, 2
      %s174 = scalar_select %p173, %s170, 2
      %s175 = smul.addr %s172, 3
      %s176 = sadd.s32 %s174, %s175
      %s177 = smul.addr %s176, 2
      %s178 = scalar_lea.vmem %s3, %s177
      %p179 = scmp.lt.s32.totalorder %s18, 1
      %s180 = scalar_select %p179, %s18, 1
      %s181 = smul.addr %s180, 6
      %s182 = smul.addr %s181, 4
      %s183 = scalar_lea.vmem %s0, %s182
      %s184 = smul.u32 3, %s19
      %p185 = scmp.lt.s32.totalorder %s18, 1
      %s186 = scalar_select %p185, %s18, 1
      %p187 = scmp.lt.s32.totalorder %s184, 2
      %s188 = scalar_select %p187, %s184, 2
      %s189 = smul.addr %s186, 3
      %s190 = sadd.s32 %s188, %s189
      %s191 = smul.addr %s190, 2
      %s192 = scalar_lea.vmem %s3, %s191
      %s193 = smul.u32 3, %s19
      %s195 = smul.u32 %s19, 3
      %v196 = vld [vmem:[%s1] sm:$0xf]
      %v197 = vld [vmem:[%s1 + $0x4] sm:$0xf]
      %v198 = vld [vmem:[%s1 + $0x8] sm:$0xf]
      %v199 = vld [vmem:[%s1 + $0xc] sm:$0xf]
      %s200 = scalar_lea.vmem %s1, 16
      %v201 = vld [vmem:[%s200] sm:$0xf]
      %v202 = vld [vmem:[%s200 + $0x4] sm:$0xf]
      %v203 = vld [vmem:[%s200 + $0x8] sm:$0xf]
      %v204 = vld [vmem:[%s200 + $0xc] sm:$0xf]
      %s205 = scalar_lea.vmem %s1, 32
      %v206 = vld [vmem:[%s205] sm:$0xf]
      %v207 = vld [vmem:[%s205 + $0x4] sm:$0xf]
      %v208 = vld [vmem:[%s205 + $0x8] sm:$0xf]
      %v209 = vld [vmem:[%s205 + $0xc] sm:$0xf]
      %s210 = scalar_lea.vmem %s1, 48
      %v211 = vld [vmem:[%s210] sm:$0xf]
      %v212 = vld [vmem:[%s210 + $0x4] sm:$0xf]
      %v213 = vld [vmem:[%s210 + $0x8] sm:$0xf]
      %v214 = vld [vmem:[%s210 + $0xc] sm:$0xf]
      %s215 = scalar_lea.vmem %s1, 64
      %v216 = vld [vmem:[%s215] sm:$0xf]
      %v217 = vld [vmem:[%s215 + $0x4] sm:$0xf]
      %v218 = vld [vmem:[%s215 + $0x8] sm:$0xf]
      %v219 = vld [vmem:[%s215 + $0xc] sm:$0xf]
      %s220 = scalar_lea.vmem %s1, 80
      %v221 = vld [vmem:[%s220] sm:$0xf]
      %v222 = vld [vmem:[%s220 + $0x4] sm:$0xf]
      %v223 = vld [vmem:[%s220 + $0x8] sm:$0xf]
      %v224 = vld [vmem:[%s220 + $0xc] sm:$0xf]
      %s225 = scalar_lea.vmem %s1, 96
      %v226 = vld [vmem:[%s225] sm:$0xf]
      %v227 = vld [vmem:[%s225 + $0x4] sm:$0xf]
      %v228 = vld [vmem:[%s225 + $0x8] sm:$0xf]
      %v229 = vld [vmem:[%s225 + $0xc] sm:$0xf]
      %s230 = scalar_lea.vmem %s1, 112
      %v231 = vld [vmem:[%s230] sm:$0xf]
      %v232 = vld [vmem:[%s230 + $0x4] sm:$0xf]
      %v233 = vld [vmem:[%s230 + $0x8] sm:$0xf]
      %v234 = vld [vmem:[%s230 + $0xc] sm:$0xf]
      %s235 = scalar_lea.vmem %s1, 128
      %v236 = vld [vmem:[%s235] sm:$0xf]
      %v237 = vld [vmem:[%s235 + $0x4] sm:$0xf]
      %v238 = vld [vmem:[%s235 + $0x8] sm:$0xf]
      %v239 = vld [vmem:[%s235 + $0xc] sm:$0xf]
      %s240 = scalar_lea.vmem %s1, 144
      %v241 = vld [vmem:[%s240] sm:$0xf]
      %v242 = vld [vmem:[%s240 + $0x4] sm:$0xf]
      %v243 = vld [vmem:[%s240 + $0x8] sm:$0xf]
      %v244 = vld [vmem:[%s240 + $0xc] sm:$0xf]
      %s245 = scalar_lea.vmem %s1, 160
      %v246 = vld [vmem:[%s245] sm:$0xf]
      %v247 = vld [vmem:[%s245 + $0x4] sm:$0xf]
      %v248 = vld [vmem:[%s245 + $0x8] sm:$0xf]
      %v249 = vld [vmem:[%s245 + $0xc] sm:$0xf]
      %s250 = scalar_lea.vmem %s1, 176
      %v251 = vld [vmem:[%s250] sm:$0xf]
      %v252 = vld [vmem:[%s250 + $0x4] sm:$0xf]
      %v253 = vld [vmem:[%s250 + $0x8] sm:$0xf]
      %v254 = vld [vmem:[%s250 + $0xc] sm:$0xf]
      %s255 = scalar_lea.vmem %s1, 192
      %v256 = vld [vmem:[%s255] sm:$0xf]
      %v257 = vld [vmem:[%s255 + $0x4] sm:$0xf]
      %v258 = vld [vmem:[%s255 + $0x8] sm:$0xf]
      %v259 = vld [vmem:[%s255 + $0xc] sm:$0xf]
      %s260 = scalar_lea.vmem %s1, 208
      %v261 = vld [vmem:[%s260] sm:$0xf]
      %v262 = vld [vmem:[%s260 + $0x4] sm:$0xf]
      %v263 = vld [vmem:[%s260 + $0x8] sm:$0xf]
      %v264 = vld [vmem:[%s260 + $0xc] sm:$0xf]
      %s265 = scalar_lea.vmem %s1, 224
      %v266 = vld [vmem:[%s265] sm:$0xf]
      %v267 = vld [vmem:[%s265 + $0x4] sm:$0xf]
      %v268 = vld [vmem:[%s265 + $0x8] sm:$0xf]
      %v269 = vld [vmem:[%s265 + $0xc] sm:$0xf]
      %s270 = scalar_lea.vmem %s1, 240
      %v271 = vld [vmem:[%s270] sm:$0xf]
      %v272 = vld [vmem:[%s270 + $0x4] sm:$0xf]
      %v273 = vld [vmem:[%s270 + $0x8] sm:$0xf]
      %v274 = vld [vmem:[%s270 + $0xc] sm:$0xf]
      %v275 = vld [vmem:[%s2] sm:$0x1]
      loop: start=0, step=1, limit=3
      $region33: #{_lambda_.8} parent=31 // loop_pre_header
        _
      $region34: #{_lambda_.8} parent=31 // loop_header
        %s277 = sphi 0, %s281
        %p278 = scmp.ge.s32.totalorder %s277, 3
      $region35: #{_lambda_.8} parent=31 // loop_header_branch
        %280 = sbr.rel (%p278) target = $region39
      $region36: #{_lambda_.8} parent=31 // loop_body
        %s282 = sadd.s32 %s195, %s277
        %s283 = smul.addr %s282, 4
        %s284 = scalar_lea.vmem %s183, %s283
        %v285 = vld [vmem:[%s284] sm:$0x3]
        %v287 = vunpack.c.l.b16 %v285
        %v288 = vpack.c.b16 %v287, %v287
        %v290 = vshrl.u32 %v288, 16
        %v292 = vshll.u32 %v288, 16
        %v294 = vrot.slane %v292, 1
        %v295 = vor.u32 %v290, %v294
        %v300 = vunpack.c.l.b16 %v201
        %v301 = vunpack.c.l.b16 %v202
        %v302 = vunpack.c.l.b16 %v203
        %v303 = vunpack.c.l.b16 %v204
        %v304 = vpack.c.b16 %v301, %v300
        %v305 = vpack.c.b16 %v303, %v302
        %vm308 = vcmask 261120
        %v310 = vsel %vm308, %v295, 0
        %312 = vmatpush.bf16.msra.mxu0 0
        %313 = vmatpush.bf16.msra.mxu0 0
        %314 = vmatpush.bf16.msra.mxu0 0
        %315 = vmatpush.bf16.msra.mxu0 0
        %316 = vmatpush.bf16.msra.mxu0 0
        %317 = vmatpush.bf16.msra.mxu0 0
        %318 = vmatpush.bf16.msra.mxu0 %v305
        %319 = vmatpush.bf16.msra.mxu0 %v304
        %320 = vmatmul.bf16.gmra.mxu0 %v310
        %v321 = vpop.f32.mrf.mxu0
        %v322 = vadd.f32 0.0, %v321
        %v323 = vpop.f32.mrf.mxu0
        %324 = vdwg.mxu0
        %v329 = vunpack.c.l.b16 %v196
        %v330 = vunpack.c.l.b16 %v197
        %v331 = vunpack.c.l.b16 %v198
        %v332 = vunpack.c.l.b16 %v199
        %v333 = vpack.c.b16 %v330, %v329
        %v334 = vpack.c.b16 %v332, %v331
        %v338 = vsel %vm308, %v285, 0
        %340 = vmatpush.bf16.msra.mxu0 0
        %341 = vmatpush.bf16.msra.mxu0 0
        %342 = vmatpush.bf16.msra.mxu0 0
        %343 = vmatpush.bf16.msra.mxu0 0
        %344 = vmatpush.bf16.msra.mxu0 0
        %345 = vmatpush.bf16.msra.mxu0 0
        %346 = vmatpush.bf16.msra.mxu0 %v334
        %347 = vmatpush.bf16.msra.mxu0 %v333
        %348 = vmatmul.bf16.gmra.mxu0 %v338
        %v349 = vpop.f32.mrf.mxu0
        %v350 = vadd.f32 %v322, %v349
        %v351 = vpop.f32.mrf.mxu0
        %352 = vdwg.mxu0
        %v353 = vld [vmem:[%s284] sm:$0x6]
        %v355 = vunpack.c.l.b16 %v353
        %v356 = vpack.c.b16 %v355, %v355
        %v357 = vrot.slane %v356, 1
        %v362 = vunpack.c.l.b16 %v206
        %v363 = vunpack.c.l.b16 %v207
        %v364 = vunpack.c.l.b16 %v208
        %v365 = vunpack.c.l.b16 %v209
        %v366 = vpack.c.b16 %v363, %v362
        %v367 = vpack.c.b16 %v365, %v364
        %v371 = vsel %vm308, %v357, 0
        %373 = vmatpush.bf16.msra.mxu0 0
        %374 = vmatpush.bf16.msra.mxu0 0
        %375 = vmatpush.bf16.msra.mxu0 0
        %376 = vmatpush.bf16.msra.mxu0 0
        %377 = vmatpush.bf16.msra.mxu0 0
        %378 = vmatpush.bf16.msra.mxu0 0
        %379 = vmatpush.bf16.msra.mxu0 %v367
        %380 = vmatpush.bf16.msra.mxu0 %v366
        %381 = vmatmul.bf16.gmra.mxu0 %v371
        %v382 = vpop.f32.mrf.mxu0
        %v383 = vadd.f32 0.0, %v382
        %v384 = vpop.f32.mrf.mxu0
        %385 = vdwg.mxu0
        %v386 = vadd.f32 %v350, %v383
        %v388 = vshrl.u32 %v356, 16
        %v390 = vrot.slane %v388, 1
        %v391 = vshll.u32 %v356, 16
        %v393 = vrot.slane %v391, 2
        %v394 = vor.u32 %v390, %v393
        %v399 = vunpack.c.l.b16 %v211
        %v400 = vunpack.c.l.b16 %v212
        %v401 = vunpack.c.l.b16 %v213
        %v402 = vunpack.c.l.b16 %v214
        %v403 = vpack.c.b16 %v400, %v399
        %v404 = vpack.c.b16 %v402, %v401
        %v408 = vsel %vm308, %v394, 0
        %410 = vmatpush.bf16.msra.mxu0 0
        %411 = vmatpush.bf16.msra.mxu0 0
        %412 = vmatpush.bf16.msra.mxu0 0
        %413 = vmatpush.bf16.msra.mxu0 0
        %414 = vmatpush.bf16.msra.mxu0 0
        %415 = vmatpush.bf16.msra.mxu0 0
        %416 = vmatpush.bf16.msra.mxu0 %v404
        %417 = vmatpush.bf16.msra.mxu0 %v403
        %418 = vmatmul.bf16.gmra.mxu0 %v408
        %v419 = vpop.f32.mrf.mxu0
        %v420 = vadd.f32 0.0, %v419
        %v421 = vpop.f32.mrf.mxu0
        %422 = vdwg.mxu0
        %v423 = vadd.f32 %v386, %v420
        %s424 = sadd.s32 %s195, 1
        %s425 = sadd.s32 %s424, %s277
        %s426 = smul.addr %s425, 4
        %s427 = scalar_lea.vmem %s183, %s426
        %v428 = vld [vmem:[%s427] sm:$0x3]
        %v433 = vunpack.c.l.b16 %v216
        %v434 = vunpack.c.l.b16 %v217
        %v435 = vunpack.c.l.b16 %v218
        %v436 = vunpack.c.l.b16 %v219
        %v437 = vpack.c.b16 %v434, %v433
        %v438 = vpack.c.b16 %v436, %v435
        %v442 = vsel %vm308, %v428, 0
        %444 = vmatpush.bf16.msra.mxu0 0
        %445 = vmatpush.bf16.msra.mxu0 0
        %446 = vmatpush.bf16.msra.mxu0 0
        %447 = vmatpush.bf16.msra.mxu0 0
        %448 = vmatpush.bf16.msra.mxu0 0
        %449 = vmatpush.bf16.msra.mxu0 0
        %450 = vmatpush.bf16.msra.mxu0 %v438
        %451 = vmatpush.bf16.msra.mxu0 %v437
        %452 = vmatmul.bf16.gmra.mxu0 %v442
        %v453 = vpop.f32.mrf.mxu0
        %v454 = vadd.f32 0.0, %v453
        %v455 = vpop.f32.mrf.mxu0
        %456 = vdwg.mxu0
        %v457 = vadd.f32 %v423, %v454
        %v459 = vunpack.c.l.b16 %v428
        %v460 = vpack.c.b16 %v459, %v459
        %v462 = vshrl.u32 %v460, 16
        %v464 = vshll.u32 %v460, 16
        %v466 = vrot.slane %v464, 1
        %v467 = vor.u32 %v462, %v466
        %v472 = vunpack.c.l.b16 %v221
        %v473 = vunpack.c.l.b16 %v222
        %v474 = vunpack.c.l.b16 %v223
        %v475 = vunpack.c.l.b16 %v224
        %v476 = vpack.c.b16 %v473, %v472
        %v477 = vpack.c.b16 %v475, %v474
        %v481 = vsel %vm308, %v467, 0
        %483 = vmatpush.bf16.msra.mxu0 0
        %484 = vmatpush.bf16.msra.mxu0 0
        %485 = vmatpush.bf16.msra.mxu0 0
        %486 = vmatpush.bf16.msra.mxu0 0
        %487 = vmatpush.bf16.msra.mxu0 0
        %488 = vmatpush.bf16.msra.mxu0 0
        %489 = vmatpush.bf16.msra.mxu0 %v477
        %490 = vmatpush.bf16.msra.mxu0 %v476
        %491 = vmatmul.bf16.gmra.mxu0 %v481
        %v492 = vpop.f32.mrf.mxu0
        %v493 = vadd.f32 0.0, %v492
        %v494 = vpop.f32.mrf.mxu0
        %495 = vdwg.mxu0
        %v496 = vadd.f32 %v457, %v493
        %v497 = vld [vmem:[%s427] sm:$0x6]
        %v499 = vunpack.c.l.b16 %v497
        %v500 = vpack.c.b16 %v499, %v499
        %v501 = vrot.slane %v500, 1
        %v506 = vunpack.c.l.b16 %v226
        %v507 = vunpack.c.l.b16 %v227
        %v508 = vunpack.c.l.b16 %v228
        %v509 = vunpack.c.l.b16 %v229
        %v510 = vpack.c.b16 %v507, %v506
        %v511 = vpack.c.b16 %v509, %v508
        %v515 = vsel %vm308, %v501, 0
        %517 = vmatpush.bf16.msra.mxu0 0
        %518 = vmatpush.bf16.msra.mxu0 0
        %519 = vmatpush.bf16.msra.mxu0 0
        %520 = vmatpush.bf16.msra.mxu0 0
        %521 = vmatpush.bf16.msra.mxu0 0
        %522 = vmatpush.bf16.msra.mxu0 0
        %523 = vmatpush.bf16.msra.mxu0 %v511
        %524 = vmatpush.bf16.msra.mxu0 %v510
        %525 = vmatmul.bf16.gmra.mxu0 %v515
        %v526 = vpop.f32.mrf.mxu0
        %v527 = vadd.f32 0.0, %v526
        %v528 = vpop.f32.mrf.mxu0
        %529 = vdwg.mxu0
        %v530 = vadd.f32 %v496, %v527
        %v532 = vshrl.u32 %v500, 16
        %v534 = vrot.slane %v532, 1
        %v535 = vshll.u32 %v500, 16
        %v537 = vrot.slane %v535, 2
        %v538 = vor.u32 %v534, %v537
        %v543 = vunpack.c.l.b16 %v231
        %v544 = vunpack.c.l.b16 %v232
        %v545 = vunpack.c.l.b16 %v233
        %v546 = vunpack.c.l.b16 %v234
        %v547 = vpack.c.b16 %v544, %v543
        %v548 = vpack.c.b16 %v546, %v545
        %v552 = vsel %vm308, %v538, 0
        %554 = vmatpush.bf16.msra.mxu0 0
        %555 = vmatpush.bf16.msra.mxu0 0
        %556 = vmatpush.bf16.msra.mxu0 0
        %557 = vmatpush.bf16.msra.mxu0 0
        %558 = vmatpush.bf16.msra.mxu0 0
        %559 = vmatpush.bf16.msra.mxu0 0
        %560 = vmatpush.bf16.msra.mxu0 %v548
        %561 = vmatpush.bf16.msra.mxu0 %v547
        %562 = vmatmul.bf16.gmra.mxu0 %v552
        %v563 = vpop.f32.mrf.mxu0
        %v564 = vadd.f32 0.0, %v563
        %v565 = vpop.f32.mrf.mxu0
        %566 = vdwg.mxu0
        %v567 = vadd.f32 %v530, %v564
        %s568 = sadd.s32 %s195, 2
        %s569 = sadd.s32 %s568, %s277
        %s570 = smul.addr %s569, 4
        %s571 = scalar_lea.vmem %s183, %s570
        %v572 = vld [vmem:[%s571] sm:$0x3]
        %v577 = vunpack.c.l.b16 %v236
        %v578 = vunpack.c.l.b16 %v237
        %v579 = vunpack.c.l.b16 %v238
        %v580 = vunpack.c.l.b16 %v239
        %v581 = vpack.c.b16 %v578, %v577
        %v582 = vpack.c.b16 %v580, %v579
        %v586 = vsel %vm308, %v572, 0
        %588 = vmatpush.bf16.msra.mxu0 0
        %589 = vmatpush.bf16.msra.mxu0 0
        %590 = vmatpush.bf16.msra.mxu0 0
        %591 = vmatpush.bf16.msra.mxu0 0
        %592 = vmatpush.bf16.msra.mxu0 0
        %593 = vmatpush.bf16.msra.mxu0 0
        %594 = vmatpush.bf16.msra.mxu0 %v582
        %595 = vmatpush.bf16.msra.mxu0 %v581
        %596 = vmatmul.bf16.gmra.mxu0 %v586
        %v597 = vpop.f32.mrf.mxu0
        %v598 = vadd.f32 0.0, %v597
        %v599 = vpop.f32.mrf.mxu0
        %600 = vdwg.mxu0
        %v601 = vadd.f32 %v567, %v598
        %v603 = vunpack.c.l.b16 %v572
        %v604 = vpack.c.b16 %v603, %v603
        %v606 = vshrl.u32 %v604, 16
        %v608 = vshll.u32 %v604, 16
        %v610 = vrot.slane %v608, 1
        %v611 = vor.u32 %v606, %v610
        %v616 = vunpack.c.l.b16 %v241
        %v617 = vunpack.c.l.b16 %v242
        %v618 = vunpack.c.l.b16 %v243
        %v619 = vunpack.c.l.b16 %v244
        %v620 = vpack.c.b16 %v617, %v616
        %v621 = vpack.c.b16 %v619, %v618
        %v625 = vsel %vm308, %v611, 0
        %627 = vmatpush.bf16.msra.mxu0 0
        %628 = vmatpush.bf16.msra.mxu0 0
        %629 = vmatpush.bf16.msra.mxu0 0
        %630 = vmatpush.bf16.msra.mxu0 0
        %631 = vmatpush.bf16.msra.mxu0 0
        %632 = vmatpush.bf16.msra.mxu0 0
        %633 = vmatpush.bf16.msra.mxu0 %v621
        %634 = vmatpush.bf16.msra.mxu0 %v620
        %635 = vmatmul.bf16.gmra.mxu0 %v625
        %v636 = vpop.f32.mrf.mxu0
        %v637 = vadd.f32 0.0, %v636
        %v638 = vpop.f32.mrf.mxu0
        %639 = vdwg.mxu0
        %v640 = vadd.f32 %v601, %v637
        %v641 = vld [vmem:[%s571] sm:$0x6]
        %v643 = vunpack.c.l.b16 %v641
        %v644 = vpack.c.b16 %v643, %v643
        %v645 = vrot.slane %v644, 1
        %v650 = vunpack.c.l.b16 %v246
        %v651 = vunpack.c.l.b16 %v247
        %v652 = vunpack.c.l.b16 %v248
        %v653 = vunpack.c.l.b16 %v249
        %v654 = vpack.c.b16 %v651, %v650
        %v655 = vpack.c.b16 %v653, %v652
        %v659 = vsel %vm308, %v645, 0
        %661 = vmatpush.bf16.msra.mxu0 0
        %662 = vmatpush.bf16.msra.mxu0 0
        %663 = vmatpush.bf16.msra.mxu0 0
        %664 = vmatpush.bf16.msra.mxu0 0
        %665 = vmatpush.bf16.msra.mxu0 0
        %666 = vmatpush.bf16.msra.mxu0 0
        %667 = vmatpush.bf16.msra.mxu0 %v655
        %668 = vmatpush.bf16.msra.mxu0 %v654
        %669 = vmatmul.bf16.gmra.mxu0 %v659
        %v670 = vpop.f32.mrf.mxu0
        %v671 = vadd.f32 0.0, %v670
        %v672 = vpop.f32.mrf.mxu0
        %673 = vdwg.mxu0
        %v674 = vadd.f32 %v640, %v671
        %v676 = vshrl.u32 %v644, 16
        %v678 = vrot.slane %v676, 1
        %v679 = vshll.u32 %v644, 16
        %v681 = vrot.slane %v679, 2
        %v682 = vor.u32 %v678, %v681
        %v687 = vunpack.c.l.b16 %v251
        %v688 = vunpack.c.l.b16 %v252
        %v689 = vunpack.c.l.b16 %v253
        %v690 = vunpack.c.l.b16 %v254
        %v691 = vpack.c.b16 %v688, %v687
        %v692 = vpack.c.b16 %v690, %v689
        %v696 = vsel %vm308, %v682, 0
        %698 = vmatpush.bf16.msra.mxu0 0
        %699 = vmatpush.bf16.msra.mxu0 0
        %700 = vmatpush.bf16.msra.mxu0 0
        %701 = vmatpush.bf16.msra.mxu0 0
        %702 = vmatpush.bf16.msra.mxu0 0
        %703 = vmatpush.bf16.msra.mxu0 0
        %704 = vmatpush.bf16.msra.mxu0 %v692
        %705 = vmatpush.bf16.msra.mxu0 %v691
        %706 = vmatmul.bf16.gmra.mxu0 %v696
        %v707 = vpop.f32.mrf.mxu0
        %v708 = vadd.f32 0.0, %v707
        %v709 = vpop.f32.mrf.mxu0
        %710 = vdwg.mxu0
        %v711 = vadd.f32 %v674, %v708
        %s712 = sadd.s32 %s195, 3
        %s713 = sadd.s32 %s712, %s277
        %s714 = smul.addr %s713, 4
        %s715 = scalar_lea.vmem %s183, %s714
        %v716 = vld [vmem:[%s715] sm:$0x3]
        %v721 = vunpack.c.l.b16 %v256
        %v722 = vunpack.c.l.b16 %v257
        %v723 = vunpack.c.l.b16 %v258
        %v724 = vunpack.c.l.b16 %v259
        %v725 = vpack.c.b16 %v722, %v721
        %v726 = vpack.c.b16 %v724, %v723
        %v730 = vsel %vm308, %v716, 0
        %732 = vmatpush.bf16.msra.mxu0 0
        %733 = vmatpush.bf16.msra.mxu0 0
        %734 = vmatpush.bf16.msra.mxu0 0
        %735 = vmatpush.bf16.msra.mxu0 0
        %736 = vmatpush.bf16.msra.mxu0 0
        %737 = vmatpush.bf16.msra.mxu0 0
        %738 = vmatpush.bf16.msra.mxu0 %v726
        %739 = vmatpush.bf16.msra.mxu0 %v725
        %740 = vmatmul.bf16.gmra.mxu0 %v730
        %v741 = vpop.f32.mrf.mxu0
        %v742 = vadd.f32 0.0, %v741
        %v743 = vpop.f32.mrf.mxu0
        %744 = vdwg.mxu0
        %v745 = vadd.f32 %v711, %v742
        %v747 = vunpack.c.l.b16 %v716
        %v748 = vpack.c.b16 %v747, %v747
        %v750 = vshrl.u32 %v748, 16
        %v752 = vshll.u32 %v748, 16
        %v754 = vrot.slane %v752, 1
        %v755 = vor.u32 %v750, %v754
        %v760 = vunpack.c.l.b16 %v261
        %v761 = vunpack.c.l.b16 %v262
        %v762 = vunpack.c.l.b16 %v263
        %v763 = vunpack.c.l.b16 %v264
        %v764 = vpack.c.b16 %v761, %v760
        %v765 = vpack.c.b16 %v763, %v762
        %v769 = vsel %vm308, %v755, 0
        %771 = vmatpush.bf16.msra.mxu0 0
        %772 = vmatpush.bf16.msra.mxu0 0
        %773 = vmatpush.bf16.msra.mxu0 0
        %774 = vmatpush.bf16.msra.mxu0 0
        %775 = vmatpush.bf16.msra.mxu0 0
        %776 = vmatpush.bf16.msra.mxu0 0
        %777 = vmatpush.bf16.msra.mxu0 %v765
        %778 = vmatpush.bf16.msra.mxu0 %v764
        %779 = vmatmul.bf16.gmra.mxu0 %v769
        %v780 = vpop.f32.mrf.mxu0
        %v781 = vadd.f32 0.0, %v780
        %v782 = vpop.f32.mrf.mxu0
        %783 = vdwg.mxu0
        %v784 = vadd.f32 %v745, %v781
        %v785 = vld [vmem:[%s715] sm:$0x6]
        %v787 = vunpack.c.l.b16 %v785
        %v788 = vpack.c.b16 %v787, %v787
        %v789 = vrot.slane %v788, 1
        %v794 = vunpack.c.l.b16 %v266
        %v795 = vunpack.c.l.b16 %v267
        %v796 = vunpack.c.l.b16 %v268
        %v797 = vunpack.c.l.b16 %v269
        %v798 = vpack.c.b16 %v795, %v794
        %v799 = vpack.c.b16 %v797, %v796
        %v803 = vsel %vm308, %v789, 0
        %805 = vmatpush.bf16.msra.mxu0 0
        %806 = vmatpush.bf16.msra.mxu0 0
        %807 = vmatpush.bf16.msra.mxu0 0
        %808 = vmatpush.bf16.msra.mxu0 0
        %809 = vmatpush.bf16.msra.mxu0 0
        %810 = vmatpush.bf16.msra.mxu0 0
        %811 = vmatpush.bf16.msra.mxu0 %v799
        %812 = vmatpush.bf16.msra.mxu0 %v798
        %813 = vmatmul.bf16.gmra.mxu0 %v803
        %v814 = vpop.f32.mrf.mxu0
        %v815 = vadd.f32 0.0, %v814
        %v816 = vpop.f32.mrf.mxu0
        %817 = vdwg.mxu0
        %v818 = vadd.f32 %v784, %v815
        %v820 = vshrl.u32 %v788, 16
        %v822 = vrot.slane %v820, 1
        %v823 = vshll.u32 %v788, 16
        %v825 = vrot.slane %v823, 2
        %v826 = vor.u32 %v822, %v825
        %v831 = vunpack.c.l.b16 %v271
        %v832 = vunpack.c.l.b16 %v272
        %v833 = vunpack.c.l.b16 %v273
        %v834 = vunpack.c.l.b16 %v274
        %v835 = vpack.c.b16 %v832, %v831
        %v836 = vpack.c.b16 %v834, %v833
        %v840 = vsel %vm308, %v826, 0
        %842 = vmatpush.bf16.msra.mxu0 0
        %843 = vmatpush.bf16.msra.mxu0 0
        %844 = vmatpush.bf16.msra.mxu0 0
        %845 = vmatpush.bf16.msra.mxu0 0
        %846 = vmatpush.bf16.msra.mxu0 0
        %847 = vmatpush.bf16.msra.mxu0 0
        %848 = vmatpush.bf16.msra.mxu0 %v836
        %849 = vmatpush.bf16.msra.mxu0 %v835
        %850 = vmatmul.bf16.gmra.mxu0 %v840
        %v851 = vpop.f32.mrf.mxu0
        %v852 = vadd.f32 0.0, %v851
        %v853 = vpop.f32.mrf.mxu0
        %854 = vdwg.mxu0
        %v855 = vadd.f32 %v818, %v852
        %v857 = vperm.slane %v275, 0
        %v859 = vadd.f32 %v855, %v857
        %v860 = vmul.f32 %v859, 0.2
        %v861 = vmax.f32 %v859, %v860
        %v862 = vpack.c.bf16 %v861, %v861
        %s863 = smul.addr %s277, 2
        %s864 = scalar_lea.vmem %s192, %s863
        %vm865 = vcmask 517120
        %vm866 = vsmask.f32 1280
        %vm867 = vmand %vm865, %vm866
        %v868 = vld [vmem:[%s864] sm:$0x3]
        %v869 = vsel %vm867, %v862, %v868
        %870 = vst [vmem:[%s864] sm:$0x3] %v869
      $region37: #{_lambda_.8} parent=31 // loop_footer
        %s281 = sadd.s32 1, %s277
      $region38: #{_lambda_.8} parent=31 // loop_footer_branch
        %276 = sbr.rel target = $region34
      $region39: #{_lambda_.8} parent=31 // loop_exit
        _
      %s871 = smul.u32 3, %s19
      %p872 = scmp.lt.s32.totalorder %s18, 1
      %s873 = scalar_select %p872, %s18, 1
      %p874 = scmp.lt.s32.totalorder %s871, 2
      %s875 = scalar_select %p874, %s871, 2
      %s876 = smul.addr %s873, 3
      %s877 = sadd.s32 %s875, %s876
      %s878 = smul.addr %s877, 2
      %s879 = scalar_lea.vmem %s3, %s878
      // Predicated region
      $region40: #{_lambda_.8} parent=31 // pred_check
        %p880 = pneg %p114
      $region41: #{_lambda_.8} parent=31 // pred_check_branch
        %882 = sbr.rel (%p880) target = $region43
      $region42: #{_lambda_.8} parent=31 // pred_region
        %s883 = smul.u32 3, %s19
      $region43: #{_lambda_.8} parent=31 // pred_fallthru
        _
    $region32: #{_lambda_.8} parent=5 // pred_fallthru
      _
    %p884 = scmp.le.s32.totalorder 2, %s9
    // Predicated region
    $region44: #{_lambda_.8} parent=5 // pred_check
      %p885 = pneg %p884
    $region45: #{_lambda_.8} parent=5 // pred_check_branch
      %887 = sbr.rel (%p885) target = $region47
    $region46: #{_lambda_.8} parent=5 // pred_region
      %s888 = ssub.s32 %s9, 2
      // Predicated region
      $region48: #{_lambda_.8} parent=46 // pred_check
        %p889 = pneg %p120
      $region49: #{_lambda_.8} parent=46 // pred_check_branch
        %891 = sbr.rel (%p889) target = $region51
      $region50: #{_lambda_.8} parent=46 // pred_region
        %s892 = smul.u32 3, %s21
        %p893 = scmp.lt.s32.totalorder %s20, 1
        %s894 = scalar_select %p893, %s20, 1
        %p895 = scmp.lt.s32.totalorder %s892, 2
        %s896 = scalar_select %p895, %s892, 2
        %s897 = smul.addr %s894, 3
        %s898 = sadd.s32 %s896, %s897
        %s899 = smul.addr %s898, 2
        %s900 = scalar_lea.vmem %s3, %s899
      $region51: #{_lambda_.8} parent=46 // pred_fallthru
        _
    $region47: #{_lambda_.8} parent=5 // pred_fallthru
      _
  $region6: #{_lambda_.8} parent=0 // loop_footer
    %s13 = sadd.s32 1, %s9
  $region7: #{_lambda_.8} parent=0 // loop_footer_branch
    %8 = sbr.rel target = $region3
  $region8: #{_lambda_.8} parent=0 // loop_exit
    _

// kernel: _lambda_.9
$region0: #{_lambda_.9}
  #allocation0 [shape = 'u32[]', space=smem, size = 0x4, offset = 0x4, fixed_abs, tag = 'smem constant byte address 0x4 - core index']
  #allocation1 [shape = 'u32[72,128]{1,0:T(1,128)}', space=vmem, size = 0x9000, scoped, tag = 'internal scratch']
  #allocation2 [shape = 'f32[1,1]{1,0:T(1,128)S(1)}', space=vmem, size = 0x200, scoped, tag = 'scoped memory for _lambda_.9']
  %s0 = inlined_call_operand.vmem [shape: bf16[2,5,1,5,64], index: 0, kind: input, shape index: {}]
  %s1 = inlined_call_operand.vmem [shape: bf16[16,64,1], index: 1, kind: input, shape index: {}]
  %s2 = inlined_call_operand.<no memory space> [shape: f32[1,1], index: 2, kind: input, shape index: {}]
  %s3 = inlined_call_operand.vmem [shape: f32[2,2,2,1], index: 3, kind: output, shape index: {}]
  %s4 = sld [smem:[#allocation0]]
  $region52: #{_lambda_.9} parent=0
    _
  %s6 = ssub.s32 1, %s4
  %s7 = scalar_select 0, %s6, %s4
  %v8 = vstv %s2
  %9 = vst [vmem:[#allocation2] sm:$0x1] %v8
  loop: start=0, step=1, limit=4
  $region2: #{_lambda_.9} parent=0 // loop_pre_header
    _
  $region3: #{_lambda_.9} parent=0 // loop_header
    %s11 = sphi 0, %s15
    %p12 = scmp.ge.s32.totalorder %s11, 4
    %s18 = sphi 0, %s30
    %s19 = sphi 0, %s26
    %s20 = sphi 0, %s18
    %s21 = sphi 0, %s19
    %s22 = sphi 0, %s20
    %s23 = sphi 0, %s21
    %s33 = sphi 0, %s35
    %s36 = sphi 0, %s33
    %s37 = sphi 0, %s36
    %s53 = sphi 0, %s37
    %s57 = sphi 0, %s57
    %s59 = sphi 0, %s57
    %s60 = sphi 0, %s59
    %s74 = sphi 0, %s60
    %s78 = sphi 0, %s78
    %s80 = sphi 0, %s78
    %s81 = sphi 0, %s80
    %s95 = sphi 0, %s81
    %s103 = sphi 0, %s105
    %s106 = sphi 0, %s103
    %s107 = sphi 0, %s106
    %s123 = sphi 0, %s107
  $region4: #{_lambda_.9} parent=0 // loop_header_branch
    %14 = sbr.rel (%p12) target = $region8
  $region5: #{_lambda_.9} parent=0 // loop_body
    %s16 = ssub.s32 %s11, 1
    %s17 = ssub.s32 %s11, 2
    %s24 = sadd.s32 1, %s19
    %p25 = scmp.ge.s32.totalorder %s24, 1
    %s26 = scalar_select %p25, 0, %s24
    %s27 = sadd.s32 1, %s18
    %s28 = scalar_select %p25, %s27, %s18
    %p29 = scmp.ge.s32.totalorder %s28, 2
    %s30 = scalar_select %p29, 0, %s28
    %s31 = ssub.s32 %s18, %s30
    %p32 = scmp.eq.s32.totalorder %s31, 0
    %s34 = sadd.s32 %s33, 1
    %s35 = scalar_select %p32, %s33, %s34
    %p38 = pneg %p32
    %p39 = scmp.eq.s32.totalorder %s11, 1
    %p40 = por %p38, %p39
    %p41 = scmp.ne.s32.totalorder %s33, %s36
    %p42 = scmp.eq.s32.totalorder %s11, 0
    %p43 = por %p41, %p42
    %p44 = scmp.ne.s32.totalorder %s33, %s36
    %p45 = scmp.eq.s32.totalorder %s16, 1
    %p46 = por %p44, %p45
    %p47 = scmp.ne.s32.totalorder %s36, %s37
    %p48 = scmp.eq.s32.totalorder %s16, 0
    %p49 = por %p47, %p48
    %p50 = scmp.ne.s32.totalorder %s36, %s37
    %p51 = scmp.eq.s32.totalorder %s17, 1
    %p52 = por %p50, %p51
    %p54 = scmp.ne.s32.totalorder %s37, %s53
    %p55 = scmp.eq.s32.totalorder %s17, 0
    %p56 = por %p54, %p55
    %s58 = sadd.s32 %s57, 1
    %p61 = scmp.eq.s32.totalorder %s11, 1
    %p62 = scmp.ne.s32.totalorder %s57, %s59
    %p63 = scmp.eq.s32.totalorder %s11, 0
    %p64 = por %p62, %p63
    %p65 = scmp.ne.s32.totalorder %s57, %s59
    %p66 = scmp.eq.s32.totalorder %s16, 1
    %p67 = por %p65, %p66
    %p68 = scmp.ne.s32.totalorder %s59, %s60
    %p69 = scmp.eq.s32.totalorder %s16, 0
    %p70 = por %p68, %p69
    %p71 = scmp.ne.s32.totalorder %s59, %s60
    %p72 = scmp.eq.s32.totalorder %s17, 1
    %p73 = por %p71, %p72
    %p75 = scmp.ne.s32.totalorder %s60, %s74
    %p76 = scmp.eq.s32.totalorder %s17, 0
    %p77 = por %p75, %p76
    %s79 = sadd.s32 %s78, 1
    %p82 = scmp.eq.s32.totalorder %s11, 1
    %p83 = scmp.ne.s32.totalorder %s78, %s80
    %p84 = scmp.eq.s32.totalorder %s11, 0
    %p85 = por %p83, %p84
    %p86 = scmp.ne.s32.totalorder %s78, %s80
    %p87 = scmp.eq.s32.totalorder %s16, 1
    %p88 = por %p86, %p87
    %p89 = scmp.ne.s32.totalorder %s80, %s81
    %p90 = scmp.eq.s32.totalorder %s16, 0
    %p91 = por %p89, %p90
    %p92 = scmp.ne.s32.totalorder %s80, %s81
    %p93 = scmp.eq.s32.totalorder %s17, 1
    %p94 = por %p92, %p93
    %p96 = scmp.ne.s32.totalorder %s81, %s95
    %p97 = scmp.eq.s32.totalorder %s17, 0
    %p98 = por %p96, %p97
    %s99 = ssub.s32 %s18, %s30
    %s100 = ssub.s32 %s19, %s26
    %s101 = sor.u32 %s99, %s100
    %p102 = scmp.eq.s32.totalorder %s101, 0
    %s104 = sadd.s32 %s103, 1
    %s105 = scalar_select %p102, %s103, %s104
    %p108 = pneg %p102
    %p109 = scmp.eq.s32.totalorder %s11, 1
    %p110 = por %p108, %p109
    %p111 = scmp.ne.s32.totalorder %s103, %s106
    %p112 = scmp.eq.s32.totalorder %s11, 0
    %p113 = por %p111, %p112
    %p114 = scmp.ne.s32.totalorder %s103, %s106
    %p115 = scmp.eq.s32.totalorder %s16, 1
    %p116 = por %p114, %p115
    %p117 = scmp.ne.s32.totalorder %s106, %s107
    %p118 = scmp.eq.s32.totalorder %s16, 0
    %p119 = por %p117, %p118
    %p120 = scmp.ne.s32.totalorder %s106, %s107
    %p121 = scmp.eq.s32.totalorder %s17, 1
    %p122 = por %p120, %p121
    %p124 = scmp.ne.s32.totalorder %s107, %s123
    %p125 = scmp.eq.s32.totalorder %s17, 0
    %p126 = por %p124, %p125
    %p127 = scmp.le.s32.totalorder 1, %s11
    %p128 = scmp.lt.s32.totalorder %s11, 3
    %p129 = pnand %p127, %p128
    %p130 = pneg %p129
    // Predicated region
    $region9: #{_lambda_.9} parent=5 // pred_check
      _
    $region10: #{_lambda_.9} parent=5 // pred_check_branch
      %132 = sbr.rel (%p129) target = $region12
    $region11: #{_lambda_.9} parent=5 // pred_region
      %s133 = ssub.s32 %s11, 1
      // Predicated region
      $region13: #{_lambda_.9} parent=11 // pred_check
        %p134 = pneg %p70
      $region14: #{_lambda_.9} parent=11 // pred_check_branch
        %136 = sbr.rel (%p134) target = $region16
      $region15: #{_lambda_.9} parent=11 // pred_region
        _
      $region16: #{_lambda_.9} parent=11 // pred_fallthru
        _
      // Predicated region
      $region17: #{_lambda_.9} parent=11 // pred_check
        %p137 = pneg %p91
      $region18: #{_lambda_.9} parent=11 // pred_check_branch
        %139 = sbr.rel (%p137) target = $region20
      $region19: #{_lambda_.9} parent=11 // pred_region
        _
      $region20: #{_lambda_.9} parent=11 // pred_fallthru
        _
    $region12: #{_lambda_.9} parent=5 // pred_fallthru
      _
    %p140 = scmp.lt.s32.totalorder %s11, 2
    // Predicated region
    $region21: #{_lambda_.9} parent=5 // pred_check
      %p141 = pneg %p140
    $region22: #{_lambda_.9} parent=5 // pred_check_branch
      %143 = sbr.rel (%p141) target = $region24
    $region23: #{_lambda_.9} parent=5 // pred_region
      // Predicated region
      $region25: #{_lambda_.9} parent=23 // pred_check
        %p144 = pneg %p43
      $region26: #{_lambda_.9} parent=23 // pred_check_branch
        %146 = sbr.rel (%p144) target = $region28
      $region27: #{_lambda_.9} parent=23 // pred_region
        %p147 = scmp.lt.s32.totalorder %s18, 1
        %s148 = scalar_select %p147, %s18, 1
        %s149 = smul.addr %s148, 5
        %s150 = smul.addr %s149, 4
        %s151 = scalar_lea.vmem %s0, %s150
      $region28: #{_lambda_.9} parent=23 // pred_fallthru
        _
    $region24: #{_lambda_.9} parent=5 // pred_fallthru
      _
    %p152 = scmp.le.s32.totalorder 1, %s11
    %p153 = scmp.lt.s32.totalorder %s11, 3
    %p154 = pnand %p152, %p153
    %p155 = pneg %p154
    // Predicated region
    $region29: #{_lambda_.9} parent=5 // pred_check
      _
    $region30: #{_lambda_.9} parent=5 // pred_check_branch
      %157 = sbr.rel (%p154) target = $region32
    $region31: #{_lambda_.9} parent=5 // pred_region
      %s158 = ssub.s32 %s11, 1
      %p159 = scmp.lt.s32.totalorder %s20, 1
      %s160 = scalar_select %p159, %s20, 1
      %s161 = smul.addr %s160, 5
      %s162 = smul.addr %s161, 4
      %s163 = scalar_lea.vmem %s0, %s162
      %p164 = pneg %p49
      %p165 = pneg %p46
      %p166 = pneg %p70
      %p167 = pneg %p67
      %p168 = pneg %p91
      %p169 = pneg %p88
      %p170 = pneg %p119
      %p171 = pneg %p116
      %s172 = smul.u32 2, %s21
      %p173 = scmp.lt.s32.totalorder %s20, 1
      %s174 = scalar_select %p173, %s20, 1
      %p175 = scmp.lt.s32.totalorder %s172, 1
      %s176 = scalar_select %p175, %s172, 1
      %s177 = smul.addr %s174, 2
      %s178 = sadd.s32 %s176, %s177
      %s179 = smul.addr %s178, 2
      %s180 = scalar_lea.vmem %s3, %s179
      %p181 = scmp.lt.s32.totalorder %s20, 1
      %s182 = scalar_select %p181, %s20, 1
      %s183 = smul.addr %s182, 5
      %s184 = smul.addr %s183, 4
      %s185 = scalar_lea.vmem %s0, %s184
      %s186 = smul.u32 2, %s21
      %p187 = scmp.lt.s32.totalorder %s20, 1
      %s188 = scalar_select %p187, %s20, 1
      %p189 = scmp.lt.s32.totalorder %s186, 1
      %s190 = scalar_select %p189, %s186, 1
      %s191 = smul.addr %s188, 2
      %s192 = sadd.s32 %s190, %s191
      %s193 = smul.addr %s192, 2
      %s194 = scalar_lea.vmem %s3, %s193
      %s195 = smul.u32 2, %s21
      %s197 = smul.u32 %s21, 2
      %v198 = vld [vmem:[%s1] sm:$0xf]
      %v199 = vld [vmem:[%s1 + $0x4] sm:$0xf]
      %v200 = vld [vmem:[%s1 + $0x8] sm:$0xf]
      %v201 = vld [vmem:[%s1 + $0xc] sm:$0xf]
      %v202 = vld [vmem:[%s1 + $0x10] sm:$0xf]
      %v203 = vld [vmem:[%s1 + $0x14] sm:$0xf]
      %v204 = vld [vmem:[%s1 + $0x18] sm:$0xf]
      %v205 = vld [vmem:[%s1 + $0x1c] sm:$0xf]
      %s206 = scalar_lea.vmem %s1, 32
      %v207 = vld [vmem:[%s206] sm:$0xf]
      %v208 = vld [vmem:[%s206 + $0x4] sm:$0xf]
      %v209 = vld [vmem:[%s206 + $0x8] sm:$0xf]
      %v210 = vld [vmem:[%s206 + $0xc] sm:$0xf]
      %v211 = vld [vmem:[%s206 + $0x10] sm:$0xf]
      %v212 = vld [vmem:[%s206 + $0x14] sm:$0xf]
      %v213 = vld [vmem:[%s206 + $0x18] sm:$0xf]
      %v214 = vld [vmem:[%s206 + $0x1c] sm:$0xf]
      %s215 = scalar_lea.vmem %s1, 64
      %v216 = vld [vmem:[%s215] sm:$0xf]
      %v217 = vld [vmem:[%s215 + $0x4] sm:$0xf]
      %v218 = vld [vmem:[%s215 + $0x8] sm:$0xf]
      %v219 = vld [vmem:[%s215 + $0xc] sm:$0xf]
      %v220 = vld [vmem:[%s215 + $0x10] sm:$0xf]
      %v221 = vld [vmem:[%s215 + $0x14] sm:$0xf]
      %v222 = vld [vmem:[%s215 + $0x18] sm:$0xf]
      %v223 = vld [vmem:[%s215 + $0x1c] sm:$0xf]
      %s224 = scalar_lea.vmem %s1, 96
      %v225 = vld [vmem:[%s224] sm:$0xf]
      %v226 = vld [vmem:[%s224 + $0x4] sm:$0xf]
      %v227 = vld [vmem:[%s224 + $0x8] sm:$0xf]
      %v228 = vld [vmem:[%s224 + $0xc] sm:$0xf]
      %v229 = vld [vmem:[%s224 + $0x10] sm:$0xf]
      %v230 = vld [vmem:[%s224 + $0x14] sm:$0xf]
      %v231 = vld [vmem:[%s224 + $0x18] sm:$0xf]
      %v232 = vld [vmem:[%s224 + $0x1c] sm:$0xf]
      %s233 = scalar_lea.vmem %s1, 128
      %v234 = vld [vmem:[%s233] sm:$0xf]
      %v235 = vld [vmem:[%s233 + $0x4] sm:$0xf]
      %v236 = vld [vmem:[%s233 + $0x8] sm:$0xf]
      %v237 = vld [vmem:[%s233 + $0xc] sm:$0xf]
      %v238 = vld [vmem:[%s233 + $0x10] sm:$0xf]
      %v239 = vld [vmem:[%s233 + $0x14] sm:$0xf]
      %v240 = vld [vmem:[%s233 + $0x18] sm:$0xf]
      %v241 = vld [vmem:[%s233 + $0x1c] sm:$0xf]
      %s242 = scalar_lea.vmem %s1, 160
      %v243 = vld [vmem:[%s242] sm:$0xf]
      %v244 = vld [vmem:[%s242 + $0x4] sm:$0xf]
      %v245 = vld [vmem:[%s242 + $0x8] sm:$0xf]
      %v246 = vld [vmem:[%s242 + $0xc] sm:$0xf]
      %v247 = vld [vmem:[%s242 + $0x10] sm:$0xf]
      %v248 = vld [vmem:[%s242 + $0x14] sm:$0xf]
      %v249 = vld [vmem:[%s242 + $0x18] sm:$0xf]
      %v250 = vld [vmem:[%s242 + $0x1c] sm:$0xf]
      %s251 = scalar_lea.vmem %s1, 192
      %v252 = vld [vmem:[%s251] sm:$0xf]
      %v253 = vld [vmem:[%s251 + $0x4] sm:$0xf]
      %v254 = vld [vmem:[%s251 + $0x8] sm:$0xf]
      %v255 = vld [vmem:[%s251 + $0xc] sm:$0xf]
      %v256 = vld [vmem:[%s251 + $0x10] sm:$0xf]
      %v257 = vld [vmem:[%s251 + $0x14] sm:$0xf]
      %v258 = vld [vmem:[%s251 + $0x18] sm:$0xf]
      %v259 = vld [vmem:[%s251 + $0x1c] sm:$0xf]
      %s260 = scalar_lea.vmem %s1, 224
      %v261 = vld [vmem:[%s260] sm:$0xf]
      %v262 = vld [vmem:[%s260 + $0x4] sm:$0xf]
      %v263 = vld [vmem:[%s260 + $0x8] sm:$0xf]
      %v264 = vld [vmem:[%s260 + $0xc] sm:$0xf]
      %v265 = vld [vmem:[%s260 + $0x10] sm:$0xf]
      %v266 = vld [vmem:[%s260 + $0x14] sm:$0xf]
      %v267 = vld [vmem:[%s260 + $0x18] sm:$0xf]
      %v268 = vld [vmem:[%s260 + $0x1c] sm:$0xf]
      %s269 = scalar_lea.vmem %s1, 256
      %v270 = vld [vmem:[%s269] sm:$0xf]
      %v271 = vld [vmem:[%s269 + $0x4] sm:$0xf]
      %v272 = vld [vmem:[%s269 + $0x8] sm:$0xf]
      %v273 = vld [vmem:[%s269 + $0xc] sm:$0xf]
      %v274 = vld [vmem:[%s269 + $0x10] sm:$0xf]
      %v275 = vld [vmem:[%s269 + $0x14] sm:$0xf]
      %v276 = vld [vmem:[%s269 + $0x18] sm:$0xf]
      %v277 = vld [vmem:[%s269 + $0x1c] sm:$0xf]
      %s278 = scalar_lea.vmem %s1, 288
      %v279 = vld [vmem:[%s278] sm:$0xf]
      %v280 = vld [vmem:[%s278 + $0x4] sm:$0xf]
      %v281 = vld [vmem:[%s278 + $0x8] sm:$0xf]
      %v282 = vld [vmem:[%s278 + $0xc] sm:$0xf]
      %v283 = vld [vmem:[%s278 + $0x10] sm:$0xf]
      %v284 = vld [vmem:[%s278 + $0x14] sm:$0xf]
      %v285 = vld [vmem:[%s278 + $0x18] sm:$0xf]
      %v286 = vld [vmem:[%s278 + $0x1c] sm:$0xf]
      %s287 = scalar_lea.vmem %s1, 320
      %v288 = vld [vmem:[%s287] sm:$0xf]
      %v289 = vld [vmem:[%s287 + $0x4] sm:$0xf]
      %v290 = vld [vmem:[%s287 + $0x8] sm:$0xf]
      %v291 = vld [vmem:[%s287 + $0xc] sm:$0xf]
      %v292 = vld [vmem:[%s287 + $0x10] sm:$0xf]
      %v293 = vld [vmem:[%s287 + $0x14] sm:$0xf]
      %v294 = vld [vmem:[%s287 + $0x18] sm:$0xf]
      %v295 = vld [vmem:[%s287 + $0x1c] sm:$0xf]
      %s296 = scalar_lea.vmem %s1, 352
      %v297 = vld [vmem:[%s296] sm:$0xf]
      %v298 = vld [vmem:[%s296 + $0x4] sm:$0xf]
      %v299 = vld [vmem:[%s296 + $0x8] sm:$0xf]
      %v300 = vld [vmem:[%s296 + $0xc] sm:$0xf]
      %v301 = vld [vmem:[%s296 + $0x10] sm:$0xf]
      %v302 = vld [vmem:[%s296 + $0x14] sm:$0xf]
      %v303 = vld [vmem:[%s296 + $0x18] sm:$0xf]
      %v304 = vld [vmem:[%s296 + $0x1c] sm:$0xf]
      %s305 = scalar_lea.vmem %s1, 384
      %v306 = vld [vmem:[%s305] sm:$0xf]
      %v307 = vld [vmem:[%s305 + $0x4] sm:$0xf]
      %v308 = vld [vmem:[%s305 + $0x8] sm:$0xf]
      %v309 = vld [vmem:[%s305 + $0xc] sm:$0xf]
      %v310 = vld [vmem:[%s305 + $0x10] sm:$0xf]
      %v311 = vld [vmem:[%s305 + $0x14] sm:$0xf]
      %v312 = vld [vmem:[%s305 + $0x18] sm:$0xf]
      %v313 = vld [vmem:[%s305 + $0x1c] sm:$0xf]
      %s314 = scalar_lea.vmem %s1, 416
      %v315 = vld [vmem:[%s314] sm:$0xf]
      %v316 = vld [vmem:[%s314 + $0x4] sm:$0xf]
      %v317 = vld [vmem:[%s314 + $0x8] sm:$0xf]
      %v318 = vld [vmem:[%s314 + $0xc] sm:$0xf]
      %v319 = vld [vmem:[%s314 + $0x10] sm:$0xf]
      %v320 = vld [vmem:[%s314 + $0x14] sm:$0xf]
      %v321 = vld [vmem:[%s314 + $0x18] sm:$0xf]
      %v322 = vld [vmem:[%s314 + $0x1c] sm:$0xf]
      %s323 = scalar_lea.vmem %s1, 448
      %v324 = vld [vmem:[%s323] sm:$0xf]
      %v325 = vld [vmem:[%s323 + $0x4] sm:$0xf]
      %v326 = vld [vmem:[%s323 + $0x8] sm:$0xf]
      %v327 = vld [vmem:[%s323 + $0xc] sm:$0xf]
      %v328 = vld [vmem:[%s323 + $0x10] sm:$0xf]
      %v329 = vld [vmem:[%s323 + $0x14] sm:$0xf]
      %v330 = vld [vmem:[%s323 + $0x18] sm:$0xf]
      %v331 = vld [vmem:[%s323 + $0x1c] sm:$0xf]
      %s332 = scalar_lea.vmem %s1, 480
      %v333 = vld [vmem:[%s332] sm:$0xf]
      %v334 = vld [vmem:[%s332 + $0x4] sm:$0xf]
      %v335 = vld [vmem:[%s332 + $0x8] sm:$0xf]
      %v336 = vld [vmem:[%s332 + $0xc] sm:$0xf]
      %v337 = vld [vmem:[%s332 + $0x10] sm:$0xf]
      %v338 = vld [vmem:[%s332 + $0x14] sm:$0xf]
      %v339 = vld [vmem:[%s332 + $0x18] sm:$0xf]
      %v340 = vld [vmem:[%s332 + $0x1c] sm:$0xf]
      %v341 = vld [vmem:[#allocation2] sm:$0x1]
      loop: start=0, step=1, limit=2
      $region33: #{_lambda_.9} parent=31 // loop_pre_header
        _
      $region34: #{_lambda_.9} parent=31 // loop_header
        %s343 = sphi 0, %s347
        %p344 = scmp.ge.s32.totalorder %s343, 2
      $region35: #{_lambda_.9} parent=31 // loop_header_branch
        %346 = sbr.rel (%p344) target = $region39
      $region36: #{_lambda_.9} parent=31 // loop_body
        %s348 = sadd.s32 %s197, %s343
        %s349 = smul.addr %s348, 4
        %s350 = scalar_lea.vmem %s185, %s349
        %v351 = vld [vmem:[%s350] sm:$0x1]
        %v352 = vld [vmem:[%s350] sm:$0x3]
        %v354 = vunpack.c.l.b16 %v352
        %v355 = vpack.c.b16 %v354, %v354
        %v357 = vshrl.u32 %v355, 16
        %v359 = vshll.u32 %v355, 16
        %v361 = vrot.slane %v359, 1
        %v362 = vor.u32 %v357, %v361
        %v371 = vunpack.c.l.b16 %v207
        %v372 = vunpack.c.l.b16 %v208
        %v373 = vunpack.c.l.b16 %v209
        %v374 = vunpack.c.l.b16 %v210
        %v375 = vunpack.c.l.b16 %v211
        %v376 = vunpack.c.l.b16 %v212
        %v377 = vunpack.c.l.b16 %v213
        %v378 = vunpack.c.l.b16 %v214
        %v379 = vpack.c.b16 %v372, %v371
        %v380 = vpack.c.b16 %v374, %v373
        %v381 = vpack.c.b16 %v376, %v375
        %v382 = vpack.c.b16 %v378, %v377
        %vm387 = vcmask 523264
        %v389 = vsel %vm387, %v362, 0
        %391 = vmatpush.bf16.msra.mxu0 0
        %392 = vmatpush.bf16.msra.mxu0 0
        %393 = vmatpush.bf16.msra.mxu0 0
        %394 = vmatpush.bf16.msra.mxu0 0
        %395 = vmatpush.bf16.msra.mxu0 %v382
        %396 = vmatpush.bf16.msra.mxu0 %v381
        %397 = vmatpush.bf16.msra.mxu0 %v380
        %398 = vmatpush.bf16.msra.mxu0 %v379
        %399 = vmatmul.bf16.gmra.mxu0 %v389
        %v400 = vpop.f32.mrf.mxu0
        %v401 = vadd.f32 0.0, %v400
        %v402 = vpop.f32.mrf.mxu0
        %403 = vdwg.mxu0
        %v412 = vunpack.c.l.b16 %v198
        %v413 = vunpack.c.l.b16 %v199
        %v414 = vunpack.c.l.b16 %v200
        %v415 = vunpack.c.l.b16 %v201
        %v416 = vunpack.c.l.b16 %v202
        %v417 = vunpack.c.l.b16 %v203
        %v418 = vunpack.c.l.b16 %v204
        %v419 = vunpack.c.l.b16 %v205
        %v420 = vpack.c.b16 %v413, %v412
        %v421 = vpack.c.b16 %v415, %v414
        %v422 = vpack.c.b16 %v417, %v416
        %v423 = vpack.c.b16 %v419, %v418
        %v429 = vsel %vm387, %v351, 0
        %431 = vmatpush.bf16.msra.mxu0 0
        %432 = vmatpush.bf16.msra.mxu0 0
        %433 = vmatpush.bf16.msra.mxu0 0
        %434 = vmatpush.bf16.msra.mxu0 0
        %435 = vmatpush.bf16.msra.mxu0 %v423
        %436 = vmatpush.bf16.msra.mxu0 %v422
        %437 = vmatpush.bf16.msra.mxu0 %v421
        %438 = vmatpush.bf16.msra.mxu0 %v420
        %439 = vmatmul.bf16.gmra.mxu0 %v429
        %v440 = vpop.f32.mrf.mxu0
        %v441 = vadd.f32 %v401, %v440
        %v442 = vpop.f32.mrf.mxu0
        %443 = vdwg.mxu0
        %v444 = vld [vmem:[%s350] sm:$0x2]
        %v446 = vunpack.c.l.b16 %v444
        %v447 = vpack.c.b16 %v446, %v446
        %v448 = vrot.slane %v447, 1
        %v457 = vunpack.c.l.b16 %v216
        %v458 = vunpack.c.l.b16 %v217
        %v459 = vunpack.c.l.b16 %v218
        %v460 = vunpack.c.l.b16 %v219
        %v461 = vunpack.c.l.b16 %v220
        %v462 = vunpack.c.l.b16 %v221
        %v463 = vunpack.c.l.b16 %v222
        %v464 = vunpack.c.l.b16 %v223
        %v465 = vpack.c.b16 %v458, %v457
        %v466 = vpack.c.b16 %v460, %v459
        %v467 = vpack.c.b16 %v462, %v461
        %v468 = vpack.c.b16 %v464, %v463
        %v474 = vsel %vm387, %v448, 0
        %476 = vmatpush.bf16.msra.mxu0 0
        %477 = vmatpush.bf16.msra.mxu0 0
        %478 = vmatpush.bf16.msra.mxu0 0
        %479 = vmatpush.bf16.msra.mxu0 0
        %480 = vmatpush.bf16.msra.mxu0 %v468
        %481 = vmatpush.bf16.msra.mxu0 %v467
        %482 = vmatpush.bf16.msra.mxu0 %v466
        %483 = vmatpush.bf16.msra.mxu0 %v465
        %484 = vmatmul.bf16.gmra.mxu0 %v474
        %v485 = vpop.f32.mrf.mxu0
        %v486 = vadd.f32 0.0, %v485
        %v487 = vpop.f32.mrf.mxu0
        %488 = vdwg.mxu0
        %v489 = vadd.f32 %v441, %v486
        %v490 = vld [vmem:[%s350] sm:$0x6]
        %v492 = vunpack.c.l.b16 %v490
        %v493 = vpack.c.b16 %v492, %v492
        %v495 = vshrl.u32 %v493, 16
        %v497 = vrot.slane %v495, 1
        %v498 = vshll.u32 %v493, 16
        %v500 = vrot.slane %v498, 2
        %v501 = vor.u32 %v497, %v500
        %v510 = vunpack.c.l.b16 %v225
        %v511 = vunpack.c.l.b16 %v226
        %v512 = vunpack.c.l.b16 %v227
        %v513 = vunpack.c.l.b16 %v228
        %v514 = vunpack.c.l.b16 %v229
        %v515 = vunpack.c.l.b16 %v230
        %v516 = vunpack.c.l.b16 %v231
        %v517 = vunpack.c.l.b16 %v232
        %v518 = vpack.c.b16 %v511, %v510
        %v519 = vpack.c.b16 %v513, %v512
        %v520 = vpack.c.b16 %v515, %v514
        %v521 = vpack.c.b16 %v517, %v516
        %v527 = vsel %vm387, %v501, 0
        %529 = vmatpush.bf16.msra.mxu0 0
        %530 = vmatpush.bf16.msra.mxu0 0
        %531 = vmatpush.bf16.msra.mxu0 0
        %532 = vmatpush.bf16.msra.mxu0 0
        %533 = vmatpush.bf16.msra.mxu0 %v521
        %534 = vmatpush.bf16.msra.mxu0 %v520
        %535 = vmatpush.bf16.msra.mxu0 %v519
        %536 = vmatpush.bf16.msra.mxu0 %v518
        %537 = vmatmul.bf16.gmra.mxu0 %v527
        %v538 = vpop.f32.mrf.mxu0
        %v539 = vadd.f32 0.0, %v538
        %v540 = vpop.f32.mrf.mxu0
        %541 = vdwg.mxu0
        %v542 = vadd.f32 %v489, %v539
        %s543 = sadd.s32 %s197, 1
        %s544 = sadd.s32 %s543, %s343
        %s545 = smul.addr %s544, 4
        %s546 = scalar_lea.vmem %s185, %s545
        %v547 = vld [vmem:[%s546] sm:$0x1]
        %v556 = vunpack.c.l.b16 %v234
        %v557 = vunpack.c.l.b16 %v235
        %v558 = vunpack.c.l.b16 %v236
        %v559 = vunpack.c.l.b16 %v237
        %v560 = vunpack.c.l.b16 %v238
        %v561 = vunpack.c.l.b16 %v239
        %v562 = vunpack.c.l.b16 %v240
        %v563 = vunpack.c.l.b16 %v241
        %v564 = vpack.c.b16 %v557, %v556
        %v565 = vpack.c.b16 %v559, %v558
        %v566 = vpack.c.b16 %v561, %v560
        %v567 = vpack.c.b16 %v563, %v562
        %v573 = vsel %vm387, %v547, 0
        %575 = vmatpush.bf16.msra.mxu0 0
        %576 = vmatpush.bf16.msra.mxu0 0
        %577 = vmatpush.bf16.msra.mxu0 0
        %578 = vmatpush.bf16.msra.mxu0 0
        %579 = vmatpush.bf16.msra.mxu0 %v567
        %580 = vmatpush.bf16.msra.mxu0 %v566
        %581 = vmatpush.bf16.msra.mxu0 %v565
        %582 = vmatpush.bf16.msra.mxu0 %v564
        %583 = vmatmul.bf16.gmra.mxu0 %v573
        %v584 = vpop.f32.mrf.mxu0
        %v585 = vadd.f32 0.0, %v584
        %v586 = vpop.f32.mrf.mxu0
        %587 = vdwg.mxu0
        %v588 = vadd.f32 %v542, %v585
        %v589 = vld [vmem:[%s546] sm:$0x3]
        %v591 = vunpack.c.l.b16 %v589
        %v592 = vpack.c.b16 %v591, %v591
        %v594 = vshrl.u32 %v592, 16
        %v596 = vshll.u32 %v592, 16
        %v598 = vrot.slane %v596, 1
        %v599 = vor.u32 %v594, %v598
        %v608 = vunpack.c.l.b16 %v243
        %v609 = vunpack.c.l.b16 %v244
        %v610 = vunpack.c.l.b16 %v245
        %v611 = vunpack.c.l.b16 %v246
        %v612 = vunpack.c.l.b16 %v247
        %v613 = vunpack.c.l.b16 %v248
        %v614 = vunpack.c.l.b16 %v249
        %v615 = vunpack.c.l.b16 %v250
        %v616 = vpack.c.b16 %v609, %v608
        %v617 = vpack.c.b16 %v611, %v610
        %v618 = vpack.c.b16 %v613, %v612
        %v619 = vpack.c.b16 %v615, %v614
        %v625 = vsel %vm387, %v599, 0
        %627 = vmatpush.bf16.msra.mxu0 0
        %628 = vmatpush.bf16.msra.mxu0 0
        %629 = vmatpush.bf16.msra.mxu0 0
        %630 = vmatpush.bf16.msra.mxu0 0
        %631 = vmatpush.bf16.msra.mxu0 %v619
        %632 = vmatpush.bf16.msra.mxu0 %v618
        %633 = vmatpush.bf16.msra.mxu0 %v617
        %634 = vmatpush.bf16.msra.mxu0 %v616
        %635 = vmatmul.bf16.gmra.mxu0 %v625
        %v636 = vpop.f32.mrf.mxu0
        %v637 = vadd.f32 0.0, %v636
        %v638 = vpop.f32.mrf.mxu0
        %639 = vdwg.mxu0
        %v640 = vadd.f32 %v588, %v637
        %v641 = vld [vmem:[%s546] sm:$0x2]
        %v643 = vunpack.c.l.b16 %v641
        %v644 = vpack.c.b16 %v643, %v643
        %v645 = vrot.slane %v644, 1
        %v654 = vunpack.c.l.b16 %v252
        %v655 = vunpack.c.l.b16 %v253
        %v656 = vunpack.c.l.b16 %v254
        %v657 = vunpack.c.l.b16 %v255
        %v658 = vunpack.c.l.b16 %v256
        %v659 = vunpack.c.l.b16 %v257
        %v660 = vunpack.c.l.b16 %v258
        %v661 = vunpack.c.l.b16 %v259
        %v662 = vpack.c.b16 %v655, %v654
        %v663 = vpack.c.b16 %v657, %v656
        %v664 = vpack.c.b16 %v659, %v658
        %v665 = vpack.c.b16 %v661, %v660
        %v671 = vsel %vm387, %v645, 0
        %673 = vmatpush.bf16.msra.mxu0 0
        %674 = vmatpush.bf16.msra.mxu0 0
        %675 = vmatpush.bf16.msra.mxu0 0
        %676 = vmatpush.bf16.msra.mxu0 0
        %677 = vmatpush.bf16.msra.mxu0 %v665
        %678 = vmatpush.bf16.msra.mxu0 %v664
        %679 = vmatpush.bf16.msra.mxu0 %v663
        %680 = vmatpush.bf16.msra.mxu0 %v662
        %681 = vmatmul.bf16.gmra.mxu0 %v671
        %v682 = vpop.f32.mrf.mxu0
        %v683 = vadd.f32 0.0, %v682
        %v684 = vpop.f32.mrf.mxu0
        %685 = vdwg.mxu0
        %v686 = vadd.f32 %v640, %v683
        %v687 = vld [vmem:[%s546] sm:$0x6]
        %v689 = vunpack.c.l.b16 %v687
        %v690 = vpack.c.b16 %v689, %v689
        %v692 = vshrl.u32 %v690, 16
        %v694 = vrot.slane %v692, 1
        %v695 = vshll.u32 %v690, 16
        %v697 = vrot.slane %v695, 2
        %v698 = vor.u32 %v694, %v697
        %v707 = vunpack.c.l.b16 %v261
        %v708 = vunpack.c.l.b16 %v262
        %v709 = vunpack.c.l.b16 %v263
        %v710 = vunpack.c.l.b16 %v264
        %v711 = vunpack.c.l.b16 %v265
        %v712 = vunpack.c.l.b16 %v266
        %v713 = vunpack.c.l.b16 %v267
        %v714 = vunpack.c.l.b16 %v268
        %v715 = vpack.c.b16 %v708, %v707
        %v716 = vpack.c.b16 %v710, %v709
        %v717 = vpack.c.b16 %v712, %v711
        %v718 = vpack.c.b16 %v714, %v713
        %v724 = vsel %vm387, %v698, 0
        %726 = vmatpush.bf16.msra.mxu0 0
        %727 = vmatpush.bf16.msra.mxu0 0
        %728 = vmatpush.bf16.msra.mxu0 0
        %729 = vmatpush.bf16.msra.mxu0 0
        %730 = vmatpush.bf16.msra.mxu0 %v718
        %731 = vmatpush.bf16.msra.mxu0 %v717
        %732 = vmatpush.bf16.msra.mxu0 %v716
        %733 = vmatpush.bf16.msra.mxu0 %v715
        %734 = vmatmul.bf16.gmra.mxu0 %v724
        %v735 = vpop.f32.mrf.mxu0
        %v736 = vadd.f32 0.0, %v735
        %v737 = vpop.f32.mrf.mxu0
        %738 = vdwg.mxu0
        %v739 = vadd.f32 %v686, %v736
        %s740 = sadd.s32 %s197, 2
        %s741 = sadd.s32 %s740, %s343
        %s742 = smul.addr %s741, 4
        %s743 = scalar_lea.vmem %s185, %s742
        %v744 = vld [vmem:[%s743] sm:$0x1]
        %v753 = vunpack.c.l.b16 %v270
        %v754 = vunpack.c.l.b16 %v271
        %v755 = vunpack.c.l.b16 %v272
        %v756 = vunpack.c.l.b16 %v273
        %v757 = vunpack.c.l.b16 %v274
        %v758 = vunpack.c.l.b16 %v275
        %v759 = vunpack.c.l.b16 %v276
        %v760 = vunpack.c.l.b16 %v277
        %v761 = vpack.c.b16 %v754, %v753
        %v762 = vpack.c.b16 %v756, %v755
        %v763 = vpack.c.b16 %v758, %v757
        %v764 = vpack.c.b16 %v760, %v759
        %v770 = vsel %vm387, %v744, 0
        %772 = vmatpush.bf16.msra.mxu0 0
        %773 = vmatpush.bf16.msra.mxu0 0
        %774 = vmatpush.bf16.msra.mxu0 0
        %775 = vmatpush.bf16.msra.mxu0 0
        %776 = vmatpush.bf16.msra.mxu0 %v764
        %777 = vmatpush.bf16.msra.mxu0 %v763
        %778 = vmatpush.bf16.msra.mxu0 %v762
        %779 = vmatpush.bf16.msra.mxu0 %v761
        %780 = vmatmul.bf16.gmra.mxu0 %v770
        %v781 = vpop.f32.mrf.mxu0
        %v782 = vadd.f32 0.0, %v781
        %v783 = vpop.f32.mrf.mxu0
        %784 = vdwg.mxu0
        %v785 = vadd.f32 %v739, %v782
        %v786 = vld [vmem:[%s743] sm:$0x3]
        %v788 = vunpack.c.l.b16 %v786
        %v789 = vpack.c.b16 %v788, %v788
        %v791 = vshrl.u32 %v789, 16
        %v793 = vshll.u32 %v789, 16
        %v795 = vrot.slane %v793, 1
        %v796 = vor.u32 %v791, %v795
        %v805 = vunpack.c.l.b16 %v279
        %v806 = vunpack.c.l.b16 %v280
        %v807 = vunpack.c.l.b16 %v281
        %v808 = vunpack.c.l.b16 %v282
        %v809 = vunpack.c.l.b16 %v283
        %v810 = vunpack.c.l.b16 %v284
        %v811 = vunpack.c.l.b16 %v285
        %v812 = vunpack.c.l.b16 %v286
        %v813 = vpack.c.b16 %v806, %v805
        %v814 = vpack.c.b16 %v808, %v807
        %v815 = vpack.c.b16 %v810, %v809
        %v816 = vpack.c.b16 %v812, %v811
        %v822 = vsel %vm387, %v796, 0
        %824 = vmatpush.bf16.msra.mxu0 0
        %825 = vmatpush.bf16.msra.mxu0 0
        %826 = vmatpush.bf16.msra.mxu0 0
        %827 = vmatpush.bf16.msra.mxu0 0
        %828 = vmatpush.bf16.msra.mxu0 %v816
        %829 = vmatpush.bf16.msra.mxu0 %v815
        %830 = vmatpush.bf16.msra.mxu0 %v814
        %831 = vmatpush.bf16.msra.mxu0 %v813
        %832 = vmatmul.bf16.gmra.mxu0 %v822
        %v833 = vpop.f32.mrf.mxu0
        %v834 = vadd.f32 0.0, %v833
        %v835 = vpop.f32.mrf.mxu0
        %836 = vdwg.mxu0
        %v837 = vadd.f32 %v785, %v834
        %v838 = vld [vmem:[%s743] sm:$0x2]
        %v840 = vunpack.c.l.b16 %v838
        %v841 = vpack.c.b16 %v840, %v840
        %v842 = vrot.slane %v841, 1
        %v851 = vunpack.c.l.b16 %v288
        %v852 = vunpack.c.l.b16 %v289
        %v853 = vunpack.c.l.b16 %v290
        %v854 = vunpack.c.l.b16 %v291
        %v855 = vunpack.c.l.b16 %v292
        %v856 = vunpack.c.l.b16 %v293
        %v857 = vunpack.c.l.b16 %v294
        %v858 = vunpack.c.l.b16 %v295
        %v859 = vpack.c.b16 %v852, %v851
        %v860 = vpack.c.b16 %v854, %v853
        %v861 = vpack.c.b16 %v856, %v855
        %v862 = vpack.c.b16 %v858, %v857
        %v868 = vsel %vm387, %v842, 0
        %870 = vmatpush.bf16.msra.mxu0 0
        %871 = vmatpush.bf16.msra.mxu0 0
        %872 = vmatpush.bf16.msra.mxu0 0
        %873 = vmatpush.bf16.msra.mxu0 0
        %874 = vmatpush.bf16.msra.mxu0 %v862
        %875 = vmatpush.bf16.msra.mxu0 %v861
        %876 = vmatpush.bf16.msra.mxu0 %v860
        %877 = vmatpush.bf16.msra.mxu0 %v859
        %878 = vmatmul.bf16.gmra.mxu0 %v868
        %v879 = vpop.f32.mrf.mxu0
        %v880 = vadd.f32 0.0, %v879
        %v881 = vpop.f32.mrf.mxu0
        %882 = vdwg.mxu0
        %v883 = vadd.f32 %v837, %v880
        %v884 = vld [vmem:[%s743] sm:$0x6]
        %v886 = vunpack.c.l.b16 %v884
        %v887 = vpack.c.b16 %v886, %v886
        %v889 = vshrl.u32 %v887, 16
        %v891 = vrot.slane %v889, 1
        %v892 = vshll.u32 %v887, 16
        %v894 = vrot.slane %v892, 2
        %v895 = vor.u32 %v891, %v894
        %v904 = vunpack.c.l.b16 %v297
        %v905 = vunpack.c.l.b16 %v298
        %v906 = vunpack.c.l.b16 %v299
        %v907 = vunpack.c.l.b16 %v300
        %v908 = vunpack.c.l.b16 %v301
        %v909 = vunpack.c.l.b16 %v302
        %v910 = vunpack.c.l.b16 %v303
        %v911 = vunpack.c.l.b16 %v304
        %v912 = vpack.c.b16 %v905, %v904
        %v913 = vpack.c.b16 %v907, %v906
        %v914 = vpack.c.b16 %v909, %v908
        %v915 = vpack.c.b16 %v911, %v910
        %v921 = vsel %vm387, %v895, 0
        %923 = vmatpush.bf16.msra.mxu0 0
        %924 = vmatpush.bf16.msra.mxu0 0
        %925 = vmatpush.bf16.msra.mxu0 0
        %926 = vmatpush.bf16.msra.mxu0 0
        %927 = vmatpush.bf16.msra.mxu0 %v915
        %928 = vmatpush.bf16.msra.mxu0 %v914
        %929 = vmatpush.bf16.msra.mxu0 %v913
        %930 = vmatpush.bf16.msra.mxu0 %v912
        %931 = vmatmul.bf16.gmra.mxu0 %v921
        %v932 = vpop.f32.mrf.mxu0
        %v933 = vadd.f32 0.0, %v932
        %v934 = vpop.f32.mrf.mxu0
        %935 = vdwg.mxu0
        %v936 = vadd.f32 %v883, %v933
        %s937 = sadd.s32 %s197, 3
        %s938 = sadd.s32 %s937, %s343
        %s939 = smul.addr %s938, 4
        %s940 = scalar_lea.vmem %s185, %s939
        %v941 = vld [vmem:[%s940] sm:$0x1]
        %v950 = vunpack.c.l.b16 %v306
        %v951 = vunpack.c.l.b16 %v307
        %v952 = vunpack.c.l.b16 %v308
        %v953 = vunpack.c.l.b16 %v309
        %v954 = vunpack.c.l.b16 %v310
        %v955 = vunpack.c.l.b16 %v311
        %v956 = vunpack.c.l.b16 %v312
        %v957 = vunpack.c.l.b16 %v313
        %v958 = vpack.c.b16 %v951, %v950
        %v959 = vpack.c.b16 %v953, %v952
        %v960 = vpack.c.b16 %v955, %v954
        %v961 = vpack.c.b16 %v957, %v956
        %v967 = vsel %vm387, %v941, 0
        %969 = vmatpush.bf16.msra.mxu0 0
        %970 = vmatpush.bf16.msra.mxu0 0
        %971 = vmatpush.bf16.msra.mxu0 0
        %972 = vmatpush.bf16.msra.mxu0 0
        %973 = vmatpush.bf16.msra.mxu0 %v961
        %974 = vmatpush.bf16.msra.mxu0 %v960
        %975 = vmatpush.bf16.msra.mxu0 %v959
        %976 = vmatpush.bf16.msra.mxu0 %v958
        %977 = vmatmul.bf16.gmra.mxu0 %v967
        %v978 = vpop.f32.mrf.mxu0
        %v979 = vadd.f32 0.0, %v978
        %v980 = vpop.f32.mrf.mxu0
        %981 = vdwg.mxu0
        %v982 = vadd.f32 %v936, %v979
        %v983 = vld [vmem:[%s940] sm:$0x3]
        %v985 = vunpack.c.l.b16 %v983
        %v986 = vpack.c.b16 %v985, %v985
        %v988 = vshrl.u32 %v986, 16
        %v990 = vshll.u32 %v986, 16
        %v992 = vrot.slane %v990, 1
        %v993 = vor.u32 %v988, %v992
        %v1002 = vunpack.c.l.b16 %v315
        %v1003 = vunpack.c.l.b16 %v316
        %v1004 = vunpack.c.l.b16 %v317
        %v1005 = vunpack.c.l.b16 %v318
        %v1006 = vunpack.c.l.b16 %v319
        %v1007 = vunpack.c.l.b16 %v320
        %v1008 = vunpack.c.l.b16 %v321
        %v1009 = vunpack.c.l.b16 %v322
        %v1010 = vpack.c.b16 %v1003, %v1002
        %v1011 = vpack.c.b16 %v1005, %v1004
        %v1012 = vpack.c.b16 %v1007, %v1006
        %v1013 = vpack.c.b16 %v1009, %v1008
        %v1019 = vsel %vm387, %v993, 0
        %1021 = vmatpush.bf16.msra.mxu0 0
        %1022 = vmatpush.bf16.msra.mxu0 0
        %1023 = vmatpush.bf16.msra.mxu0 0
        %1024 = vmatpush.bf16.msra.mxu0 0
        %1025 = vmatpush.bf16.msra.mxu0 %v1013
        %1026 = vmatpush.bf16.msra.mxu0 %v1012
        %1027 = vmatpush.bf16.msra.mxu0 %v1011
        %1028 = vmatpush.bf16.msra.mxu0 %v1010
        %1029 = vmatmul.bf16.gmra.mxu0 %v1019
        %v1030 = vpop.f32.mrf.mxu0
        %v1031 = vadd.f32 0.0, %v1030
        %v1032 = vpop.f32.mrf.mxu0
        %1033 = vdwg.mxu0
        %v1034 = vadd.f32 %v982, %v1031
        %v1035 = vld [vmem:[%s940] sm:$0x2]
        %v1037 = vunpack.c.l.b16 %v1035
        %v1038 = vpack.c.b16 %v1037, %v1037
        %v1039 = vrot.slane %v1038, 1
        %v1048 = vunpack.c.l.b16 %v324
        %v1049 = vunpack.c.l.b16 %v325
        %v1050 = vunpack.c.l.b16 %v326
        %v1051 = vunpack.c.l.b16 %v327
        %v1052 = vunpack.c.l.b16 %v328
        %v1053 = vunpack.c.l.b16 %v329
        %v1054 = vunpack.c.l.b16 %v330
        %v1055 = vunpack.c.l.b16 %v331
        %v1056 = vpack.c.b16 %v1049, %v1048
        %v1057 = vpack.c.b16 %v1051, %v1050
        %v1058 = vpack.c.b16 %v1053, %v1052
        %v1059 = vpack.c.b16 %v1055, %v1054
        %v1065 = vsel %vm387, %v1039, 0
        %1067 = vmatpush.bf16.msra.mxu0 0
        %1068 = vmatpush.bf16.msra.mxu0 0
        %1069 = vmatpush.bf16.msra.mxu0 0
        %1070 = vmatpush.bf16.msra.mxu0 0
        %1071 = vmatpush.bf16.msra.mxu0 %v1059
        %1072 = vmatpush.bf16.msra.mxu0 %v1058
        %1073 = vmatpush.bf16.msra.mxu0 %v1057
        %1074 = vmatpush.bf16.msra.mxu0 %v1056
        %1075 = vmatmul.bf16.gmra.mxu0 %v1065
        %v1076 = vpop.f32.mrf.mxu0
        %v1077 = vadd.f32 0.0, %v1076
        %v1078 = vpop.f32.mrf.mxu0
        %1079 = vdwg.mxu0
        %v1080 = vadd.f32 %v1034, %v1077
        %v1081 = vld [vmem:[%s940] sm:$0x6]
        %v1083 = vunpack.c.l.b16 %v1081
        %v1084 = vpack.c.b16 %v1083, %v1083
        %v1086 = vshrl.u32 %v1084, 16
        %v1088 = vrot.slane %v1086, 1
        %v1089 = vshll.u32 %v1084, 16
        %v1091 = vrot.slane %v1089, 2
        %v1092 = vor.u32 %v1088, %v1091
        %v1101 = vunpack.c.l.b16 %v333
        %v1102 = vunpack.c.l.b16 %v334
        %v1103 = vunpack.c.l.b16 %v335
        %v1104 = vunpack.c.l.b16 %v336
        %v1105 = vunpack.c.l.b16 %v337
        %v1106 = vunpack.c.l.b16 %v338
        %v1107 = vunpack.c.l.b16 %v339
        %v1108 = vunpack.c.l.b16 %v340
        %v1109 = vpack.c.b16 %v1102, %v1101
        %v1110 = vpack.c.b16 %v1104, %v1103
        %v1111 = vpack.c.b16 %v1106, %v1105
        %v1112 = vpack.c.b16 %v1108, %v1107
        %v1118 = vsel %vm387, %v1092, 0
        %1120 = vmatpush.bf16.msra.mxu0 0
        %1121 = vmatpush.bf16.msra.mxu0 0
        %1122 = vmatpush.bf16.msra.mxu0 0
        %1123 = vmatpush.bf16.msra.mxu0 0
        %1124 = vmatpush.bf16.msra.mxu0 %v1112
        %1125 = vmatpush.bf16.msra.mxu0 %v1111
        %1126 = vmatpush.bf16.msra.mxu0 %v1110
        %1127 = vmatpush.bf16.msra.mxu0 %v1109
        %1128 = vmatmul.bf16.gmra.mxu0 %v1118
        %v1129 = vpop.f32.mrf.mxu0
        %v1130 = vadd.f32 0.0, %v1129
        %v1131 = vpop.f32.mrf.mxu0
        %1132 = vdwg.mxu0
        %v1133 = vadd.f32 %v1080, %v1130
        %v1135 = vperm.slane %v341, 0
        %v1137 = vadd.f32 %v1133, %v1135
        %v1138 = vxor.u32 %v1137, 2147483648
        %v1139 = vmul.f32 %v1138, 1.442695
        %v1140 = vpow.pop %v1139
        %v1141 = vadd.f32 %v1140, 1.0
        %v1142 = vrcp.pop %v1141
        %v1143 = vmul.f32 %v1141, %v1142
        %v1144 = vsub.f32 1.0, %v1143
        %v1145 = vmul.f32 %v1142, %v1144
        %v1146 = vadd.f32 %v1142, %v1145
        %vm1147 = vweird.f32 %v1141
        %vm1148 = vweird.f32 %v1142
        %vm1149 = vmor %vm1147, %vm1148
        %v1150 = vsel %vm1149, %v1142, %v1146
        %v1151 = vand.u32 2147483647, %v1141
        %vm1152 = vcmp.eq.f32.partialorder %v1151, 8.507059e+37
        %v1153 = vand.u32 %v1141, 2147483648
        %v1154 = vor.u32 1.1754944e-38, %v1153
        %v1155 = vsel %vm1152, %v1154, %v1150
        %v1156 = vmul.f32 1.0, %v1155
        %s1157 = smul.u32 %s343, 2
        %s1158 = scalar_lea.vmem %s194, %s1157
        %vm1159 = vcmask 1024
        %1160 = vst.msk [vmem:[%s1158] sm:$0x3] %vm1159, %v1156
      $region37: #{_lambda_.9} parent=31 // loop_footer
        %s347 = sadd.s32 1, %s343
      $region38: #{_lambda_.9} parent=31 // loop_footer_branch
        %342 = sbr.rel target = $region34
      $region39: #{_lambda_.9} parent=31 // loop_exit
        _
      %s1161 = smul.u32 2, %s21
      %p1162 = scmp.lt.s32.totalorder %s20, 1
      %s1163 = scalar_select %p1162, %s20, 1
      %p1164 = scmp.lt.s32.totalorder %s1161, 1
      %s1165 = scalar_select %p1164, %s1161, 1
      %s1166 = smul.addr %s1163, 2
      %s1167 = sadd.s32 %s1165, %s1166
      %s1168 = smul.addr %s1167, 2
      %s1169 = scalar_lea.vmem %s3, %s1168
      // Predicated region
      $region40: #{_lambda_.9} parent=31 // pred_check
        %p1170 = pneg %p116
      $region41: #{_lambda_.9} parent=31 // pred_check_branch
        %1172 = sbr.rel (%p1170) target = $region43
      $region42: #{_lambda_.9} parent=31 // pred_region
        %s1173 = smul.u32 2, %s21
      $region43: #{_lambda_.9} parent=31 // pred_fallthru
        _
    $region32: #{_lambda_.9} parent=5 // pred_fallthru
      _
    %p1174 = scmp.le.s32.totalorder 2, %s11
    // Predicated region
    $region44: #{_lambda_.9} parent=5 // pred_check
      %p1175 = pneg %p1174
    $region45: #{_lambda_.9} parent=5 // pred_check_branch
      %1177 = sbr.rel (%p1175) target = $region47
    $region46: #{_lambda_.9} parent=5 // pred_region
      %s1178 = ssub.s32 %s11, 2
      // Predicated region
      $region48: #{_lambda_.9} parent=46 // pred_check
        %p1179 = pneg %p122
      $region49: #{_lambda_.9} parent=46 // pred_check_branch
        %1181 = sbr.rel (%p1179) target = $region51
      $region50: #{_lambda_.9} parent=46 // pred_region
        %s1182 = smul.u32 2, %s23
        %p1183 = scmp.lt.s32.totalorder %s22, 1
        %s1184 = scalar_select %p1183, %s22, 1
        %p1185 = scmp.lt.s32.totalorder %s1182, 1
        %s1186 = scalar_select %p1185, %s1182, 1
        %s1187 = smul.addr %s1184, 2
        %s1188 = sadd.s32 %s1186, %s1187
        %s1189 = smul.addr %s1188, 2
        %s1190 = scalar_lea.vmem %s3, %s1189
      $region51: #{_lambda_.9} parent=46 // pred_fallthru
        _
    $region47: #{_lambda_.9} parent=5 // pred_fallthru
      _
  $region6: #{_lambda_.9} parent=0 // loop_footer
    %s15 = sadd.s32 1, %s11
  $region7: #{_lambda_.9} parent=0 // loop_footer_branch
    %10 = sbr.rel target = $region3
  $region8: #{_lambda_.9} parent=0 // loop_exit
    _

</llo_original>
